<compile_context>
chip_gen: v7x
topology: tpu7x:2x2x1
jax: 0.10.0
libtpu: 0.0.40
codegen_flags: <defaults>
</compile_context>

<pallas_src>
import jax
import jax.numpy as jnp
from jax.experimental import pallas as pl
from jax.experimental.pallas import tpu as pltpu

EPS = 1e-5  # InstanceNorm3d default eps (affine=False, track_running_stats=False)

# 3x3x3 taps in (kd, kh, kw)-major order; must match the weight flattening below.
_TAPS = tuple((dd, dh, dw) for dd in (-1, 0, 1) for dh in (-1, 0, 1) for dw in (-1, 0, 1))


def _round_up(x, m):
    return (x + m - 1) // m * m


def _make_tap_masks(D, H, W):
    """(27, S) bf16 {0,1} validity masks implementing the zero padding of each tap."""
    S = D * H * W
    s = jnp.arange(S, dtype=jnp.int32)
    d = s // (H * W)
    h = (s // W) % H
    w = s % W
    rows = []
    for (dd, dh, dw) in _TAPS:
        m = ((d + dd >= 0) & (d + dd < D) &
             (h + dh >= 0) & (h + dh < H) &
             (w + dw >= 0) & (w + dw < W))
        rows.append(m)
    return jnp.stack(rows, axis=0).astype(jnp.bfloat16)      # 0/1 are exact in bf16


def _make_fused_kernel(D, H, W, C, K9_pad):
    """Per-sample fused kernel: conv1 -> IN -> ReLU -> conv2 -> IN -> +x."""
    S = D * H * W
    KC9 = 9 * C
    # bf16 packs 16 rows per sublane tile; start the dead-row clear on a
    # 16-aligned boundary so it is a clean full-tile store (rows below KC9 that
    # get re-zeroed here are overwritten by every group build anyway).
    zstart = (KC9 // 16) * 16
    deltas = tuple(dd * H * W + dh * W + dw for (dd, dh, dw) in _TAPS)

    def kernel(x_ref, mask_ref, w1_ref, w2_ref, o_ref, xcol_ref):
        # Zero the K-padding rows of both group buffers.  Deliberately NOT under
        # @pl.when(program_id(0) == 0): the batch axis is "parallel" (megacore-
        # sharded on v7x) and each core owns a private scratch instance, so a
        # pid==0 gate would leave the second core's pad rows uninitialized.
        # Cost is only a few dozen vector stores per sample.
        if K9_pad > zstart:
            for buf in range(2):
                xcol_ref[buf, zstart:, :] = jnp.zeros(
                    (K9_pad - zstart, S), jnp.bfloat16)

        def build_group(v, g, buf):
            # Write the 9 (dh, dw) taps of kd-group g into group buffer `buf`.
            # The boundary mask (== zero padding) and the f32->bf16 cast are
            # fused into the tap store: no separate full-matrix cast pass and
            # half the store bytes vs an f32 column matrix.
            for j in range(9):
                k = g * 9 + j
                delta = deltas[k]
                if delta == 0:
                    tap = v                                   # centre tap: always valid
                else:
                    shifted = pltpu.roll(v, (-delta) % S, axis=1)
                    tap = shifted * mask_ref[k:k + 1, :]      # (1,S) bf16 mask, promoted
                xcol_ref[buf, j * C:(j + 1) * C, :] = tap.astype(jnp.bfloat16)

        def conv_in(v, w_ref):
            # Conv as 3 kd-group matmuls accumulated in f32.  Group g+1 is built
            # into the *other* buffer before the matmul on group g is issued, so
            # the XLU/VPU/vst build can overlap the MXU pushes.
            build_group(v, 0, 0)
            acc = None
            for g in range(3):
                if g + 1 < 3:
                    build_group(v, g + 1, (g + 1) & 1)
                part = jnp.dot(w_ref[g], xcol_ref[g & 1],
                               preferred_element_type=jnp.float32)   # (C, S) f32
                acc = part if acc is None else acc + part
            # InstanceNorm3d (affine=False): biased variance over the lane axis.
            # Note: the conv bias is omitted on purpose — it is cancelled exactly
            # by the mean subtraction below and leaves the variance unchanged.
            mean = jnp.mean(acc, axis=1, keepdims=True)
            cen = acc - mean
            var = jnp.mean(cen * cen, axis=1, keepdims=True)
            return cen * jax.lax.rsqrt(var + EPS)

        x = x_ref[0, :, :]                                    # (C, S) f32
        h = jnp.maximum(conv_in(x, w1_ref), 0.0)
        y = conv_in(h, w2_ref)
        o_ref[0, :, :] = (x + y).astype(o_ref.dtype)

    return kernel


def anim_resnet_block_forward(x_ncdhw, params):
    """x_ncdhw: (N, C, D, H, W) float32 (PyTorch layout). Returns same shape.

    Layout assumptions (demo shapes satisfy them): S = D*H*W a multiple of 128
    (lane-dense), C a multiple of 8 (ideally 16 so the bf16 tap writes stay
    sublane-tile aligned).  TODO(synk): pad C/S in the wrapper otherwise.
    """
    w1, b1, w2, b2 = params   # b1/b2 accepted for API compatibility but unused:
                              # bias before a non-affine InstanceNorm is a no-op.
    N, C, D, H, W = x_ncdhw.shape
    S = D * H * W
    KC9 = 9 * C
    K9_pad = _round_up(KC9, 128)       # per-group contraction depth for the MXU

    def flat_w(w):
        # (Cout, Cin, kd, kh, kw) -> (kd, Cout, 9*Cin), (kh,kw)-major, cin fastest.
        wt = jnp.transpose(w, (2, 0, 3, 4, 1)).reshape(3, C, KC9)
        wt = jnp.pad(wt, ((0, 0), (0, 0), (0, K9_pad - KC9)))
        return wt.astype(jnp.bfloat16)

    x_flat = x_ncdhw.reshape(N, C, S)            # NCDHW -> (N, C, S); no transposes
    masks = _make_tap_masks(D, H, W)             # (27, S) bf16
    w1g, w2g = flat_w(w1), flat_w(w2)

    kernel = _make_fused_kernel(D, H, W, C, K9_pad)

    # Explicit VMEM budget (the default scoped limit is 32 MiB on v6e/v7x and
    # 16 MiB on v5e): estimate the working set and leave 2x headroom, capped
    # safely below v7x's 64 MiB physical VMEM.
    est_bytes = (2 * K9_pad * S * 2            # im2col group buffers (bf16)
                 + 2 * 32 * S * 2              # masks, double-buffered, row-padded
                 + 2 * 2 * 3 * C * K9_pad * 2  # w1 + w2, double-buffered (bf16)
                 + 2 * 2 * C * S * 4           # x + out blocks, double-buffered
                 + 8 * C * S * 4)              # f32 temporaries (x, h, acc, ...)
    vmem_limit = int(min(max(2 * est_bytes, 32 * 1024 * 1024), 56 * 1024 * 1024))

    out_flat = pl.pallas_call(
        kernel,
        out_shape=jax.ShapeDtypeStruct((N, C, S), x_ncdhw.dtype),
        grid=(N,),
        in_specs=[
            pl.BlockSpec((1, C, S), lambda n: (n, 0, 0)),        # x (per-sample)
            pl.BlockSpec((27, S), lambda n: (0, 0)),             # tap masks (resident)
            pl.BlockSpec((3, C, K9_pad), lambda n: (0, 0, 0)),   # w1 per kd-group
            pl.BlockSpec((3, C, K9_pad), lambda n: (0, 0, 0)),   # w2 per kd-group
        ],
        out_specs=pl.BlockSpec((1, C, S), lambda n: (n, 0, 0)),
        scratch_shapes=[pltpu.VMEM((2, K9_pad, S), jnp.bfloat16)],  # im2col (2 group bufs)
        compiler_params=pltpu.CompilerParams(
            dimension_semantics=("parallel",),
            vmem_limit_bytes=vmem_limit),
    )(x_flat, masks, w1g, w2g)

    return out_flat.reshape(N, C, D, H, W)


# ----------------------------- pure-JAX reference ----------------------------

def _reference(x, params):
    w1, b1, w2, b2 = params

    def conv(x, w, b):
        y = jax.lax.conv_general_dilated(
            x, w, window_strides=(1, 1, 1),
            padding=((1, 1), (1, 1), (1, 1)),
            dimension_numbers=("NCDHW", "OIDHW", "NCDHW"),
            precision=jax.lax.Precision.HIGHEST)
        return y + b[None, :, None, None, None]

    def inorm(x):
        m = jnp.mean(x, axis=(2, 3, 4), keepdims=True)
        v = jnp.mean((x - m) ** 2, axis=(2, 3, 4), keepdims=True)
        return (x - m) * jax.lax.rsqrt(v + EPS)

    h = jax.nn.relu(inorm(conv(x, w1, b1)))
    return x + inorm(conv(h, w2, b2))


# ------------------------------------ main -----------------------------------

if __name__ == "__main__":
    key = jax.random.PRNGKey(0)
    # S = D*H*W = 256 (multiple of 128 -> lane-dense); C = 16 keeps the bf16
    # im2col tap writes sublane-tile aligned (16 packed rows per bf16 tile).
    N, C, D, H, W = 2, 16, 4, 8, 8
    kx, kw1, kw2, kb1, kb2 = jax.random.split(key, 5)

    x = jax.random.normal(kx, (N, C, D, H, W), jnp.float32)
    # utils.initialize_weights-style init: conv weight ~ N(0, 0.02).  Biases are
    # set NON-zero here to empirically confirm that dropping them in the kernel
    # is exact (they are cancelled by the non-affine InstanceNorm).
    w1 = 0.02 * jax.random.normal(kw1, (C, C, 3, 3, 3), jnp.float32)
    w2 = 0.02 * jax.random.normal(kw2, (C, C, 3, 3, 3), jnp.float32)
    b1 = 0.5 * jax.random.normal(kb1, (C,), jnp.float32)
    b2 = 0.5 * jax.random.normal(kb2, (C,), jnp.float32)
    params = (w1, b1, w2, b2)

    out = jax.jit(anim_resnet_block_forward)(x, params)
    out = jax.block_until_ready(out)

    ref = _reference(x, params)
    assert out.shape == x.shape, (out.shape, x.shape)
    max_err = float(jnp.max(jnp.abs(out - ref)))
    # Tolerance derivation: matmul operands are bf16 (f32 accumulation on the
    # MXU), so each conv carries ~2^-9..2^-8 relative error on its (unit-variance
    # after InstanceNorm) activations; two chained stages plus the max over
    # N*C*S = 8192 elements gives an expected max abs error ~1.5e-2, so a 3e-2
    # bound is a >5-sigma margin.  (Reference conv is pinned to HIGHEST precision
    # f32 and includes the biases.)
    assert jnp.allclose(out, ref, atol=3e-2, rtol=3e-2), f"max abs err {max_err}"

    print("KERNEL_OK")
</pallas_src>

<mosaic_0001>
module attributes {stable_mosaic.version = 11 : i64} {
  func.func @kernel(%arg0: i32, %arg1: memref<1x16x256xf32, #tpu.memory_space<vmem>>, %arg2: memref<27x256xbf16, #tpu.memory_space<vmem>>, %arg3: memref<3x16x256xbf16, #tpu.memory_space<vmem>>, %arg4: memref<3x16x256xbf16, #tpu.memory_space<vmem>>, %arg5: memref<1x16x256xf32, #tpu.memory_space<vmem>>, %arg6: memref<2x256x256xbf16, #tpu.memory_space<vmem>>) attributes {dimension_semantics = [#tpu.dimension_semantics<parallel>], iteration_bounds = array<i64: 2>, scalar_prefetch = 0 : i64, scratch_operands = 1 : i64, tpu.core_type = #tpu.core_type<tc>, window_params = [{transform_indices = @transform_0, window_bounds = array<i64: 1, 16, 256>}, {pipeline_mode = #tpu.pipeline_mode<synchronous>, transform_indices = @transform_1, window_bounds = array<i64: 27, 256>}, {pipeline_mode = #tpu.pipeline_mode<synchronous>, transform_indices = @transform_2, window_bounds = array<i64: 3, 16, 256>}, {pipeline_mode = #tpu.pipeline_mode<synchronous>, transform_indices = @transform_3, window_bounds = array<i64: 3, 16, 256>}, {transform_indices = @transform_4, window_bounds = array<i64: 1, 16, 256>}]} {
    %cst = arith.constant 0.000000e+00 : bf16
    %0 = vector.broadcast %cst : bf16 to vector<112x256xbf16>
    %c0 = arith.constant 0 : index
    %c144 = arith.constant 144 : index
    %c0_0 = arith.constant 0 : index
    %1 = vector.load %arg6[%c0, %c144, %c0_0] : memref<2x256x256xbf16, #tpu.memory_space<vmem>>, vector<1x112x256xbf16>
    %2 = vector.shape_cast %1 : vector<1x112x256xbf16> to vector<112x256xbf16>
    %3 = vector.shape_cast %0 : vector<112x256xbf16> to vector<1x112x256xbf16>
    tpu.vector_store %arg6[%c0, %c144, %c0_0], %3 {strides = array<i32>} : memref<2x256x256xbf16, #tpu.memory_space<vmem>>, vector<1x112x256xbf16>,
    %cst_1 = arith.constant 0.000000e+00 : bf16
    %4 = vector.broadcast %cst_1 : bf16 to vector<112x256xbf16>
    %c1 = arith.constant 1 : index
    %c144_2 = arith.constant 144 : index
    %c0_3 = arith.constant 0 : index
    %5 = vector.load %arg6[%c1, %c144_2, %c0_3] : memref<2x256x256xbf16, #tpu.memory_space<vmem>>, vector<1x112x256xbf16>
    %6 = vector.shape_cast %5 : vector<1x112x256xbf16> to vector<112x256xbf16>
    %7 = vector.shape_cast %4 : vector<112x256xbf16> to vector<1x112x256xbf16>
    tpu.vector_store %arg6[%c1, %c144_2, %c0_3], %7 {strides = array<i32>} : memref<2x256x256xbf16, #tpu.memory_space<vmem>>, vector<1x112x256xbf16>,
    %c0_4 = arith.constant 0 : index
    %c0_5 = arith.constant 0 : index
    %c0_6 = arith.constant 0 : index
    %8 = vector.load %arg1[%c0_4, %c0_5, %c0_6] : memref<1x16x256xf32, #tpu.memory_space<vmem>>, vector<1x16x256xf32>
    %9 = vector.shape_cast %8 : vector<1x16x256xf32> to vector<16x256xf32>
    %c73_i32 = arith.constant 73 : i32
    %10 = tpu.dynamic_rotate %9 by %c73_i32 dim 1 : vector<16x256xf32>, i32 -> vector<16x256xf32>
    %c0_7 = arith.constant 0 : index
    %c0_8 = arith.constant 0 : index
    %11 = vector.load %arg2[%c0_7, %c0_8] : memref<27x256xbf16, #tpu.memory_space<vmem>>, vector<1x256xbf16>
    %12 = arith.extf %11 : vector<1x256xbf16> to vector<1x256xf32>
    %13 = vector.broadcast %12 : vector<1x256xf32> to vector<16x256xf32>
    %14 = arith.mulf %10, %13 : vector<16x256xf32>
    %15 = arith.truncf %14 : vector<16x256xf32> to vector<16x256xbf16>
    %c0_9 = arith.constant 0 : index
    %c0_10 = arith.constant 0 : index
    %c0_11 = arith.constant 0 : index
    %16 = vector.load %arg6[%c0_9, %c0_10, %c0_11] : memref<2x256x256xbf16, #tpu.memory_space<vmem>>, vector<1x16x256xbf16>
    %17 = vector.shape_cast %16 : vector<1x16x256xbf16> to vector<16x256xbf16>
    %18 = vector.shape_cast %15 : vector<16x256xbf16> to vector<1x16x256xbf16>
    tpu.vector_store %arg6[%c0_9, %c0_10, %c0_11], %18 {strides = array<i32>} : memref<2x256x256xbf16, #tpu.memory_space<vmem>>, vector<1x16x256xbf16>,
    %c72_i32 = arith.constant 72 : i32
    %19 = tpu.dynamic_rotate %9 by %c72_i32 dim 1 : vector<16x256xf32>, i32 -> vector<16x256xf32>
    %c1_12 = arith.constant 1 : index
    %c0_13 = arith.constant 0 : index
    %20 = vector.load %arg2[%c1_12, %c0_13] : memref<27x256xbf16, #tpu.memory_space<vmem>>, vector<1x256xbf16>
    %21 = arith.extf %20 : vector<1x256xbf16> to vector<1x256xf32>
    %22 = vector.broadcast %21 : vector<1x256xf32> to vector<16x256xf32>
    %23 = arith.mulf %19, %22 : vector<16x256xf32>
    %24 = arith.truncf %23 : vector<16x256xf32> to vector<16x256xbf16>
    %c0_14 = arith.constant 0 : index
    %c16 = arith.constant 16 : index
    %c0_15 = arith.constant 0 : index
    %25 = vector.load %arg6[%c0_14, %c16, %c0_15] : memref<2x256x256xbf16, #tpu.memory_space<vmem>>, vector<1x16x256xbf16>
    %26 = vector.shape_cast %25 : vector<1x16x256xbf16> to vector<16x256xbf16>
    %27 = vector.shape_cast %24 : vector<16x256xbf16> to vector<1x16x256xbf16>
    tpu.vector_store %arg6[%c0_14, %c16, %c0_15], %27 {strides = array<i32>} : memref<2x256x256xbf16, #tpu.memory_space<vmem>>, vector<1x16x256xbf16>,
    %c71_i32 = arith.constant 71 : i32
    %28 = tpu.dynamic_rotate %9 by %c71_i32 dim 1 : vector<16x256xf32>, i32 -> vector<16x256xf32>
    %c2 = arith.constant 2 : index
    %c0_16 = arith.constant 0 : index
    %29 = vector.load %arg2[%c2, %c0_16] : memref<27x256xbf16, #tpu.memory_space<vmem>>, vector<1x256xbf16>
    %30 = arith.extf %29 : vector<1x256xbf16> to vector<1x256xf32>
    %31 = vector.broadcast %30 : vector<1x256xf32> to vector<16x256xf32>
    %32 = arith.mulf %28, %31 : vector<16x256xf32>
    %33 = arith.truncf %32 : vector<16x256xf32> to vector<16x256xbf16>
    %c0_17 = arith.constant 0 : index
    %c32 = arith.constant 32 : index
    %c0_18 = arith.constant 0 : index
    %34 = vector.load %arg6[%c0_17, %c32, %c0_18] : memref<2x256x256xbf16, #tpu.memory_space<vmem>>, vector<1x16x256xbf16>
    %35 = vector.shape_cast %34 : vector<1x16x256xbf16> to vector<16x256xbf16>
    %36 = vector.shape_cast %33 : vector<16x256xbf16> to vector<1x16x256xbf16>
    tpu.vector_store %arg6[%c0_17, %c32, %c0_18], %36 {strides = array<i32>} : memref<2x256x256xbf16, #tpu.memory_space<vmem>>, vector<1x16x256xbf16>,
    %c65_i32 = arith.constant 65 : i32
    %37 = tpu.dynamic_rotate %9 by %c65_i32 dim 1 : vector<16x256xf32>, i32 -> vector<16x256xf32>
    %c3 = arith.constant 3 : index
    %c0_19 = arith.constant 0 : index
    %38 = vector.load %arg2[%c3, %c0_19] : memref<27x256xbf16, #tpu.memory_space<vmem>>, vector<1x256xbf16>
    %39 = arith.extf %38 : vector<1x256xbf16> to vector<1x256xf32>
    %40 = vector.broadcast %39 : vector<1x256xf32> to vector<16x256xf32>
    %41 = arith.mulf %37, %40 : vector<16x256xf32>
    %42 = arith.truncf %41 : vector<16x256xf32> to vector<16x256xbf16>
    %c0_20 = arith.constant 0 : index
    %c48 = arith.constant 48 : index
    %c0_21 = arith.constant 0 : index
    %43 = vector.load %arg6[%c0_20, %c48, %c0_21] : memref<2x256x256xbf16, #tpu.memory_space<vmem>>, vector<1x16x256xbf16>
    %44 = vector.shape_cast %43 : vector<1x16x256xbf16> to vector<16x256xbf16>
    %45 = vector.shape_cast %42 : vector<16x256xbf16> to vector<1x16x256xbf16>
    tpu.vector_store %arg6[%c0_20, %c48, %c0_21], %45 {strides = array<i32>} : memref<2x256x256xbf16, #tpu.memory_space<vmem>>, vector<1x16x256xbf16>,
    %c64_i32 = arith.constant 64 : i32
    %46 = tpu.dynamic_rotate %9 by %c64_i32 dim 1 : vector<16x256xf32>, i32 -> vector<16x256xf32>
    %c4 = arith.constant 4 : index
    %c0_22 = arith.constant 0 : index
    %47 = vector.load %arg2[%c4, %c0_22] : memref<27x256xbf16, #tpu.memory_space<vmem>>, vector<1x256xbf16>
    %48 = arith.extf %47 : vector<1x256xbf16> to vector<1x256xf32>
    %49 = vector.broadcast %48 : vector<1x256xf32> to vector<16x256xf32>
    %50 = arith.mulf %46, %49 : vector<16x256xf32>
    %51 = arith.truncf %50 : vector<16x256xf32> to vector<16x256xbf16>
    %c0_23 = arith.constant 0 : index
    %c64 = arith.constant 64 : index
    %c0_24 = arith.constant 0 : index
    %52 = vector.load %arg6[%c0_23, %c64, %c0_24] : memref<2x256x256xbf16, #tpu.memory_space<vmem>>, vector<1x16x256xbf16>
    %53 = vector.shape_cast %52 : vector<1x16x256xbf16> to vector<16x256xbf16>
    %54 = vector.shape_cast %51 : vector<16x256xbf16> to vector<1x16x256xbf16>
    tpu.vector_store %arg6[%c0_23, %c64, %c0_24], %54 {strides = array<i32>} : memref<2x256x256xbf16, #tpu.memory_space<vmem>>, vector<1x16x256xbf16>,
    %c63_i32 = arith.constant 63 : i32
    %55 = tpu.dynamic_rotate %9 by %c63_i32 dim 1 : vector<16x256xf32>, i32 -> vector<16x256xf32>
    %c5 = arith.constant 5 : index
    %c0_25 = arith.constant 0 : index
    %56 = vector.load %arg2[%c5, %c0_25] : memref<27x256xbf16, #tpu.memory_space<vmem>>, vector<1x256xbf16>
    %57 = arith.extf %56 : vector<1x256xbf16> to vector<1x256xf32>
    %58 = vector.broadcast %57 : vector<1x256xf32> to vector<16x256xf32>
    %59 = arith.mulf %55, %58 : vector<16x256xf32>
    %60 = arith.truncf %59 : vector<16x256xf32> to vector<16x256xbf16>
    %c0_26 = arith.constant 0 : index
    %c80 = arith.constant 80 : index
    %c0_27 = arith.constant 0 : index
    %61 = vector.load %arg6[%c0_26, %c80, %c0_27] : memref<2x256x256xbf16, #tpu.memory_space<vmem>>, vector<1x16x256xbf16>
    %62 = vector.shape_cast %61 : vector<1x16x256xbf16> to vector<16x256xbf16>
    %63 = vector.shape_cast %60 : vector<16x256xbf16> to vector<1x16x256xbf16>
    tpu.vector_store %arg6[%c0_26, %c80, %c0_27], %63 {strides = array<i32>} : memref<2x256x256xbf16, #tpu.memory_space<vmem>>, vector<1x16x256xbf16>,
    %c57_i32 = arith.constant 57 : i32
    %64 = tpu.dynamic_rotate %9 by %c57_i32 dim 1 : vector<16x256xf32>, i32 -> vector<16x256xf32>
    %c6 = arith.constant 6 : index
    %c0_28 = arith.constant 0 : index
    %65 = vector.load %arg2[%c6, %c0_28] : memref<27x256xbf16, #tpu.memory_space<vmem>>, vector<1x256xbf16>
    %66 = arith.extf %65 : vector<1x256xbf16> to vector<1x256xf32>
    %67 = vector.broadcast %66 : vector<1x256xf32> to vector<16x256xf32>
    %68 = arith.mulf %64, %67 : vector<16x256xf32>
    %69 = arith.truncf %68 : vector<16x256xf32> to vector<16x256xbf16>
    %c0_29 = arith.constant 0 : index
    %c96 = arith.constant 96 : index
    %c0_30 = arith.constant 0 : index
    %70 = vector.load %arg6[%c0_29, %c96, %c0_30] : memref<2x256x256xbf16, #tpu.memory_space<vmem>>, vector<1x16x256xbf16>
    %71 = vector.shape_cast %70 : vector<1x16x256xbf16> to vector<16x256xbf16>
    %72 = vector.shape_cast %69 : vector<16x256xbf16> to vector<1x16x256xbf16>
    tpu.vector_store %arg6[%c0_29, %c96, %c0_30], %72 {strides = array<i32>} : memref<2x256x256xbf16, #tpu.memory_space<vmem>>, vector<1x16x256xbf16>,
    %c56_i32 = arith.constant 56 : i32
    %73 = tpu.dynamic_rotate %9 by %c56_i32 dim 1 : vector<16x256xf32>, i32 -> vector<16x256xf32>
    %c7 = arith.constant 7 : index
    %c0_31 = arith.constant 0 : index
    %74 = vector.load %arg2[%c7, %c0_31] : memref<27x256xbf16, #tpu.memory_space<vmem>>, vector<1x256xbf16>
    %75 = arith.extf %74 : vector<1x256xbf16> to vector<1x256xf32>
    %76 = vector.broadcast %75 : vector<1x256xf32> to vector<16x256xf32>
    %77 = arith.mulf %73, %76 : vector<16x256xf32>
    %78 = arith.truncf %77 : vector<16x256xf32> to vector<16x256xbf16>
    %c0_32 = arith.constant 0 : index
    %c112 = arith.constant 112 : index
    %c0_33 = arith.constant 0 : index
    %79 = vector.load %arg6[%c0_32, %c112, %c0_33] : memref<2x256x256xbf16, #tpu.memory_space<vmem>>, vector<1x16x256xbf16>
    %80 = vector.shape_cast %79 : vector<1x16x256xbf16> to vector<16x256xbf16>
    %81 = vector.shape_cast %78 : vector<16x256xbf16> to vector<1x16x256xbf16>
    tpu.vector_store %arg6[%c0_32, %c112, %c0_33], %81 {strides = array<i32>} : memref<2x256x256xbf16, #tpu.memory_space<vmem>>, vector<1x16x256xbf16>,
    %c55_i32 = arith.constant 55 : i32
    %82 = tpu.dynamic_rotate %9 by %c55_i32 dim 1 : vector<16x256xf32>, i32 -> vector<16x256xf32>
    %c8 = arith.constant 8 : index
    %c0_34 = arith.constant 0 : index
    %83 = vector.load %arg2[%c8, %c0_34] : memref<27x256xbf16, #tpu.memory_space<vmem>>, vector<1x256xbf16>
    %84 = arith.extf %83 : vector<1x256xbf16> to vector<1x256xf32>
    %85 = vector.broadcast %84 : vector<1x256xf32> to vector<16x256xf32>
    %86 = arith.mulf %82, %85 : vector<16x256xf32>
    %87 = arith.truncf %86 : vector<16x256xf32> to vector<16x256xbf16>
    %c0_35 = arith.constant 0 : index
    %c128 = arith.constant 128 : index
    %c0_36 = arith.constant 0 : index
    %88 = vector.load %arg6[%c0_35, %c128, %c0_36] : memref<2x256x256xbf16, #tpu.memory_space<vmem>>, vector<1x16x256xbf16>
    %89 = vector.shape_cast %88 : vector<1x16x256xbf16> to vector<16x256xbf16>
    %90 = vector.shape_cast %87 : vector<16x256xbf16> to vector<1x16x256xbf16>
    tpu.vector_store %arg6[%c0_35, %c128, %c0_36], %90 {strides = array<i32>} : memref<2x256x256xbf16, #tpu.memory_space<vmem>>, vector<1x16x256xbf16>,
    %c9_i32 = arith.constant 9 : i32
    %91 = tpu.dynamic_rotate %9 by %c9_i32 dim 1 : vector<16x256xf32>, i32 -> vector<16x256xf32>
    %c9 = arith.constant 9 : index
    %c0_37 = arith.constant 0 : index
    %92 = vector.load %arg2[%c9, %c0_37] : memref<27x256xbf16, #tpu.memory_space<vmem>>, vector<1x256xbf16>
    %93 = arith.extf %92 : vector<1x256xbf16> to vector<1x256xf32>
    %94 = vector.broadcast %93 : vector<1x256xf32> to vector<16x256xf32>
    %95 = arith.mulf %91, %94 : vector<16x256xf32>
    %96 = arith.truncf %95 : vector<16x256xf32> to vector<16x256xbf16>
    %c1_38 = arith.constant 1 : index
    %c0_39 = arith.constant 0 : index
    %c0_40 = arith.constant 0 : index
    %97 = vector.load %arg6[%c1_38, %c0_39, %c0_40] : memref<2x256x256xbf16, #tpu.memory_space<vmem>>, vector<1x16x256xbf16>
    %98 = vector.shape_cast %97 : vector<1x16x256xbf16> to vector<16x256xbf16>
    %99 = vector.shape_cast %96 : vector<16x256xbf16> to vector<1x16x256xbf16>
    tpu.vector_store %arg6[%c1_38, %c0_39, %c0_40], %99 {strides = array<i32>} : memref<2x256x256xbf16, #tpu.memory_space<vmem>>, vector<1x16x256xbf16>,
    %c8_i32 = arith.constant 8 : i32
    %100 = tpu.dynamic_rotate %9 by %c8_i32 dim 1 : vector<16x256xf32>, i32 -> vector<16x256xf32>
    %c10 = arith.constant 10 : index
    %c0_41 = arith.constant 0 : index
    %101 = vector.load %arg2[%c10, %c0_41] : memref<27x256xbf16, #tpu.memory_space<vmem>>, vector<1x256xbf16>
    %102 = arith.extf %101 : vector<1x256xbf16> to vector<1x256xf32>
    %103 = vector.broadcast %102 : vector<1x256xf32> to vector<16x256xf32>
    %104 = arith.mulf %100, %103 : vector<16x256xf32>
    %105 = arith.truncf %104 : vector<16x256xf32> to vector<16x256xbf16>
    %c1_42 = arith.constant 1 : index
    %c16_43 = arith.constant 16 : index
    %c0_44 = arith.constant 0 : index
    %106 = vector.load %arg6[%c1_42, %c16_43, %c0_44] : memref<2x256x256xbf16, #tpu.memory_space<vmem>>, vector<1x16x256xbf16>
    %107 = vector.shape_cast %106 : vector<1x16x256xbf16> to vector<16x256xbf16>
    %108 = vector.shape_cast %105 : vector<16x256xbf16> to vector<1x16x256xbf16>
    tpu.vector_store %arg6[%c1_42, %c16_43, %c0_44], %108 {strides = array<i32>} : memref<2x256x256xbf16, #tpu.memory_space<vmem>>, vector<1x16x256xbf16>,
    %c7_i32 = arith.constant 7 : i32
    %109 = tpu.dynamic_rotate %9 by %c7_i32 dim 1 : vector<16x256xf32>, i32 -> vector<16x256xf32>
    %c11 = arith.constant 11 : index
    %c0_45 = arith.constant 0 : index
    %110 = vector.load %arg2[%c11, %c0_45] : memref<27x256xbf16, #tpu.memory_space<vmem>>, vector<1x256xbf16>
    %111 = arith.extf %110 : vector<1x256xbf16> to vector<1x256xf32>
    %112 = vector.broadcast %111 : vector<1x256xf32> to vector<16x256xf32>
    %113 = arith.mulf %109, %112 : vector<16x256xf32>
    %114 = arith.truncf %113 : vector<16x256xf32> to vector<16x256xbf16>
    %c1_46 = arith.constant 1 : index
    %c32_47 = arith.constant 32 : index
    %c0_48 = arith.constant 0 : index
    %115 = vector.load %arg6[%c1_46, %c32_47, %c0_48] : memref<2x256x256xbf16, #tpu.memory_space<vmem>>, vector<1x16x256xbf16>
    %116 = vector.shape_cast %115 : vector<1x16x256xbf16> to vector<16x256xbf16>
    %117 = vector.shape_cast %114 : vector<16x256xbf16> to vector<1x16x256xbf16>
    tpu.vector_store %arg6[%c1_46, %c32_47, %c0_48], %117 {strides = array<i32>} : memref<2x256x256xbf16, #tpu.memory_space<vmem>>, vector<1x16x256xbf16>,
    %c1_i32 = arith.constant 1 : i32
    %118 = tpu.dynamic_rotate %9 by %c1_i32 dim 1 : vector<16x256xf32>, i32 -> vector<16x256xf32>
    %c12 = arith.constant 12 : index
    %c0_49 = arith.constant 0 : index
    %119 = vector.load %arg2[%c12, %c0_49] : memref<27x256xbf16, #tpu.memory_space<vmem>>, vector<1x256xbf16>
    %120 = arith.extf %119 : vector<1x256xbf16> to vector<1x256xf32>
    %121 = vector.broadcast %120 : vector<1x256xf32> to vector<16x256xf32>
    %122 = arith.mulf %118, %121 : vector<16x256xf32>
    %123 = arith.truncf %122 : vector<16x256xf32> to vector<16x256xbf16>
    %c1_50 = arith.constant 1 : index
    %c48_51 = arith.constant 48 : index
    %c0_52 = arith.constant 0 : index
    %124 = vector.load %arg6[%c1_50, %c48_51, %c0_52] : memref<2x256x256xbf16, #tpu.memory_space<vmem>>, vector<1x16x256xbf16>
    %125 = vector.shape_cast %124 : vector<1x16x256xbf16> to vector<16x256xbf16>
    %126 = vector.shape_cast %123 : vector<16x256xbf16> to vector<1x16x256xbf16>
    tpu.vector_store %arg6[%c1_50, %c48_51, %c0_52], %126 {strides = array<i32>} : memref<2x256x256xbf16, #tpu.memory_space<vmem>>, vector<1x16x256xbf16>,
    %127 = arith.truncf %9 : vector<16x256xf32> to vector<16x256xbf16>
    %c1_53 = arith.constant 1 : index
    %c64_54 = arith.constant 64 : index
    %c0_55 = arith.constant 0 : index
    %128 = vector.load %arg6[%c1_53, %c64_54, %c0_55] : memref<2x256x256xbf16, #tpu.memory_space<vmem>>, vector<1x16x256xbf16>
    %129 = vector.shape_cast %128 : vector<1x16x256xbf16> to vector<16x256xbf16>
    %130 = vector.shape_cast %127 : vector<16x256xbf16> to vector<1x16x256xbf16>
    tpu.vector_store %arg6[%c1_53, %c64_54, %c0_55], %130 {strides = array<i32>} : memref<2x256x256xbf16, #tpu.memory_space<vmem>>, vector<1x16x256xbf16>,
    %c255_i32 = arith.constant 255 : i32
    %131 = tpu.dynamic_rotate %9 by %c255_i32 dim 1 : vector<16x256xf32>, i32 -> vector<16x256xf32>
    %c14 = arith.constant 14 : index
    %c0_56 = arith.constant 0 : index
    %132 = vector.load %arg2[%c14, %c0_56] : memref<27x256xbf16, #tpu.memory_space<vmem>>, vector<1x256xbf16>
    %133 = arith.extf %132 : vector<1x256xbf16> to vector<1x256xf32>
    %134 = vector.broadcast %133 : vector<1x256xf32> to vector<16x256xf32>
    %135 = arith.mulf %131, %134 : vector<16x256xf32>
    %136 = arith.truncf %135 : vector<16x256xf32> to vector<16x256xbf16>
    %c1_57 = arith.constant 1 : index
    %c80_58 = arith.constant 80 : index
    %c0_59 = arith.constant 0 : index
    %137 = vector.load %arg6[%c1_57, %c80_58, %c0_59] : memref<2x256x256xbf16, #tpu.memory_space<vmem>>, vector<1x16x256xbf16>
    %138 = vector.shape_cast %137 : vector<1x16x256xbf16> to vector<16x256xbf16>
    %139 = vector.shape_cast %136 : vector<16x256xbf16> to vector<1x16x256xbf16>
    tpu.vector_store %arg6[%c1_57, %c80_58, %c0_59], %139 {strides = array<i32>} : memref<2x256x256xbf16, #tpu.memory_space<vmem>>, vector<1x16x256xbf16>,
    %c249_i32 = arith.constant 249 : i32
    %140 = tpu.dynamic_rotate %9 by %c249_i32 dim 1 : vector<16x256xf32>, i32 -> vector<16x256xf32>
    %c15 = arith.constant 15 : index
    %c0_60 = arith.constant 0 : index
    %141 = vector.load %arg2[%c15, %c0_60] : memref<27x256xbf16, #tpu.memory_space<vmem>>, vector<1x256xbf16>
    %142 = arith.extf %141 : vector<1x256xbf16> to vector<1x256xf32>
    %143 = vector.broadcast %142 : vector<1x256xf32> to vector<16x256xf32>
    %144 = arith.mulf %140, %143 : vector<16x256xf32>
    %145 = arith.truncf %144 : vector<16x256xf32> to vector<16x256xbf16>
    %c1_61 = arith.constant 1 : index
    %c96_62 = arith.constant 96 : index
    %c0_63 = arith.constant 0 : index
    %146 = vector.load %arg6[%c1_61, %c96_62, %c0_63] : memref<2x256x256xbf16, #tpu.memory_space<vmem>>, vector<1x16x256xbf16>
    %147 = vector.shape_cast %146 : vector<1x16x256xbf16> to vector<16x256xbf16>
    %148 = vector.shape_cast %145 : vector<16x256xbf16> to vector<1x16x256xbf16>
    tpu.vector_store %arg6[%c1_61, %c96_62, %c0_63], %148 {strides = array<i32>} : memref<2x256x256xbf16, #tpu.memory_space<vmem>>, vector<1x16x256xbf16>,
    %c248_i32 = arith.constant 248 : i32
    %149 = tpu.dynamic_rotate %9 by %c248_i32 dim 1 : vector<16x256xf32>, i32 -> vector<16x256xf32>
    %c16_64 = arith.constant 16 : index
    %c0_65 = arith.constant 0 : index
    %150 = vector.load %arg2[%c16_64, %c0_65] : memref<27x256xbf16, #tpu.memory_space<vmem>>, vector<1x256xbf16>
    %151 = arith.extf %150 : vector<1x256xbf16> to vector<1x256xf32>
    %152 = vector.broadcast %151 : vector<1x256xf32> to vector<16x256xf32>
    %153 = arith.mulf %149, %152 : vector<16x256xf32>
    %154 = arith.truncf %153 : vector<16x256xf32> to vector<16x256xbf16>
    %c1_66 = arith.constant 1 : index
    %c112_67 = arith.constant 112 : index
    %c0_68 = arith.constant 0 : index
    %155 = vector.load %arg6[%c1_66, %c112_67, %c0_68] : memref<2x256x256xbf16, #tpu.memory_space<vmem>>, vector<1x16x256xbf16>
    %156 = vector.shape_cast %155 : vector<1x16x256xbf16> to vector<16x256xbf16>
    %157 = vector.shape_cast %154 : vector<16x256xbf16> to vector<1x16x256xbf16>
    tpu.vector_store %arg6[%c1_66, %c112_67, %c0_68], %157 {strides = array<i32>} : memref<2x256x256xbf16, #tpu.memory_space<vmem>>, vector<1x16x256xbf16>,
    %c247_i32 = arith.constant 247 : i32
    %158 = tpu.dynamic_rotate %9 by %c247_i32 dim 1 : vector<16x256xf32>, i32 -> vector<16x256xf32>
    %c17 = arith.constant 17 : index
    %c0_69 = arith.constant 0 : index
    %159 = vector.load %arg2[%c17, %c0_69] : memref<27x256xbf16, #tpu.memory_space<vmem>>, vector<1x256xbf16>
    %160 = arith.extf %159 : vector<1x256xbf16> to vector<1x256xf32>
    %161 = vector.broadcast %160 : vector<1x256xf32> to vector<16x256xf32>
    %162 = arith.mulf %158, %161 : vector<16x256xf32>
    %163 = arith.truncf %162 : vector<16x256xf32> to vector<16x256xbf16>
    %c1_70 = arith.constant 1 : index
    %c128_71 = arith.constant 128 : index
    %c0_72 = arith.constant 0 : index
    %164 = vector.load %arg6[%c1_70, %c128_71, %c0_72] : memref<2x256x256xbf16, #tpu.memory_space<vmem>>, vector<1x16x256xbf16>
    %165 = vector.shape_cast %164 : vector<1x16x256xbf16> to vector<16x256xbf16>
    %166 = vector.shape_cast %163 : vector<16x256xbf16> to vector<1x16x256xbf16>
    tpu.vector_store %arg6[%c1_70, %c128_71, %c0_72], %166 {strides = array<i32>} : memref<2x256x256xbf16, #tpu.memory_space<vmem>>, vector<1x16x256xbf16>,
    %c0_73 = arith.constant 0 : index
    %c0_74 = arith.constant 0 : index
    %c0_75 = arith.constant 0 : index
    %167 = vector.load %arg3[%c0_73, %c0_74, %c0_75] : memref<3x16x256xbf16, #tpu.memory_space<vmem>>, vector<1x16x256xbf16>
    %168 = vector.shape_cast %167 : vector<1x16x256xbf16> to vector<16x256xbf16>
    %c0_76 = arith.constant 0 : index
    %c0_77 = arith.constant 0 : index
    %c0_78 = arith.constant 0 : index
    %169 = vector.load %arg6[%c0_76, %c0_77, %c0_78] : memref<2x256x256xbf16, #tpu.memory_space<vmem>>, vector<1x256x256xbf16>
    %170 = vector.shape_cast %169 : vector<1x256x256xbf16> to vector<256x256xbf16>
    %cst_79 = arith.constant dense<0.000000e+00> : vector<16x256xf32>
    %171 = tpu.matmul %168, %170, %cst_79 {dimension_numbers = #tpu.dot_dimension_numbers<[1], [0], [0], [1], [0, 0, 1, 1], [], []>} : vector<16x256xbf16>, vector<256x256xbf16>, vector<16x256xf32> -> vector<16x256xf32>
    %c201_i32 = arith.constant 201 : i32
    %172 = tpu.dynamic_rotate %9 by %c201_i32 dim 1 : vector<16x256xf32>, i32 -> vector<16x256xf32>
    %c18 = arith.constant 18 : index
    %c0_80 = arith.constant 0 : index
    %173 = vector.load %arg2[%c18, %c0_80] : memref<27x256xbf16, #tpu.memory_space<vmem>>, vector<1x256xbf16>
    %174 = arith.extf %173 : vector<1x256xbf16> to vector<1x256xf32>
    %175 = vector.broadcast %174 : vector<1x256xf32> to vector<16x256xf32>
    %176 = arith.mulf %172, %175 : vector<16x256xf32>
    %177 = arith.truncf %176 : vector<16x256xf32> to vector<16x256xbf16>
    %c0_81 = arith.constant 0 : index
    %c0_82 = arith.constant 0 : index
    %c0_83 = arith.constant 0 : index
    %178 = vector.load %arg6[%c0_81, %c0_82, %c0_83] : memref<2x256x256xbf16, #tpu.memory_space<vmem>>, vector<1x16x256xbf16>
    %179 = vector.shape_cast %178 : vector<1x16x256xbf16> to vector<16x256xbf16>
    %180 = vector.shape_cast %177 : vector<16x256xbf16> to vector<1x16x256xbf16>
    tpu.vector_store %arg6[%c0_81, %c0_82, %c0_83], %180 {strides = array<i32>} : memref<2x256x256xbf16, #tpu.memory_space<vmem>>, vector<1x16x256xbf16>,
    %c200_i32 = arith.constant 200 : i32
    %181 = tpu.dynamic_rotate %9 by %c200_i32 dim 1 : vector<16x256xf32>, i32 -> vector<16x256xf32>
    %c19 = arith.constant 19 : index
    %c0_84 = arith.constant 0 : index
    %182 = vector.load %arg2[%c19, %c0_84] : memref<27x256xbf16, #tpu.memory_space<vmem>>, vector<1x256xbf16>
    %183 = arith.extf %182 : vector<1x256xbf16> to vector<1x256xf32>
    %184 = vector.broadcast %183 : vector<1x256xf32> to vector<16x256xf32>
    %185 = arith.mulf %181, %184 : vector<16x256xf32>
    %186 = arith.truncf %185 : vector<16x256xf32> to vector<16x256xbf16>
    %c0_85 = arith.constant 0 : index
    %c16_86 = arith.constant 16 : index
    %c0_87 = arith.constant 0 : index
    %187 = vector.load %arg6[%c0_85, %c16_86, %c0_87] : memref<2x256x256xbf16, #tpu.memory_space<vmem>>, vector<1x16x256xbf16>
    %188 = vector.shape_cast %187 : vector<1x16x256xbf16> to vector<16x256xbf16>
    %189 = vector.shape_cast %186 : vector<16x256xbf16> to vector<1x16x256xbf16>
    tpu.vector_store %arg6[%c0_85, %c16_86, %c0_87], %189 {strides = array<i32>} : memref<2x256x256xbf16, #tpu.memory_space<vmem>>, vector<1x16x256xbf16>,
    %c199_i32 = arith.constant 199 : i32
    %190 = tpu.dynamic_rotate %9 by %c199_i32 dim 1 : vector<16x256xf32>, i32 -> vector<16x256xf32>
    %c20 = arith.constant 20 : index
    %c0_88 = arith.constant 0 : index
    %191 = vector.load %arg2[%c20, %c0_88] : memref<27x256xbf16, #tpu.memory_space<vmem>>, vector<1x256xbf16>
    %192 = arith.extf %191 : vector<1x256xbf16> to vector<1x256xf32>
    %193 = vector.broadcast %192 : vector<1x256xf32> to vector<16x256xf32>
    %194 = arith.mulf %190, %193 : vector<16x256xf32>
    %195 = arith.truncf %194 : vector<16x256xf32> to vector<16x256xbf16>
    %c0_89 = arith.constant 0 : index
    %c32_90 = arith.constant 32 : index
    %c0_91 = arith.constant 0 : index
    %196 = vector.load %arg6[%c0_89, %c32_90, %c0_91] : memref<2x256x256xbf16, #tpu.memory_space<vmem>>, vector<1x16x256xbf16>
    %197 = vector.shape_cast %196 : vector<1x16x256xbf16> to vector<16x256xbf16>
    %198 = vector.shape_cast %195 : vector<16x256xbf16> to vector<1x16x256xbf16>
    tpu.vector_store %arg6[%c0_89, %c32_90, %c0_91], %198 {strides = array<i32>} : memref<2x256x256xbf16, #tpu.memory_space<vmem>>, vector<1x16x256xbf16>,
    %c193_i32 = arith.constant 193 : i32
    %199 = tpu.dynamic_rotate %9 by %c193_i32 dim 1 : vector<16x256xf32>, i32 -> vector<16x256xf32>
    %c21 = arith.constant 21 : index
    %c0_92 = arith.constant 0 : index
    %200 = vector.load %arg2[%c21, %c0_92] : memref<27x256xbf16, #tpu.memory_space<vmem>>, vector<1x256xbf16>
    %201 = arith.extf %200 : vector<1x256xbf16> to vector<1x256xf32>
    %202 = vector.broadcast %201 : vector<1x256xf32> to vector<16x256xf32>
    %203 = arith.mulf %199, %202 : vector<16x256xf32>
    %204 = arith.truncf %203 : vector<16x256xf32> to vector<16x256xbf16>
    %c0_93 = arith.constant 0 : index
    %c48_94 = arith.constant 48 : index
    %c0_95 = arith.constant 0 : index
    %205 = vector.load %arg6[%c0_93, %c48_94, %c0_95] : memref<2x256x256xbf16, #tpu.memory_space<vmem>>, vector<1x16x256xbf16>
    %206 = vector.shape_cast %205 : vector<1x16x256xbf16> to vector<16x256xbf16>
    %207 = vector.shape_cast %204 : vector<16x256xbf16> to vector<1x16x256xbf16>
    tpu.vector_store %arg6[%c0_93, %c48_94, %c0_95], %207 {strides = array<i32>} : memref<2x256x256xbf16, #tpu.memory_space<vmem>>, vector<1x16x256xbf16>,
    %c192_i32 = arith.constant 192 : i32
    %208 = tpu.dynamic_rotate %9 by %c192_i32 dim 1 : vector<16x256xf32>, i32 -> vector<16x256xf32>
    %c22 = arith.constant 22 : index
    %c0_96 = arith.constant 0 : index
    %209 = vector.load %arg2[%c22, %c0_96] : memref<27x256xbf16, #tpu.memory_space<vmem>>, vector<1x256xbf16>
    %210 = arith.extf %209 : vector<1x256xbf16> to vector<1x256xf32>
    %211 = vector.broadcast %210 : vector<1x256xf32> to vector<16x256xf32>
    %212 = arith.mulf %208, %211 : vector<16x256xf32>
    %213 = arith.truncf %212 : vector<16x256xf32> to vector<16x256xbf16>
    %c0_97 = arith.constant 0 : index
    %c64_98 = arith.constant 64 : index
    %c0_99 = arith.constant 0 : index
    %214 = vector.load %arg6[%c0_97, %c64_98, %c0_99] : memref<2x256x256xbf16, #tpu.memory_space<vmem>>, vector<1x16x256xbf16>
    %215 = vector.shape_cast %214 : vector<1x16x256xbf16> to vector<16x256xbf16>
    %216 = vector.shape_cast %213 : vector<16x256xbf16> to vector<1x16x256xbf16>
    tpu.vector_store %arg6[%c0_97, %c64_98, %c0_99], %216 {strides = array<i32>} : memref<2x256x256xbf16, #tpu.memory_space<vmem>>, vector<1x16x256xbf16>,
    %c191_i32 = arith.constant 191 : i32
    %217 = tpu.dynamic_rotate %9 by %c191_i32 dim 1 : vector<16x256xf32>, i32 -> vector<16x256xf32>
    %c23 = arith.constant 23 : index
    %c0_100 = arith.constant 0 : index
    %218 = vector.load %arg2[%c23, %c0_100] : memref<27x256xbf16, #tpu.memory_space<vmem>>, vector<1x256xbf16>
    %219 = arith.extf %218 : vector<1x256xbf16> to vector<1x256xf32>
    %220 = vector.broadcast %219 : vector<1x256xf32> to vector<16x256xf32>
    %221 = arith.mulf %217, %220 : vector<16x256xf32>
    %222 = arith.truncf %221 : vector<16x256xf32> to vector<16x256xbf16>
    %c0_101 = arith.constant 0 : index
    %c80_102 = arith.constant 80 : index
    %c0_103 = arith.constant 0 : index
    %223 = vector.load %arg6[%c0_101, %c80_102, %c0_103] : memref<2x256x256xbf16, #tpu.memory_space<vmem>>, vector<1x16x256xbf16>
    %224 = vector.shape_cast %223 : vector<1x16x256xbf16> to vector<16x256xbf16>
    %225 = vector.shape_cast %222 : vector<16x256xbf16> to vector<1x16x256xbf16>
    tpu.vector_store %arg6[%c0_101, %c80_102, %c0_103], %225 {strides = array<i32>} : memref<2x256x256xbf16, #tpu.memory_space<vmem>>, vector<1x16x256xbf16>,
    %c185_i32 = arith.constant 185 : i32
    %226 = tpu.dynamic_rotate %9 by %c185_i32 dim 1 : vector<16x256xf32>, i32 -> vector<16x256xf32>
    %c24 = arith.constant 24 : index
    %c0_104 = arith.constant 0 : index
    %227 = vector.load %arg2[%c24, %c0_104] : memref<27x256xbf16, #tpu.memory_space<vmem>>, vector<1x256xbf16>
    %228 = arith.extf %227 : vector<1x256xbf16> to vector<1x256xf32>
    %229 = vector.broadcast %228 : vector<1x256xf32> to vector<16x256xf32>
    %230 = arith.mulf %226, %229 : vector<16x256xf32>
    %231 = arith.truncf %230 : vector<16x256xf32> to vector<16x256xbf16>
    %c0_105 = arith.constant 0 : index
    %c96_106 = arith.constant 96 : index
    %c0_107 = arith.constant 0 : index
    %232 = vector.load %arg6[%c0_105, %c96_106, %c0_107] : memref<2x256x256xbf16, #tpu.memory_space<vmem>>, vector<1x16x256xbf16>
    %233 = vector.shape_cast %232 : vector<1x16x256xbf16> to vector<16x256xbf16>
    %234 = vector.shape_cast %231 : vector<16x256xbf16> to vector<1x16x256xbf16>
    tpu.vector_store %arg6[%c0_105, %c96_106, %c0_107], %234 {strides = array<i32>} : memref<2x256x256xbf16, #tpu.memory_space<vmem>>, vector<1x16x256xbf16>,
    %c184_i32 = arith.constant 184 : i32
    %235 = tpu.dynamic_rotate %9 by %c184_i32 dim 1 : vector<16x256xf32>, i32 -> vector<16x256xf32>
    %c25 = arith.constant 25 : index
    %c0_108 = arith.constant 0 : index
    %236 = vector.load %arg2[%c25, %c0_108] : memref<27x256xbf16, #tpu.memory_space<vmem>>, vector<1x256xbf16>
    %237 = arith.extf %236 : vector<1x256xbf16> to vector<1x256xf32>
    %238 = vector.broadcast %237 : vector<1x256xf32> to vector<16x256xf32>
    %239 = arith.mulf %235, %238 : vector<16x256xf32>
    %240 = arith.truncf %239 : vector<16x256xf32> to vector<16x256xbf16>
    %c0_109 = arith.constant 0 : index
    %c112_110 = arith.constant 112 : index
    %c0_111 = arith.constant 0 : index
    %241 = vector.load %arg6[%c0_109, %c112_110, %c0_111] : memref<2x256x256xbf16, #tpu.memory_space<vmem>>, vector<1x16x256xbf16>
    %242 = vector.shape_cast %241 : vector<1x16x256xbf16> to vector<16x256xbf16>
    %243 = vector.shape_cast %240 : vector<16x256xbf16> to vector<1x16x256xbf16>
    tpu.vector_store %arg6[%c0_109, %c112_110, %c0_111], %243 {strides = array<i32>} : memref<2x256x256xbf16, #tpu.memory_space<vmem>>, vector<1x16x256xbf16>,
    %c183_i32 = arith.constant 183 : i32
    %244 = tpu.dynamic_rotate %9 by %c183_i32 dim 1 : vector<16x256xf32>, i32 -> vector<16x256xf32>
    %c26 = arith.constant 26 : index
    %c0_112 = arith.constant 0 : index
    %245 = vector.load %arg2[%c26, %c0_112] : memref<27x256xbf16, #tpu.memory_space<vmem>>, vector<1x256xbf16>
    %246 = arith.extf %245 : vector<1x256xbf16> to vector<1x256xf32>
    %247 = vector.broadcast %246 : vector<1x256xf32> to vector<16x256xf32>
    %248 = arith.mulf %244, %247 : vector<16x256xf32>
    %249 = arith.truncf %248 : vector<16x256xf32> to vector<16x256xbf16>
    %c0_113 = arith.constant 0 : index
    %c128_114 = arith.constant 128 : index
    %c0_115 = arith.constant 0 : index
    %250 = vector.load %arg6[%c0_113, %c128_114, %c0_115] : memref<2x256x256xbf16, #tpu.memory_space<vmem>>, vector<1x16x256xbf16>
    %251 = vector.shape_cast %250 : vector<1x16x256xbf16> to vector<16x256xbf16>
    %252 = vector.shape_cast %249 : vector<16x256xbf16> to vector<1x16x256xbf16>
    tpu.vector_store %arg6[%c0_113, %c128_114, %c0_115], %252 {strides = array<i32>} : memref<2x256x256xbf16, #tpu.memory_space<vmem>>, vector<1x16x256xbf16>,
    %c1_116 = arith.constant 1 : index
    %c0_117 = arith.constant 0 : index
    %c0_118 = arith.constant 0 : index
    %253 = vector.load %arg3[%c1_116, %c0_117, %c0_118] : memref<3x16x256xbf16, #tpu.memory_space<vmem>>, vector<1x16x256xbf16>
    %254 = vector.shape_cast %253 : vector<1x16x256xbf16> to vector<16x256xbf16>
    %c1_119 = arith.constant 1 : index
    %c0_120 = arith.constant 0 : index
    %c0_121 = arith.constant 0 : index
    %255 = vector.load %arg6[%c1_119, %c0_120, %c0_121] : memref<2x256x256xbf16, #tpu.memory_space<vmem>>, vector<1x256x256xbf16>
    %256 = vector.shape_cast %255 : vector<1x256x256xbf16> to vector<256x256xbf16>
    %cst_122 = arith.constant dense<0.000000e+00> : vector<16x256xf32>
    %257 = tpu.matmul %254, %256, %cst_122 {dimension_numbers = #tpu.dot_dimension_numbers<[1], [0], [0], [1], [0, 0, 1, 1], [], []>} : vector<16x256xbf16>, vector<256x256xbf16>, vector<16x256xf32> -> vector<16x256xf32>
    %258 = arith.addf %171, %257 : vector<16x256xf32>
    %c2_123 = arith.constant 2 : index
    %c0_124 = arith.constant 0 : index
    %c0_125 = arith.constant 0 : index
    %259 = vector.load %arg3[%c2_123, %c0_124, %c0_125] : memref<3x16x256xbf16, #tpu.memory_space<vmem>>, vector<1x16x256xbf16>
    %260 = vector.shape_cast %259 : vector<1x16x256xbf16> to vector<16x256xbf16>
    %c0_126 = arith.constant 0 : index
    %c0_127 = arith.constant 0 : index
    %c0_128 = arith.constant 0 : index
    %261 = vector.load %arg6[%c0_126, %c0_127, %c0_128] : memref<2x256x256xbf16, #tpu.memory_space<vmem>>, vector<1x256x256xbf16>
    %262 = vector.shape_cast %261 : vector<1x256x256xbf16> to vector<256x256xbf16>
    %cst_129 = arith.constant dense<0.000000e+00> : vector<16x256xf32>
    %263 = tpu.matmul %260, %262, %cst_129 {dimension_numbers = #tpu.dot_dimension_numbers<[1], [0], [0], [1], [0, 0, 1, 1], [], []>} : vector<16x256xbf16>, vector<256x256xbf16>, vector<16x256xf32> -> vector<16x256xf32>
    %264 = arith.addf %258, %263 : vector<16x256xf32>
    %cst_130 = arith.constant dense<0.000000e+00> : vector<16xf32>
    %265 = vector.multi_reduction <add>, %264, %cst_130 [1] : vector<16x256xf32> to vector<16xf32>
    %266 = vector.shape_cast %265 : vector<16xf32> to vector<16x1xf32>
    %cst_131 = arith.constant 2.560000e+02 : f32
    %267 = vector.broadcast %cst_131 : f32 to vector<16x1xf32>
    %268 = arith.divf %266, %267 : vector<16x1xf32>
    %269 = vector.broadcast %268 : vector<16x1xf32> to vector<16x256xf32>
    %270 = arith.subf %264, %269 : vector<16x256xf32>
    %271 = arith.mulf %270, %270 : vector<16x256xf32>
    %cst_132 = arith.constant dense<0.000000e+00> : vector<16xf32>
    %272 = vector.multi_reduction <add>, %271, %cst_132 [1] : vector<16x256xf32> to vector<16xf32>
    %273 = vector.shape_cast %272 : vector<16xf32> to vector<16x1xf32>
    %cst_133 = arith.constant 2.560000e+02 : f32
    %274 = vector.broadcast %cst_133 : f32 to vector<16x1xf32>
    %275 = arith.divf %273, %274 : vector<16x1xf32>
    %cst_134 = arith.constant 9.99999974E-6 : f32
    %276 = vector.broadcast %cst_134 : f32 to vector<16x1xf32>
    %277 = arith.addf %275, %276 : vector<16x1xf32>
    %278 = math.rsqrt %277 : vector<16x1xf32>
    %279 = vector.broadcast %278 : vector<16x1xf32> to vector<16x256xf32>
    %280 = arith.mulf %270, %279 : vector<16x256xf32>
    %cst_135 = arith.constant 0.000000e+00 : f32
    %281 = vector.broadcast %cst_135 : f32 to vector<16x256xf32>
    %282 = arith.maximumf %280, %281 : vector<16x256xf32>
    %c73_i32_136 = arith.constant 73 : i32
    %283 = tpu.dynamic_rotate %282 by %c73_i32_136 dim 1 : vector<16x256xf32>, i32 -> vector<16x256xf32>
    %c0_137 = arith.constant 0 : index
    %c0_138 = arith.constant 0 : index
    %284 = vector.load %arg2[%c0_137, %c0_138] : memref<27x256xbf16, #tpu.memory_space<vmem>>, vector<1x256xbf16>
    %285 = arith.extf %284 : vector<1x256xbf16> to vector<1x256xf32>
    %286 = vector.broadcast %285 : vector<1x256xf32> to vector<16x256xf32>
    %287 = arith.mulf %283, %286 : vector<16x256xf32>
    %288 = arith.truncf %287 : vector<16x256xf32> to vector<16x256xbf16>
    %c0_139 = arith.constant 0 : index
    %c0_140 = arith.constant 0 : index
    %c0_141 = arith.constant 0 : index
    %289 = vector.load %arg6[%c0_139, %c0_140, %c0_141] : memref<2x256x256xbf16, #tpu.memory_space<vmem>>, vector<1x16x256xbf16>
    %290 = vector.shape_cast %289 : vector<1x16x256xbf16> to vector<16x256xbf16>
    %291 = vector.shape_cast %288 : vector<16x256xbf16> to vector<1x16x256xbf16>
    tpu.vector_store %arg6[%c0_139, %c0_140, %c0_141], %291 {strides = array<i32>} : memref<2x256x256xbf16, #tpu.memory_space<vmem>>, vector<1x16x256xbf16>,
    %c72_i32_142 = arith.constant 72 : i32
    %292 = tpu.dynamic_rotate %282 by %c72_i32_142 dim 1 : vector<16x256xf32>, i32 -> vector<16x256xf32>
    %c1_143 = arith.constant 1 : index
    %c0_144 = arith.constant 0 : index
    %293 = vector.load %arg2[%c1_143, %c0_144] : memref<27x256xbf16, #tpu.memory_space<vmem>>, vector<1x256xbf16>
    %294 = arith.extf %293 : vector<1x256xbf16> to vector<1x256xf32>
    %295 = vector.broadcast %294 : vector<1x256xf32> to vector<16x256xf32>
    %296 = arith.mulf %292, %295 : vector<16x256xf32>
    %297 = arith.truncf %296 : vector<16x256xf32> to vector<16x256xbf16>
    %c0_145 = arith.constant 0 : index
    %c16_146 = arith.constant 16 : index
    %c0_147 = arith.constant 0 : index
    %298 = vector.load %arg6[%c0_145, %c16_146, %c0_147] : memref<2x256x256xbf16, #tpu.memory_space<vmem>>, vector<1x16x256xbf16>
    %299 = vector.shape_cast %298 : vector<1x16x256xbf16> to vector<16x256xbf16>
    %300 = vector.shape_cast %297 : vector<16x256xbf16> to vector<1x16x256xbf16>
    tpu.vector_store %arg6[%c0_145, %c16_146, %c0_147], %300 {strides = array<i32>} : memref<2x256x256xbf16, #tpu.memory_space<vmem>>, vector<1x16x256xbf16>,
    %c71_i32_148 = arith.constant 71 : i32
    %301 = tpu.dynamic_rotate %282 by %c71_i32_148 dim 1 : vector<16x256xf32>, i32 -> vector<16x256xf32>
    %c2_149 = arith.constant 2 : index
    %c0_150 = arith.constant 0 : index
    %302 = vector.load %arg2[%c2_149, %c0_150] : memref<27x256xbf16, #tpu.memory_space<vmem>>, vector<1x256xbf16>
    %303 = arith.extf %302 : vector<1x256xbf16> to vector<1x256xf32>
    %304 = vector.broadcast %303 : vector<1x256xf32> to vector<16x256xf32>
    %305 = arith.mulf %301, %304 : vector<16x256xf32>
    %306 = arith.truncf %305 : vector<16x256xf32> to vector<16x256xbf16>
    %c0_151 = arith.constant 0 : index
    %c32_152 = arith.constant 32 : index
    %c0_153 = arith.constant 0 : index
    %307 = vector.load %arg6[%c0_151, %c32_152, %c0_153] : memref<2x256x256xbf16, #tpu.memory_space<vmem>>, vector<1x16x256xbf16>
    %308 = vector.shape_cast %307 : vector<1x16x256xbf16> to vector<16x256xbf16>
    %309 = vector.shape_cast %306 : vector<16x256xbf16> to vector<1x16x256xbf16>
    tpu.vector_store %arg6[%c0_151, %c32_152, %c0_153], %309 {strides = array<i32>} : memref<2x256x256xbf16, #tpu.memory_space<vmem>>, vector<1x16x256xbf16>,
    %c65_i32_154 = arith.constant 65 : i32
    %310 = tpu.dynamic_rotate %282 by %c65_i32_154 dim 1 : vector<16x256xf32>, i32 -> vector<16x256xf32>
    %c3_155 = arith.constant 3 : index
    %c0_156 = arith.constant 0 : index
    %311 = vector.load %arg2[%c3_155, %c0_156] : memref<27x256xbf16, #tpu.memory_space<vmem>>, vector<1x256xbf16>
    %312 = arith.extf %311 : vector<1x256xbf16> to vector<1x256xf32>
    %313 = vector.broadcast %312 : vector<1x256xf32> to vector<16x256xf32>
    %314 = arith.mulf %310, %313 : vector<16x256xf32>
    %315 = arith.truncf %314 : vector<16x256xf32> to vector<16x256xbf16>
    %c0_157 = arith.constant 0 : index
    %c48_158 = arith.constant 48 : index
    %c0_159 = arith.constant 0 : index
    %316 = vector.load %arg6[%c0_157, %c48_158, %c0_159] : memref<2x256x256xbf16, #tpu.memory_space<vmem>>, vector<1x16x256xbf16>
    %317 = vector.shape_cast %316 : vector<1x16x256xbf16> to vector<16x256xbf16>
    %318 = vector.shape_cast %315 : vector<16x256xbf16> to vector<1x16x256xbf16>
    tpu.vector_store %arg6[%c0_157, %c48_158, %c0_159], %318 {strides = array<i32>} : memref<2x256x256xbf16, #tpu.memory_space<vmem>>, vector<1x16x256xbf16>,
    %c64_i32_160 = arith.constant 64 : i32
    %319 = tpu.dynamic_rotate %282 by %c64_i32_160 dim 1 : vector<16x256xf32>, i32 -> vector<16x256xf32>
    %c4_161 = arith.constant 4 : index
    %c0_162 = arith.constant 0 : index
    %320 = vector.load %arg2[%c4_161, %c0_162] : memref<27x256xbf16, #tpu.memory_space<vmem>>, vector<1x256xbf16>
    %321 = arith.extf %320 : vector<1x256xbf16> to vector<1x256xf32>
    %322 = vector.broadcast %321 : vector<1x256xf32> to vector<16x256xf32>
    %323 = arith.mulf %319, %322 : vector<16x256xf32>
    %324 = arith.truncf %323 : vector<16x256xf32> to vector<16x256xbf16>
    %c0_163 = arith.constant 0 : index
    %c64_164 = arith.constant 64 : index
    %c0_165 = arith.constant 0 : index
    %325 = vector.load %arg6[%c0_163, %c64_164, %c0_165] : memref<2x256x256xbf16, #tpu.memory_space<vmem>>, vector<1x16x256xbf16>
    %326 = vector.shape_cast %325 : vector<1x16x256xbf16> to vector<16x256xbf16>
    %327 = vector.shape_cast %324 : vector<16x256xbf16> to vector<1x16x256xbf16>
    tpu.vector_store %arg6[%c0_163, %c64_164, %c0_165], %327 {strides = array<i32>} : memref<2x256x256xbf16, #tpu.memory_space<vmem>>, vector<1x16x256xbf16>,
    %c63_i32_166 = arith.constant 63 : i32
    %328 = tpu.dynamic_rotate %282 by %c63_i32_166 dim 1 : vector<16x256xf32>, i32 -> vector<16x256xf32>
    %c5_167 = arith.constant 5 : index
    %c0_168 = arith.constant 0 : index
    %329 = vector.load %arg2[%c5_167, %c0_168] : memref<27x256xbf16, #tpu.memory_space<vmem>>, vector<1x256xbf16>
    %330 = arith.extf %329 : vector<1x256xbf16> to vector<1x256xf32>
    %331 = vector.broadcast %330 : vector<1x256xf32> to vector<16x256xf32>
    %332 = arith.mulf %328, %331 : vector<16x256xf32>
    %333 = arith.truncf %332 : vector<16x256xf32> to vector<16x256xbf16>
    %c0_169 = arith.constant 0 : index
    %c80_170 = arith.constant 80 : index
    %c0_171 = arith.constant 0 : index
    %334 = vector.load %arg6[%c0_169, %c80_170, %c0_171] : memref<2x256x256xbf16, #tpu.memory_space<vmem>>, vector<1x16x256xbf16>
    %335 = vector.shape_cast %334 : vector<1x16x256xbf16> to vector<16x256xbf16>
    %336 = vector.shape_cast %333 : vector<16x256xbf16> to vector<1x16x256xbf16>
    tpu.vector_store %arg6[%c0_169, %c80_170, %c0_171], %336 {strides = array<i32>} : memref<2x256x256xbf16, #tpu.memory_space<vmem>>, vector<1x16x256xbf16>,
    %c57_i32_172 = arith.constant 57 : i32
    %337 = tpu.dynamic_rotate %282 by %c57_i32_172 dim 1 : vector<16x256xf32>, i32 -> vector<16x256xf32>
    %c6_173 = arith.constant 6 : index
    %c0_174 = arith.constant 0 : index
    %338 = vector.load %arg2[%c6_173, %c0_174] : memref<27x256xbf16, #tpu.memory_space<vmem>>, vector<1x256xbf16>
    %339 = arith.extf %338 : vector<1x256xbf16> to vector<1x256xf32>
    %340 = vector.broadcast %339 : vector<1x256xf32> to vector<16x256xf32>
    %341 = arith.mulf %337, %340 : vector<16x256xf32>
    %342 = arith.truncf %341 : vector<16x256xf32> to vector<16x256xbf16>
    %c0_175 = arith.constant 0 : index
    %c96_176 = arith.constant 96 : index
    %c0_177 = arith.constant 0 : index
    %343 = vector.load %arg6[%c0_175, %c96_176, %c0_177] : memref<2x256x256xbf16, #tpu.memory_space<vmem>>, vector<1x16x256xbf16>
    %344 = vector.shape_cast %343 : vector<1x16x256xbf16> to vector<16x256xbf16>
    %345 = vector.shape_cast %342 : vector<16x256xbf16> to vector<1x16x256xbf16>
    tpu.vector_store %arg6[%c0_175, %c96_176, %c0_177], %345 {strides = array<i32>} : memref<2x256x256xbf16, #tpu.memory_space<vmem>>, vector<1x16x256xbf16>,
    %c56_i32_178 = arith.constant 56 : i32
    %346 = tpu.dynamic_rotate %282 by %c56_i32_178 dim 1 : vector<16x256xf32>, i32 -> vector<16x256xf32>
    %c7_179 = arith.constant 7 : index
    %c0_180 = arith.constant 0 : index
    %347 = vector.load %arg2[%c7_179, %c0_180] : memref<27x256xbf16, #tpu.memory_space<vmem>>, vector<1x256xbf16>
    %348 = arith.extf %347 : vector<1x256xbf16> to vector<1x256xf32>
    %349 = vector.broadcast %348 : vector<1x256xf32> to vector<16x256xf32>
    %350 = arith.mulf %346, %349 : vector<16x256xf32>
    %351 = arith.truncf %350 : vector<16x256xf32> to vector<16x256xbf16>
    %c0_181 = arith.constant 0 : index
    %c112_182 = arith.constant 112 : index
    %c0_183 = arith.constant 0 : index
    %352 = vector.load %arg6[%c0_181, %c112_182, %c0_183] : memref<2x256x256xbf16, #tpu.memory_space<vmem>>, vector<1x16x256xbf16>
    %353 = vector.shape_cast %352 : vector<1x16x256xbf16> to vector<16x256xbf16>
    %354 = vector.shape_cast %351 : vector<16x256xbf16> to vector<1x16x256xbf16>
    tpu.vector_store %arg6[%c0_181, %c112_182, %c0_183], %354 {strides = array<i32>} : memref<2x256x256xbf16, #tpu.memory_space<vmem>>, vector<1x16x256xbf16>,
    %c55_i32_184 = arith.constant 55 : i32
    %355 = tpu.dynamic_rotate %282 by %c55_i32_184 dim 1 : vector<16x256xf32>, i32 -> vector<16x256xf32>
    %c8_185 = arith.constant 8 : index
    %c0_186 = arith.constant 0 : index
    %356 = vector.load %arg2[%c8_185, %c0_186] : memref<27x256xbf16, #tpu.memory_space<vmem>>, vector<1x256xbf16>
    %357 = arith.extf %356 : vector<1x256xbf16> to vector<1x256xf32>
    %358 = vector.broadcast %357 : vector<1x256xf32> to vector<16x256xf32>
    %359 = arith.mulf %355, %358 : vector<16x256xf32>
    %360 = arith.truncf %359 : vector<16x256xf32> to vector<16x256xbf16>
    %c0_187 = arith.constant 0 : index
    %c128_188 = arith.constant 128 : index
    %c0_189 = arith.constant 0 : index
    %361 = vector.load %arg6[%c0_187, %c128_188, %c0_189] : memref<2x256x256xbf16, #tpu.memory_space<vmem>>, vector<1x16x256xbf16>
    %362 = vector.shape_cast %361 : vector<1x16x256xbf16> to vector<16x256xbf16>
    %363 = vector.shape_cast %360 : vector<16x256xbf16> to vector<1x16x256xbf16>
    tpu.vector_store %arg6[%c0_187, %c128_188, %c0_189], %363 {strides = array<i32>} : memref<2x256x256xbf16, #tpu.memory_space<vmem>>, vector<1x16x256xbf16>,
    %c9_i32_190 = arith.constant 9 : i32
    %364 = tpu.dynamic_rotate %282 by %c9_i32_190 dim 1 : vector<16x256xf32>, i32 -> vector<16x256xf32>
    %c9_191 = arith.constant 9 : index
    %c0_192 = arith.constant 0 : index
    %365 = vector.load %arg2[%c9_191, %c0_192] : memref<27x256xbf16, #tpu.memory_space<vmem>>, vector<1x256xbf16>
    %366 = arith.extf %365 : vector<1x256xbf16> to vector<1x256xf32>
    %367 = vector.broadcast %366 : vector<1x256xf32> to vector<16x256xf32>
    %368 = arith.mulf %364, %367 : vector<16x256xf32>
    %369 = arith.truncf %368 : vector<16x256xf32> to vector<16x256xbf16>
    %c1_193 = arith.constant 1 : index
    %c0_194 = arith.constant 0 : index
    %c0_195 = arith.constant 0 : index
    %370 = vector.load %arg6[%c1_193, %c0_194, %c0_195] : memref<2x256x256xbf16, #tpu.memory_space<vmem>>, vector<1x16x256xbf16>
    %371 = vector.shape_cast %370 : vector<1x16x256xbf16> to vector<16x256xbf16>
    %372 = vector.shape_cast %369 : vector<16x256xbf16> to vector<1x16x256xbf16>
    tpu.vector_store %arg6[%c1_193, %c0_194, %c0_195], %372 {strides = array<i32>} : memref<2x256x256xbf16, #tpu.memory_space<vmem>>, vector<1x16x256xbf16>,
    %c8_i32_196 = arith.constant 8 : i32
    %373 = tpu.dynamic_rotate %282 by %c8_i32_196 dim 1 : vector<16x256xf32>, i32 -> vector<16x256xf32>
    %c10_197 = arith.constant 10 : index
    %c0_198 = arith.constant 0 : index
    %374 = vector.load %arg2[%c10_197, %c0_198] : memref<27x256xbf16, #tpu.memory_space<vmem>>, vector<1x256xbf16>
    %375 = arith.extf %374 : vector<1x256xbf16> to vector<1x256xf32>
    %376 = vector.broadcast %375 : vector<1x256xf32> to vector<16x256xf32>
    %377 = arith.mulf %373, %376 : vector<16x256xf32>
    %378 = arith.truncf %377 : vector<16x256xf32> to vector<16x256xbf16>
    %c1_199 = arith.constant 1 : index
    %c16_200 = arith.constant 16 : index
    %c0_201 = arith.constant 0 : index
    %379 = vector.load %arg6[%c1_199, %c16_200, %c0_201] : memref<2x256x256xbf16, #tpu.memory_space<vmem>>, vector<1x16x256xbf16>
    %380 = vector.shape_cast %379 : vector<1x16x256xbf16> to vector<16x256xbf16>
    %381 = vector.shape_cast %378 : vector<16x256xbf16> to vector<1x16x256xbf16>
    tpu.vector_store %arg6[%c1_199, %c16_200, %c0_201], %381 {strides = array<i32>} : memref<2x256x256xbf16, #tpu.memory_space<vmem>>, vector<1x16x256xbf16>,
    %c7_i32_202 = arith.constant 7 : i32
    %382 = tpu.dynamic_rotate %282 by %c7_i32_202 dim 1 : vector<16x256xf32>, i32 -> vector<16x256xf32>
    %c11_203 = arith.constant 11 : index
    %c0_204 = arith.constant 0 : index
    %383 = vector.load %arg2[%c11_203, %c0_204] : memref<27x256xbf16, #tpu.memory_space<vmem>>, vector<1x256xbf16>
    %384 = arith.extf %383 : vector<1x256xbf16> to vector<1x256xf32>
    %385 = vector.broadcast %384 : vector<1x256xf32> to vector<16x256xf32>
    %386 = arith.mulf %382, %385 : vector<16x256xf32>
    %387 = arith.truncf %386 : vector<16x256xf32> to vector<16x256xbf16>
    %c1_205 = arith.constant 1 : index
    %c32_206 = arith.constant 32 : index
    %c0_207 = arith.constant 0 : index
    %388 = vector.load %arg6[%c1_205, %c32_206, %c0_207] : memref<2x256x256xbf16, #tpu.memory_space<vmem>>, vector<1x16x256xbf16>
    %389 = vector.shape_cast %388 : vector<1x16x256xbf16> to vector<16x256xbf16>
    %390 = vector.shape_cast %387 : vector<16x256xbf16> to vector<1x16x256xbf16>
    tpu.vector_store %arg6[%c1_205, %c32_206, %c0_207], %390 {strides = array<i32>} : memref<2x256x256xbf16, #tpu.memory_space<vmem>>, vector<1x16x256xbf16>,
    %c1_i32_208 = arith.constant 1 : i32
    %391 = tpu.dynamic_rotate %282 by %c1_i32_208 dim 1 : vector<16x256xf32>, i32 -> vector<16x256xf32>
    %c12_209 = arith.constant 12 : index
    %c0_210 = arith.constant 0 : index
    %392 = vector.load %arg2[%c12_209, %c0_210] : memref<27x256xbf16, #tpu.memory_space<vmem>>, vector<1x256xbf16>
    %393 = arith.extf %392 : vector<1x256xbf16> to vector<1x256xf32>
    %394 = vector.broadcast %393 : vector<1x256xf32> to vector<16x256xf32>
    %395 = arith.mulf %391, %394 : vector<16x256xf32>
    %396 = arith.truncf %395 : vector<16x256xf32> to vector<16x256xbf16>
    %c1_211 = arith.constant 1 : index
    %c48_212 = arith.constant 48 : index
    %c0_213 = arith.constant 0 : index
    %397 = vector.load %arg6[%c1_211, %c48_212, %c0_213] : memref<2x256x256xbf16, #tpu.memory_space<vmem>>, vector<1x16x256xbf16>
    %398 = vector.shape_cast %397 : vector<1x16x256xbf16> to vector<16x256xbf16>
    %399 = vector.shape_cast %396 : vector<16x256xbf16> to vector<1x16x256xbf16>
    tpu.vector_store %arg6[%c1_211, %c48_212, %c0_213], %399 {strides = array<i32>} : memref<2x256x256xbf16, #tpu.memory_space<vmem>>, vector<1x16x256xbf16>,
    %400 = arith.truncf %282 : vector<16x256xf32> to vector<16x256xbf16>
    %c1_214 = arith.constant 1 : index
    %c64_215 = arith.constant 64 : index
    %c0_216 = arith.constant 0 : index
    %401 = vector.load %arg6[%c1_214, %c64_215, %c0_216] : memref<2x256x256xbf16, #tpu.memory_space<vmem>>, vector<1x16x256xbf16>
    %402 = vector.shape_cast %401 : vector<1x16x256xbf16> to vector<16x256xbf16>
    %403 = vector.shape_cast %400 : vector<16x256xbf16> to vector<1x16x256xbf16>
    tpu.vector_store %arg6[%c1_214, %c64_215, %c0_216], %403 {strides = array<i32>} : memref<2x256x256xbf16, #tpu.memory_space<vmem>>, vector<1x16x256xbf16>,
    %c255_i32_217 = arith.constant 255 : i32
    %404 = tpu.dynamic_rotate %282 by %c255_i32_217 dim 1 : vector<16x256xf32>, i32 -> vector<16x256xf32>
    %c14_218 = arith.constant 14 : index
    %c0_219 = arith.constant 0 : index
    %405 = vector.load %arg2[%c14_218, %c0_219] : memref<27x256xbf16, #tpu.memory_space<vmem>>, vector<1x256xbf16>
    %406 = arith.extf %405 : vector<1x256xbf16> to vector<1x256xf32>
    %407 = vector.broadcast %406 : vector<1x256xf32> to vector<16x256xf32>
    %408 = arith.mulf %404, %407 : vector<16x256xf32>
    %409 = arith.truncf %408 : vector<16x256xf32> to vector<16x256xbf16>
    %c1_220 = arith.constant 1 : index
    %c80_221 = arith.constant 80 : index
    %c0_222 = arith.constant 0 : index
    %410 = vector.load %arg6[%c1_220, %c80_221, %c0_222] : memref<2x256x256xbf16, #tpu.memory_space<vmem>>, vector<1x16x256xbf16>
    %411 = vector.shape_cast %410 : vector<1x16x256xbf16> to vector<16x256xbf16>
    %412 = vector.shape_cast %409 : vector<16x256xbf16> to vector<1x16x256xbf16>
    tpu.vector_store %arg6[%c1_220, %c80_221, %c0_222], %412 {strides = array<i32>} : memref<2x256x256xbf16, #tpu.memory_space<vmem>>, vector<1x16x256xbf16>,
    %c249_i32_223 = arith.constant 249 : i32
    %413 = tpu.dynamic_rotate %282 by %c249_i32_223 dim 1 : vector<16x256xf32>, i32 -> vector<16x256xf32>
    %c15_224 = arith.constant 15 : index
    %c0_225 = arith.constant 0 : index
    %414 = vector.load %arg2[%c15_224, %c0_225] : memref<27x256xbf16, #tpu.memory_space<vmem>>, vector<1x256xbf16>
    %415 = arith.extf %414 : vector<1x256xbf16> to vector<1x256xf32>
    %416 = vector.broadcast %415 : vector<1x256xf32> to vector<16x256xf32>
    %417 = arith.mulf %413, %416 : vector<16x256xf32>
    %418 = arith.truncf %417 : vector<16x256xf32> to vector<16x256xbf16>
    %c1_226 = arith.constant 1 : index
    %c96_227 = arith.constant 96 : index
    %c0_228 = arith.constant 0 : index
    %419 = vector.load %arg6[%c1_226, %c96_227, %c0_228] : memref<2x256x256xbf16, #tpu.memory_space<vmem>>, vector<1x16x256xbf16>
    %420 = vector.shape_cast %419 : vector<1x16x256xbf16> to vector<16x256xbf16>
    %421 = vector.shape_cast %418 : vector<16x256xbf16> to vector<1x16x256xbf16>
    tpu.vector_store %arg6[%c1_226, %c96_227, %c0_228], %421 {strides = array<i32>} : memref<2x256x256xbf16, #tpu.memory_space<vmem>>, vector<1x16x256xbf16>,
    %c248_i32_229 = arith.constant 248 : i32
    %422 = tpu.dynamic_rotate %282 by %c248_i32_229 dim 1 : vector<16x256xf32>, i32 -> vector<16x256xf32>
    %c16_230 = arith.constant 16 : index
    %c0_231 = arith.constant 0 : index
    %423 = vector.load %arg2[%c16_230, %c0_231] : memref<27x256xbf16, #tpu.memory_space<vmem>>, vector<1x256xbf16>
    %424 = arith.extf %423 : vector<1x256xbf16> to vector<1x256xf32>
    %425 = vector.broadcast %424 : vector<1x256xf32> to vector<16x256xf32>
    %426 = arith.mulf %422, %425 : vector<16x256xf32>
    %427 = arith.truncf %426 : vector<16x256xf32> to vector<16x256xbf16>
    %c1_232 = arith.constant 1 : index
    %c112_233 = arith.constant 112 : index
    %c0_234 = arith.constant 0 : index
    %428 = vector.load %arg6[%c1_232, %c112_233, %c0_234] : memref<2x256x256xbf16, #tpu.memory_space<vmem>>, vector<1x16x256xbf16>
    %429 = vector.shape_cast %428 : vector<1x16x256xbf16> to vector<16x256xbf16>
    %430 = vector.shape_cast %427 : vector<16x256xbf16> to vector<1x16x256xbf16>
    tpu.vector_store %arg6[%c1_232, %c112_233, %c0_234], %430 {strides = array<i32>} : memref<2x256x256xbf16, #tpu.memory_space<vmem>>, vector<1x16x256xbf16>,
    %c247_i32_235 = arith.constant 247 : i32
    %431 = tpu.dynamic_rotate %282 by %c247_i32_235 dim 1 : vector<16x256xf32>, i32 -> vector<16x256xf32>
    %c17_236 = arith.constant 17 : index
    %c0_237 = arith.constant 0 : index
    %432 = vector.load %arg2[%c17_236, %c0_237] : memref<27x256xbf16, #tpu.memory_space<vmem>>, vector<1x256xbf16>
    %433 = arith.extf %432 : vector<1x256xbf16> to vector<1x256xf32>
    %434 = vector.broadcast %433 : vector<1x256xf32> to vector<16x256xf32>
    %435 = arith.mulf %431, %434 : vector<16x256xf32>
    %436 = arith.truncf %435 : vector<16x256xf32> to vector<16x256xbf16>
    %c1_238 = arith.constant 1 : index
    %c128_239 = arith.constant 128 : index
    %c0_240 = arith.constant 0 : index
    %437 = vector.load %arg6[%c1_238, %c128_239, %c0_240] : memref<2x256x256xbf16, #tpu.memory_space<vmem>>, vector<1x16x256xbf16>
    %438 = vector.shape_cast %437 : vector<1x16x256xbf16> to vector<16x256xbf16>
    %439 = vector.shape_cast %436 : vector<16x256xbf16> to vector<1x16x256xbf16>
    tpu.vector_store %arg6[%c1_238, %c128_239, %c0_240], %439 {strides = array<i32>} : memref<2x256x256xbf16, #tpu.memory_space<vmem>>, vector<1x16x256xbf16>,
    %c0_241 = arith.constant 0 : index
    %c0_242 = arith.constant 0 : index
    %c0_243 = arith.constant 0 : index
    %440 = vector.load %arg4[%c0_241, %c0_242, %c0_243] : memref<3x16x256xbf16, #tpu.memory_space<vmem>>, vector<1x16x256xbf16>
    %441 = vector.shape_cast %440 : vector<1x16x256xbf16> to vector<16x256xbf16>
    %c0_244 = arith.constant 0 : index
    %c0_245 = arith.constant 0 : index
    %c0_246 = arith.constant 0 : index
    %442 = vector.load %arg6[%c0_244, %c0_245, %c0_246] : memref<2x256x256xbf16, #tpu.memory_space<vmem>>, vector<1x256x256xbf16>
    %443 = vector.shape_cast %442 : vector<1x256x256xbf16> to vector<256x256xbf16>
    %cst_247 = arith.constant dense<0.000000e+00> : vector<16x256xf32>
    %444 = tpu.matmul %441, %443, %cst_247 {dimension_numbers = #tpu.dot_dimension_numbers<[1], [0], [0], [1], [0, 0, 1, 1], [], []>} : vector<16x256xbf16>, vector<256x256xbf16>, vector<16x256xf32> -> vector<16x256xf32>
    %c201_i32_248 = arith.constant 201 : i32
    %445 = tpu.dynamic_rotate %282 by %c201_i32_248 dim 1 : vector<16x256xf32>, i32 -> vector<16x256xf32>
    %c18_249 = arith.constant 18 : index
    %c0_250 = arith.constant 0 : index
    %446 = vector.load %arg2[%c18_249, %c0_250] : memref<27x256xbf16, #tpu.memory_space<vmem>>, vector<1x256xbf16>
    %447 = arith.extf %446 : vector<1x256xbf16> to vector<1x256xf32>
    %448 = vector.broadcast %447 : vector<1x256xf32> to vector<16x256xf32>
    %449 = arith.mulf %445, %448 : vector<16x256xf32>
    %450 = arith.truncf %449 : vector<16x256xf32> to vector<16x256xbf16>
    %c0_251 = arith.constant 0 : index
    %c0_252 = arith.constant 0 : index
    %c0_253 = arith.constant 0 : index
    %451 = vector.load %arg6[%c0_251, %c0_252, %c0_253] : memref<2x256x256xbf16, #tpu.memory_space<vmem>>, vector<1x16x256xbf16>
    %452 = vector.shape_cast %451 : vector<1x16x256xbf16> to vector<16x256xbf16>
    %453 = vector.shape_cast %450 : vector<16x256xbf16> to vector<1x16x256xbf16>
    tpu.vector_store %arg6[%c0_251, %c0_252, %c0_253], %453 {strides = array<i32>} : memref<2x256x256xbf16, #tpu.memory_space<vmem>>, vector<1x16x256xbf16>,
    %c200_i32_254 = arith.constant 200 : i32
    %454 = tpu.dynamic_rotate %282 by %c200_i32_254 dim 1 : vector<16x256xf32>, i32 -> vector<16x256xf32>
    %c19_255 = arith.constant 19 : index
    %c0_256 = arith.constant 0 : index
    %455 = vector.load %arg2[%c19_255, %c0_256] : memref<27x256xbf16, #tpu.memory_space<vmem>>, vector<1x256xbf16>
    %456 = arith.extf %455 : vector<1x256xbf16> to vector<1x256xf32>
    %457 = vector.broadcast %456 : vector<1x256xf32> to vector<16x256xf32>
    %458 = arith.mulf %454, %457 : vector<16x256xf32>
    %459 = arith.truncf %458 : vector<16x256xf32> to vector<16x256xbf16>
    %c0_257 = arith.constant 0 : index
    %c16_258 = arith.constant 16 : index
    %c0_259 = arith.constant 0 : index
    %460 = vector.load %arg6[%c0_257, %c16_258, %c0_259] : memref<2x256x256xbf16, #tpu.memory_space<vmem>>, vector<1x16x256xbf16>
    %461 = vector.shape_cast %460 : vector<1x16x256xbf16> to vector<16x256xbf16>
    %462 = vector.shape_cast %459 : vector<16x256xbf16> to vector<1x16x256xbf16>
    tpu.vector_store %arg6[%c0_257, %c16_258, %c0_259], %462 {strides = array<i32>} : memref<2x256x256xbf16, #tpu.memory_space<vmem>>, vector<1x16x256xbf16>,
    %c199_i32_260 = arith.constant 199 : i32
    %463 = tpu.dynamic_rotate %282 by %c199_i32_260 dim 1 : vector<16x256xf32>, i32 -> vector<16x256xf32>
    %c20_261 = arith.constant 20 : index
    %c0_262 = arith.constant 0 : index
    %464 = vector.load %arg2[%c20_261, %c0_262] : memref<27x256xbf16, #tpu.memory_space<vmem>>, vector<1x256xbf16>
    %465 = arith.extf %464 : vector<1x256xbf16> to vector<1x256xf32>
    %466 = vector.broadcast %465 : vector<1x256xf32> to vector<16x256xf32>
    %467 = arith.mulf %463, %466 : vector<16x256xf32>
    %468 = arith.truncf %467 : vector<16x256xf32> to vector<16x256xbf16>
    %c0_263 = arith.constant 0 : index
    %c32_264 = arith.constant 32 : index
    %c0_265 = arith.constant 0 : index
    %469 = vector.load %arg6[%c0_263, %c32_264, %c0_265] : memref<2x256x256xbf16, #tpu.memory_space<vmem>>, vector<1x16x256xbf16>
    %470 = vector.shape_cast %469 : vector<1x16x256xbf16> to vector<16x256xbf16>
    %471 = vector.shape_cast %468 : vector<16x256xbf16> to vector<1x16x256xbf16>
    tpu.vector_store %arg6[%c0_263, %c32_264, %c0_265], %471 {strides = array<i32>} : memref<2x256x256xbf16, #tpu.memory_space<vmem>>, vector<1x16x256xbf16>,
    %c193_i32_266 = arith.constant 193 : i32
    %472 = tpu.dynamic_rotate %282 by %c193_i32_266 dim 1 : vector<16x256xf32>, i32 -> vector<16x256xf32>
    %c21_267 = arith.constant 21 : index
    %c0_268 = arith.constant 0 : index
    %473 = vector.load %arg2[%c21_267, %c0_268] : memref<27x256xbf16, #tpu.memory_space<vmem>>, vector<1x256xbf16>
    %474 = arith.extf %473 : vector<1x256xbf16> to vector<1x256xf32>
    %475 = vector.broadcast %474 : vector<1x256xf32> to vector<16x256xf32>
    %476 = arith.mulf %472, %475 : vector<16x256xf32>
    %477 = arith.truncf %476 : vector<16x256xf32> to vector<16x256xbf16>
    %c0_269 = arith.constant 0 : index
    %c48_270 = arith.constant 48 : index
    %c0_271 = arith.constant 0 : index
    %478 = vector.load %arg6[%c0_269, %c48_270, %c0_271] : memref<2x256x256xbf16, #tpu.memory_space<vmem>>, vector<1x16x256xbf16>
    %479 = vector.shape_cast %478 : vector<1x16x256xbf16> to vector<16x256xbf16>
    %480 = vector.shape_cast %477 : vector<16x256xbf16> to vector<1x16x256xbf16>
    tpu.vector_store %arg6[%c0_269, %c48_270, %c0_271], %480 {strides = array<i32>} : memref<2x256x256xbf16, #tpu.memory_space<vmem>>, vector<1x16x256xbf16>,
    %c192_i32_272 = arith.constant 192 : i32
    %481 = tpu.dynamic_rotate %282 by %c192_i32_272 dim 1 : vector<16x256xf32>, i32 -> vector<16x256xf32>
    %c22_273 = arith.constant 22 : index
    %c0_274 = arith.constant 0 : index
    %482 = vector.load %arg2[%c22_273, %c0_274] : memref<27x256xbf16, #tpu.memory_space<vmem>>, vector<1x256xbf16>
    %483 = arith.extf %482 : vector<1x256xbf16> to vector<1x256xf32>
    %484 = vector.broadcast %483 : vector<1x256xf32> to vector<16x256xf32>
    %485 = arith.mulf %481, %484 : vector<16x256xf32>
    %486 = arith.truncf %485 : vector<16x256xf32> to vector<16x256xbf16>
    %c0_275 = arith.constant 0 : index
    %c64_276 = arith.constant 64 : index
    %c0_277 = arith.constant 0 : index
    %487 = vector.load %arg6[%c0_275, %c64_276, %c0_277] : memref<2x256x256xbf16, #tpu.memory_space<vmem>>, vector<1x16x256xbf16>
    %488 = vector.shape_cast %487 : vector<1x16x256xbf16> to vector<16x256xbf16>
    %489 = vector.shape_cast %486 : vector<16x256xbf16> to vector<1x16x256xbf16>
    tpu.vector_store %arg6[%c0_275, %c64_276, %c0_277], %489 {strides = array<i32>} : memref<2x256x256xbf16, #tpu.memory_space<vmem>>, vector<1x16x256xbf16>,
    %c191_i32_278 = arith.constant 191 : i32
    %490 = tpu.dynamic_rotate %282 by %c191_i32_278 dim 1 : vector<16x256xf32>, i32 -> vector<16x256xf32>
    %c23_279 = arith.constant 23 : index
    %c0_280 = arith.constant 0 : index
    %491 = vector.load %arg2[%c23_279, %c0_280] : memref<27x256xbf16, #tpu.memory_space<vmem>>, vector<1x256xbf16>
    %492 = arith.extf %491 : vector<1x256xbf16> to vector<1x256xf32>
    %493 = vector.broadcast %492 : vector<1x256xf32> to vector<16x256xf32>
    %494 = arith.mulf %490, %493 : vector<16x256xf32>
    %495 = arith.truncf %494 : vector<16x256xf32> to vector<16x256xbf16>
    %c0_281 = arith.constant 0 : index
    %c80_282 = arith.constant 80 : index
    %c0_283 = arith.constant 0 : index
    %496 = vector.load %arg6[%c0_281, %c80_282, %c0_283] : memref<2x256x256xbf16, #tpu.memory_space<vmem>>, vector<1x16x256xbf16>
    %497 = vector.shape_cast %496 : vector<1x16x256xbf16> to vector<16x256xbf16>
    %498 = vector.shape_cast %495 : vector<16x256xbf16> to vector<1x16x256xbf16>
    tpu.vector_store %arg6[%c0_281, %c80_282, %c0_283], %498 {strides = array<i32>} : memref<2x256x256xbf16, #tpu.memory_space<vmem>>, vector<1x16x256xbf16>,
    %c185_i32_284 = arith.constant 185 : i32
    %499 = tpu.dynamic_rotate %282 by %c185_i32_284 dim 1 : vector<16x256xf32>, i32 -> vector<16x256xf32>
    %c24_285 = arith.constant 24 : index
    %c0_286 = arith.constant 0 : index
    %500 = vector.load %arg2[%c24_285, %c0_286] : memref<27x256xbf16, #tpu.memory_space<vmem>>, vector<1x256xbf16>
    %501 = arith.extf %500 : vector<1x256xbf16> to vector<1x256xf32>
    %502 = vector.broadcast %501 : vector<1x256xf32> to vector<16x256xf32>
    %503 = arith.mulf %499, %502 : vector<16x256xf32>
    %504 = arith.truncf %503 : vector<16x256xf32> to vector<16x256xbf16>
    %c0_287 = arith.constant 0 : index
    %c96_288 = arith.constant 96 : index
    %c0_289 = arith.constant 0 : index
    %505 = vector.load %arg6[%c0_287, %c96_288, %c0_289] : memref<2x256x256xbf16, #tpu.memory_space<vmem>>, vector<1x16x256xbf16>
    %506 = vector.shape_cast %505 : vector<1x16x256xbf16> to vector<16x256xbf16>
    %507 = vector.shape_cast %504 : vector<16x256xbf16> to vector<1x16x256xbf16>
    tpu.vector_store %arg6[%c0_287, %c96_288, %c0_289], %507 {strides = array<i32>} : memref<2x256x256xbf16, #tpu.memory_space<vmem>>, vector<1x16x256xbf16>,
    %c184_i32_290 = arith.constant 184 : i32
    %508 = tpu.dynamic_rotate %282 by %c184_i32_290 dim 1 : vector<16x256xf32>, i32 -> vector<16x256xf32>
    %c25_291 = arith.constant 25 : index
    %c0_292 = arith.constant 0 : index
    %509 = vector.load %arg2[%c25_291, %c0_292] : memref<27x256xbf16, #tpu.memory_space<vmem>>, vector<1x256xbf16>
    %510 = arith.extf %509 : vector<1x256xbf16> to vector<1x256xf32>
    %511 = vector.broadcast %510 : vector<1x256xf32> to vector<16x256xf32>
    %512 = arith.mulf %508, %511 : vector<16x256xf32>
    %513 = arith.truncf %512 : vector<16x256xf32> to vector<16x256xbf16>
    %c0_293 = arith.constant 0 : index
    %c112_294 = arith.constant 112 : index
    %c0_295 = arith.constant 0 : index
    %514 = vector.load %arg6[%c0_293, %c112_294, %c0_295] : memref<2x256x256xbf16, #tpu.memory_space<vmem>>, vector<1x16x256xbf16>
    %515 = vector.shape_cast %514 : vector<1x16x256xbf16> to vector<16x256xbf16>
    %516 = vector.shape_cast %513 : vector<16x256xbf16> to vector<1x16x256xbf16>
    tpu.vector_store %arg6[%c0_293, %c112_294, %c0_295], %516 {strides = array<i32>} : memref<2x256x256xbf16, #tpu.memory_space<vmem>>, vector<1x16x256xbf16>,
    %c183_i32_296 = arith.constant 183 : i32
    %517 = tpu.dynamic_rotate %282 by %c183_i32_296 dim 1 : vector<16x256xf32>, i32 -> vector<16x256xf32>
    %c26_297 = arith.constant 26 : index
    %c0_298 = arith.constant 0 : index
    %518 = vector.load %arg2[%c26_297, %c0_298] : memref<27x256xbf16, #tpu.memory_space<vmem>>, vector<1x256xbf16>
    %519 = arith.extf %518 : vector<1x256xbf16> to vector<1x256xf32>
    %520 = vector.broadcast %519 : vector<1x256xf32> to vector<16x256xf32>
    %521 = arith.mulf %517, %520 : vector<16x256xf32>
    %522 = arith.truncf %521 : vector<16x256xf32> to vector<16x256xbf16>
    %c0_299 = arith.constant 0 : index
    %c128_300 = arith.constant 128 : index
    %c0_301 = arith.constant 0 : index
    %523 = vector.load %arg6[%c0_299, %c128_300, %c0_301] : memref<2x256x256xbf16, #tpu.memory_space<vmem>>, vector<1x16x256xbf16>
    %524 = vector.shape_cast %523 : vector<1x16x256xbf16> to vector<16x256xbf16>
    %525 = vector.shape_cast %522 : vector<16x256xbf16> to vector<1x16x256xbf16>
    tpu.vector_store %arg6[%c0_299, %c128_300, %c0_301], %525 {strides = array<i32>} : memref<2x256x256xbf16, #tpu.memory_space<vmem>>, vector<1x16x256xbf16>,
    %c1_302 = arith.constant 1 : index
    %c0_303 = arith.constant 0 : index
    %c0_304 = arith.constant 0 : index
    %526 = vector.load %arg4[%c1_302, %c0_303, %c0_304] : memref<3x16x256xbf16, #tpu.memory_space<vmem>>, vector<1x16x256xbf16>
    %527 = vector.shape_cast %526 : vector<1x16x256xbf16> to vector<16x256xbf16>
    %c1_305 = arith.constant 1 : index
    %c0_306 = arith.constant 0 : index
    %c0_307 = arith.constant 0 : index
    %528 = vector.load %arg6[%c1_305, %c0_306, %c0_307] : memref<2x256x256xbf16, #tpu.memory_space<vmem>>, vector<1x256x256xbf16>
    %529 = vector.shape_cast %528 : vector<1x256x256xbf16> to vector<256x256xbf16>
    %cst_308 = arith.constant dense<0.000000e+00> : vector<16x256xf32>
    %530 = tpu.matmul %527, %529, %cst_308 {dimension_numbers = #tpu.dot_dimension_numbers<[1], [0], [0], [1], [0, 0, 1, 1], [], []>} : vector<16x256xbf16>, vector<256x256xbf16>, vector<16x256xf32> -> vector<16x256xf32>
    %531 = arith.addf %444, %530 : vector<16x256xf32>
    %c2_309 = arith.constant 2 : index
    %c0_310 = arith.constant 0 : index
    %c0_311 = arith.constant 0 : index
    %532 = vector.load %arg4[%c2_309, %c0_310, %c0_311] : memref<3x16x256xbf16, #tpu.memory_space<vmem>>, vector<1x16x256xbf16>
    %533 = vector.shape_cast %532 : vector<1x16x256xbf16> to vector<16x256xbf16>
    %c0_312 = arith.constant 0 : index
    %c0_313 = arith.constant 0 : index
    %c0_314 = arith.constant 0 : index
    %534 = vector.load %arg6[%c0_312, %c0_313, %c0_314] : memref<2x256x256xbf16, #tpu.memory_space<vmem>>, vector<1x256x256xbf16>
    %535 = vector.shape_cast %534 : vector<1x256x256xbf16> to vector<256x256xbf16>
    %cst_315 = arith.constant dense<0.000000e+00> : vector<16x256xf32>
    %536 = tpu.matmul %533, %535, %cst_315 {dimension_numbers = #tpu.dot_dimension_numbers<[1], [0], [0], [1], [0, 0, 1, 1], [], []>} : vector<16x256xbf16>, vector<256x256xbf16>, vector<16x256xf32> -> vector<16x256xf32>
    %537 = arith.addf %531, %536 : vector<16x256xf32>
    %cst_316 = arith.constant dense<0.000000e+00> : vector<16xf32>
    %538 = vector.multi_reduction <add>, %537, %cst_316 [1] : vector<16x256xf32> to vector<16xf32>
    %539 = vector.shape_cast %538 : vector<16xf32> to vector<16x1xf32>
    %cst_317 = arith.constant 2.560000e+02 : f32
    %540 = vector.broadcast %cst_317 : f32 to vector<16x1xf32>
    %541 = arith.divf %539, %540 : vector<16x1xf32>
    %542 = vector.broadcast %541 : vector<16x1xf32> to vector<16x256xf32>
    %543 = arith.subf %537, %542 : vector<16x256xf32>
    %544 = arith.mulf %543, %543 : vector<16x256xf32>
    %cst_318 = arith.constant dense<0.000000e+00> : vector<16xf32>
    %545 = vector.multi_reduction <add>, %544, %cst_318 [1] : vector<16x256xf32> to vector<16xf32>
    %546 = vector.shape_cast %545 : vector<16xf32> to vector<16x1xf32>
    %cst_319 = arith.constant 2.560000e+02 : f32
    %547 = vector.broadcast %cst_319 : f32 to vector<16x1xf32>
    %548 = arith.divf %546, %547 : vector<16x1xf32>
    %cst_320 = arith.constant 9.99999974E-6 : f32
    %549 = vector.broadcast %cst_320 : f32 to vector<16x1xf32>
    %550 = arith.addf %548, %549 : vector<16x1xf32>
    %551 = math.rsqrt %550 : vector<16x1xf32>
    %552 = vector.broadcast %551 : vector<16x1xf32> to vector<16x256xf32>
    %553 = arith.mulf %543, %552 : vector<16x256xf32>
    %554 = arith.addf %9, %553 : vector<16x256xf32>
    %c0_321 = arith.constant 0 : index
    %c0_322 = arith.constant 0 : index
    %c0_323 = arith.constant 0 : index
    %555 = vector.load %arg5[%c0_321, %c0_322, %c0_323] : memref<1x16x256xf32, #tpu.memory_space<vmem>>, vector<1x16x256xf32>
    %556 = vector.shape_cast %555 : vector<1x16x256xf32> to vector<16x256xf32>
    %557 = vector.shape_cast %554 : vector<16x256xf32> to vector<1x16x256xf32>
    tpu.vector_store %arg5[%c0_321, %c0_322, %c0_323], %557 {strides = array<i32>} : memref<1x16x256xf32, #tpu.memory_space<vmem>>, vector<1x16x256xf32>,
    return
  }
  func.func @transform_0(%arg0: i32) -> (i32, i32, i32) {
    %c0_i32 = arith.constant 0 : i32
    %c0_i32_0 = arith.constant 0 : i32
    %c0_i32_1 = arith.constant 0 : i32
    return %arg0, %c0_i32, %c0_i32_0 : i32, i32, i32
  }
  func.func @transform_1(%arg0: i32) -> (i32, i32) {
    %c0_i32 = arith.constant 0 : i32
    %c0_i32_0 = arith.constant 0 : i32
    %c0_i32_1 = arith.constant 0 : i32
    return %c0_i32, %c0_i32_0 : i32, i32
  }
  func.func @transform_2(%arg0: i32) -> (i32, i32, i32) {
    %c0_i32 = arith.constant 0 : i32
    %c0_i32_0 = arith.constant 0 : i32
    %c0_i32_1 = arith.constant 0 : i32
    %c0_i32_2 = arith.constant 0 : i32
    return %c0_i32, %c0_i32_0, %c0_i32_1 : i32, i32, i32
  }
  func.func @transform_3(%arg0: i32) -> (i32, i32, i32) {
    %c0_i32 = arith.constant 0 : i32
    %c0_i32_0 = arith.constant 0 : i32
    %c0_i32_1 = arith.constant 0 : i32
    %c0_i32_2 = arith.constant 0 : i32
    return %c0_i32, %c0_i32_0, %c0_i32_1 : i32, i32, i32
  }
  func.func @transform_4(%arg0: i32) -> (i32, i32, i32) {
    %c0_i32 = arith.constant 0 : i32
    %c0_i32_0 = arith.constant 0 : i32
    %c0_i32_1 = arith.constant 0 : i32
    return %arg0, %c0_i32, %c0_i32_0 : i32, i32, i32
  }
}

</mosaic_0001>

<llo_original>
// kernel: anim_resnet_block_forward.1
$region0: #{anim_resnet_block_forward.1}
  #allocation0 [shape = 'u32[]', space=smem, size = 0x4, offset = 0x4, fixed_abs, tag = 'smem constant byte address 0x4 - core index']
  #allocation1 [shape = 'u32[144,128]{1,0:T(1,128)}', space=vmem, size = 0x12000, scoped, tag = 'internal scratch']
  #allocation2 [shape = 'bf16[2,256,256]{2,1,0:T(16,128)(2,1)}', space=vmem, size = 0x40000, scoped, tag = 'scratch operand']
  %s0 = inlined_call_operand.vmem [shape: f32[2,16,256], index: 0, kind: input, shape index: {}]
  %s1 = inlined_call_operand.vmem [shape: bf16[27,256], index: 1, kind: input, shape index: {}]
  %s2 = inlined_call_operand.vmem [shape: bf16[3,16,256], index: 2, kind: input, shape index: {}]
  %s3 = inlined_call_operand.vmem [shape: bf16[3,16,256], index: 3, kind: input, shape index: {}]
  %s4 = inlined_call_operand.vmem [shape: f32[2,16,256], index: 4, kind: output, shape index: {}]
  %s5 = sld [smem:[#allocation0]]
  $region49: #{anim_resnet_block_forward.1} parent=0
    _
  %s7 = ssub.s32 1, %s5
  %s8 = scalar_select 0, %s7, %s5
  loop: start=0, step=1, limit=4
  $region2: #{anim_resnet_block_forward.1} parent=0 // loop_pre_header
    _
  $region3: #{anim_resnet_block_forward.1} parent=0 // loop_header
    %s10 = sphi 0, %s14
    %p11 = scmp.ge.s32.totalorder %s10, 4
    %s20 = sphi 0, %s22
    %s23 = sphi 0, %s20
    %s24 = sphi 0, %s23
    %s40 = sphi 0, %s24
    %s44 = sphi 0, %s44
    %s46 = sphi 0, %s44
    %s47 = sphi 0, %s46
    %s61 = sphi 0, %s47
    %s65 = sphi 0, %s65
    %s67 = sphi 0, %s65
    %s68 = sphi 0, %s67
    %s82 = sphi 0, %s68
    %s86 = sphi 0, %s86
    %s88 = sphi 0, %s86
    %s89 = sphi 0, %s88
    %s103 = sphi 0, %s89
    %s109 = sphi 0, %s111
    %s112 = sphi 0, %s109
    %s113 = sphi 0, %s112
    %s129 = sphi 0, %s113
  $region4: #{anim_resnet_block_forward.1} parent=0 // loop_header_branch
    %13 = sbr.rel (%p11) target = $region8
  $region5: #{anim_resnet_block_forward.1} parent=0 // loop_body
    %s15 = ssub.s32 %s10, 1
    %s16 = ssub.s32 %s10, 2
    %s17 = sadd.s32 %s10, 1
    %s18 = ssub.s32 %s10, %s17
    %p19 = scmp.eq.s32.totalorder %s18, 0
    %s21 = sadd.s32 %s20, 1
    %s22 = scalar_select %p19, %s20, %s21
    %p25 = pneg %p19
    %p26 = scmp.eq.s32.totalorder %s10, 1
    %p27 = por %p25, %p26
    %p28 = scmp.ne.s32.totalorder %s20, %s23
    %p29 = scmp.eq.s32.totalorder %s10, 0
    %p30 = por %p28, %p29
    %p31 = scmp.ne.s32.totalorder %s20, %s23
    %p32 = scmp.eq.s32.totalorder %s15, 1
    %p33 = por %p31, %p32
    %p34 = scmp.ne.s32.totalorder %s23, %s24
    %p35 = scmp.eq.s32.totalorder %s15, 0
    %p36 = por %p34, %p35
    %p37 = scmp.ne.s32.totalorder %s23, %s24
    %p38 = scmp.eq.s32.totalorder %s16, 1
    %p39 = por %p37, %p38
    %p41 = scmp.ne.s32.totalorder %s24, %s40
    %p42 = scmp.eq.s32.totalorder %s16, 0
    %p43 = por %p41, %p42
    %s45 = sadd.s32 %s44, 1
    %p48 = scmp.eq.s32.totalorder %s10, 1
    %p49 = scmp.ne.s32.totalorder %s44, %s46
    %p50 = scmp.eq.s32.totalorder %s10, 0
    %p51 = por %p49, %p50
    %p52 = scmp.ne.s32.totalorder %s44, %s46
    %p53 = scmp.eq.s32.totalorder %s15, 1
    %p54 = por %p52, %p53
    %p55 = scmp.ne.s32.totalorder %s46, %s47
    %p56 = scmp.eq.s32.totalorder %s15, 0
    %p57 = por %p55, %p56
    %p58 = scmp.ne.s32.totalorder %s46, %s47
    %p59 = scmp.eq.s32.totalorder %s16, 1
    %p60 = por %p58, %p59
    %p62 = scmp.ne.s32.totalorder %s47, %s61
    %p63 = scmp.eq.s32.totalorder %s16, 0
    %p64 = por %p62, %p63
    %s66 = sadd.s32 %s65, 1
    %p69 = scmp.eq.s32.totalorder %s10, 1
    %p70 = scmp.ne.s32.totalorder %s65, %s67
    %p71 = scmp.eq.s32.totalorder %s10, 0
    %p72 = por %p70, %p71
    %p73 = scmp.ne.s32.totalorder %s65, %s67
    %p74 = scmp.eq.s32.totalorder %s15, 1
    %p75 = por %p73, %p74
    %p76 = scmp.ne.s32.totalorder %s67, %s68
    %p77 = scmp.eq.s32.totalorder %s15, 0
    %p78 = por %p76, %p77
    %p79 = scmp.ne.s32.totalorder %s67, %s68
    %p80 = scmp.eq.s32.totalorder %s16, 1
    %p81 = por %p79, %p80
    %p83 = scmp.ne.s32.totalorder %s68, %s82
    %p84 = scmp.eq.s32.totalorder %s16, 0
    %p85 = por %p83, %p84
    %s87 = sadd.s32 %s86, 1
    %p90 = scmp.eq.s32.totalorder %s10, 1
    %p91 = scmp.ne.s32.totalorder %s86, %s88
    %p92 = scmp.eq.s32.totalorder %s10, 0
    %p93 = por %p91, %p92
    %p94 = scmp.ne.s32.totalorder %s86, %s88
    %p95 = scmp.eq.s32.totalorder %s15, 1
    %p96 = por %p94, %p95
    %p97 = scmp.ne.s32.totalorder %s88, %s89
    %p98 = scmp.eq.s32.totalorder %s15, 0
    %p99 = por %p97, %p98
    %p100 = scmp.ne.s32.totalorder %s88, %s89
    %p101 = scmp.eq.s32.totalorder %s16, 1
    %p102 = por %p100, %p101
    %p104 = scmp.ne.s32.totalorder %s89, %s103
    %p105 = scmp.eq.s32.totalorder %s16, 0
    %p106 = por %p104, %p105
    %s107 = ssub.s32 %s10, %s17
    %p108 = scmp.eq.s32.totalorder %s107, 0
    %s110 = sadd.s32 %s109, 1
    %s111 = scalar_select %p108, %s109, %s110
    %p114 = pneg %p108
    %p115 = scmp.eq.s32.totalorder %s10, 1
    %p116 = por %p114, %p115
    %p117 = scmp.ne.s32.totalorder %s109, %s112
    %p118 = scmp.eq.s32.totalorder %s10, 0
    %p119 = por %p117, %p118
    %p120 = scmp.ne.s32.totalorder %s109, %s112
    %p121 = scmp.eq.s32.totalorder %s15, 1
    %p122 = por %p120, %p121
    %p123 = scmp.ne.s32.totalorder %s112, %s113
    %p124 = scmp.eq.s32.totalorder %s15, 0
    %p125 = por %p123, %p124
    %p126 = scmp.ne.s32.totalorder %s112, %s113
    %p127 = scmp.eq.s32.totalorder %s16, 1
    %p128 = por %p126, %p127
    %p130 = scmp.ne.s32.totalorder %s113, %s129
    %p131 = scmp.eq.s32.totalorder %s16, 0
    %p132 = por %p130, %p131
    %p133 = scmp.le.s32.totalorder 1, %s10
    %p134 = scmp.lt.s32.totalorder %s10, 3
    %p135 = pnand %p133, %p134
    %p136 = pneg %p135
    // Predicated region
    $region9: #{anim_resnet_block_forward.1} parent=5 // pred_check
      _
    $region10: #{anim_resnet_block_forward.1} parent=5 // pred_check_branch
      %138 = sbr.rel (%p135) target = $region12
    $region11: #{anim_resnet_block_forward.1} parent=5 // pred_region
      %s139 = ssub.s32 %s10, 1
      // Predicated region
      $region13: #{anim_resnet_block_forward.1} parent=11 // pred_check
        %p140 = pneg %p57
      $region14: #{anim_resnet_block_forward.1} parent=11 // pred_check_branch
        %142 = sbr.rel (%p140) target = $region16
      $region15: #{anim_resnet_block_forward.1} parent=11 // pred_region
        _
      $region16: #{anim_resnet_block_forward.1} parent=11 // pred_fallthru
        _
      // Predicated region
      $region17: #{anim_resnet_block_forward.1} parent=11 // pred_check
        %p143 = pneg %p78
      $region18: #{anim_resnet_block_forward.1} parent=11 // pred_check_branch
        %145 = sbr.rel (%p143) target = $region20
      $region19: #{anim_resnet_block_forward.1} parent=11 // pred_region
        _
      $region20: #{anim_resnet_block_forward.1} parent=11 // pred_fallthru
        _
      // Predicated region
      $region21: #{anim_resnet_block_forward.1} parent=11 // pred_check
        %p146 = pneg %p99
      $region22: #{anim_resnet_block_forward.1} parent=11 // pred_check_branch
        %148 = sbr.rel (%p146) target = $region24
      $region23: #{anim_resnet_block_forward.1} parent=11 // pred_region
        _
      $region24: #{anim_resnet_block_forward.1} parent=11 // pred_fallthru
        _
    $region12: #{anim_resnet_block_forward.1} parent=5 // pred_fallthru
      _
    %p149 = scmp.lt.s32.totalorder %s10, 2
    // Predicated region
    $region25: #{anim_resnet_block_forward.1} parent=5 // pred_check
      %p150 = pneg %p149
    $region26: #{anim_resnet_block_forward.1} parent=5 // pred_check_branch
      %152 = sbr.rel (%p150) target = $region28
    $region27: #{anim_resnet_block_forward.1} parent=5 // pred_region
      // Predicated region
      $region29: #{anim_resnet_block_forward.1} parent=27 // pred_check
        %p153 = pneg %p30
      $region30: #{anim_resnet_block_forward.1} parent=27 // pred_check_branch
        %155 = sbr.rel (%p153) target = $region32
      $region31: #{anim_resnet_block_forward.1} parent=27 // pred_region
        %p156 = scmp.lt.s32.totalorder %s10, 1
        %s157 = scalar_select %p156, %s10, 1
        %s158 = smul.addr %s157, 4
        %s159 = smul.addr %s158, 8
        %s160 = scalar_lea.vmem %s0, %s159
      $region32: #{anim_resnet_block_forward.1} parent=27 // pred_fallthru
        _
    $region28: #{anim_resnet_block_forward.1} parent=5 // pred_fallthru
      _
    %p161 = scmp.le.s32.totalorder 1, %s10
    %p162 = scmp.lt.s32.totalorder %s10, 3
    %p163 = pnand %p161, %p162
    %p164 = pneg %p163
    // Predicated region
    $region33: #{anim_resnet_block_forward.1} parent=5 // pred_check
      _
    $region34: #{anim_resnet_block_forward.1} parent=5 // pred_check_branch
      %166 = sbr.rel (%p163) target = $region36
    $region35: #{anim_resnet_block_forward.1} parent=5 // pred_region
      %s167 = ssub.s32 %s10, 1
      %p168 = scmp.lt.s32.totalorder %s15, 1
      %s169 = scalar_select %p168, %s15, 1
      %s170 = smul.addr %s169, 4
      %s171 = smul.addr %s170, 8
      %s172 = scalar_lea.vmem %s0, %s171
      %p173 = pneg %p36
      %p174 = pneg %p33
      %p175 = pneg %p57
      %p176 = pneg %p54
      %p177 = pneg %p78
      %p178 = pneg %p75
      %p179 = pneg %p99
      %p180 = pneg %p96
      %p181 = pneg %p125
      %p182 = pneg %p122
      %p183 = scmp.lt.s32.totalorder %s15, 1
      %s184 = scalar_select %p183, %s15, 1
      %s185 = smul.addr %s184, 4
      %s186 = smul.addr %s185, 8
      %s187 = scalar_lea.vmem %s4, %s186
      %p188 = scmp.lt.s32.totalorder %s15, 1
      %s189 = scalar_select %p188, %s15, 1
      %s190 = smul.addr %s189, 4
      %s191 = smul.addr %s190, 8
      %s192 = scalar_lea.vmem %s0, %s191
      %p193 = scmp.lt.s32.totalorder %s15, 1
      %s194 = scalar_select %p193, %s15, 1
      %s195 = smul.addr %s194, 4
      %s196 = smul.addr %s195, 8
      %s197 = scalar_lea.vmem %s4, %s196
      %199 = vst [vmem:[#allocation2 + $0x90] sm:$0xff] 0
      %200 = vst [vmem:[#allocation2 + $0x98] sm:$0xff] 0
      %201 = vst [vmem:[#allocation2 + $0xa0] sm:$0xff] 0
      %202 = vst [vmem:[#allocation2 + $0xa8] sm:$0xff] 0
      %203 = vst [vmem:[#allocation2 + $0xb0] sm:$0xff] 0
      %204 = vst [vmem:[#allocation2 + $0xb8] sm:$0xff] 0
      %205 = vst [vmem:[#allocation2 + $0xc0] sm:$0xff] 0
      %206 = vst [vmem:[#allocation2 + $0xc8] sm:$0xff] 0
      %207 = vst [vmem:[#allocation2 + $0xd0] sm:$0xff] 0
      %208 = vst [vmem:[#allocation2 + $0xd8] sm:$0xff] 0
      %209 = vst [vmem:[#allocation2 + $0xe0] sm:$0xff] 0
      %210 = vst [vmem:[#allocation2 + $0xe8] sm:$0xff] 0
      %211 = vst [vmem:[#allocation2 + $0xf0] sm:$0xff] 0
      %212 = vst [vmem:[#allocation2 + $0xf8] sm:$0xff] 0
      %s213 = scalar_lea.vmem [#allocation2], 256
      %214 = vst [vmem:[%s213 + $0x90] sm:$0xff] 0
      %215 = vst [vmem:[%s213 + $0x98] sm:$0xff] 0
      %216 = vst [vmem:[%s213 + $0xa0] sm:$0xff] 0
      %217 = vst [vmem:[%s213 + $0xa8] sm:$0xff] 0
      %218 = vst [vmem:[%s213 + $0xb0] sm:$0xff] 0
      %219 = vst [vmem:[%s213 + $0xb8] sm:$0xff] 0
      %220 = vst [vmem:[%s213 + $0xc0] sm:$0xff] 0
      %221 = vst [vmem:[%s213 + $0xc8] sm:$0xff] 0
      %222 = vst [vmem:[%s213 + $0xd0] sm:$0xff] 0
      %223 = vst [vmem:[%s213 + $0xd8] sm:$0xff] 0
      %224 = vst [vmem:[%s213 + $0xe0] sm:$0xff] 0
      %225 = vst [vmem:[%s213 + $0xe8] sm:$0xff] 0
      %226 = vst [vmem:[%s213 + $0xf0] sm:$0xff] 0
      %227 = vst [vmem:[%s213 + $0xf8] sm:$0xff] 0
      %v228 = vld [vmem:[%s192] sm:$0xff]
      %v229 = vld [vmem:[%s192 + $0x8] sm:$0xff]
      %v230 = vld [vmem:[%s192 + $0x10] sm:$0xff]
      %v231 = vld [vmem:[%s192 + $0x18] sm:$0xff]
      %232 = vrot.lane.b32.xlu0 %v228, 73
      %v233 = vpop.permute.xlu0 %232
      %234 = vrot.lane.b32.xlu0 %v230, 73
      %v235 = vpop.permute.xlu0 %234
      %236 = vrot.lane.b32.xlu0 %v229, 73
      %v237 = vpop.permute.xlu0 %236
      %238 = vrot.lane.b32.xlu0 %v231, 73
      %v239 = vpop.permute.xlu0 %238
      %v240 = vlaneseq
      %v241 = vand.u32 %v240, 127
      %vm242 = vcmp.lt.s32.totalorder %v241, 73
      %v243 = vsel %vm242, %v233, %v237
      %v244 = vsel %vm242, %v235, %v239
      %v245 = vsel %vm242, %v237, %v233
      %v246 = vsel %vm242, %v239, %v235
      %v247 = vld [vmem:[%s1] sm:$0x11]
      %v248 = vunpack.c.l.bf16 %v247
      %v249 = vunpack.c.h.bf16 %v247
      %v250 = vlaneseq
      %v251 = vshrl.u32 %v250, 7
      %v252 = vsub.s32 0, %v251
      %v253 = vrot.slane %v248, %v252
      %v254 = vlaneseq
      %v255 = vshrl.u32 %v254, 7
      %v256 = vsub.s32 0, %v255
      %v257 = vrot.slane %v249, %v256
      %v258 = vmul.f32 %v245, %v253
      %v259 = vmul.f32 %v243, %v257
      %v260 = vmul.f32 %v246, %v253
      %v261 = vmul.f32 %v244, %v257
      %v262 = vpack.c.bf16 %v260, %v258
      %v263 = vpack.c.bf16 %v261, %v259
      %264 = vst [vmem:[#allocation2] sm:$0xff] %v262
      %265 = vst [vmem:[#allocation2 + $0x8] sm:$0xff] %v263
      %266 = vrot.lane.b32.xlu0 %v228, 72
      %v267 = vpop.permute.xlu0 %266
      %268 = vrot.lane.b32.xlu0 %v230, 72
      %v269 = vpop.permute.xlu0 %268
      %270 = vrot.lane.b32.xlu0 %v229, 72
      %v271 = vpop.permute.xlu0 %270
      %272 = vrot.lane.b32.xlu0 %v231, 72
      %v273 = vpop.permute.xlu0 %272
      %vm274 = vcmp.lt.s32.totalorder %v241, 72
      %v275 = vsel %vm274, %v267, %v271
      %v276 = vsel %vm274, %v269, %v273
      %v277 = vsel %vm274, %v271, %v267
      %v278 = vsel %vm274, %v273, %v269
      %v279 = vld [vmem:[%s1] sm:$0x11]
      %v280 = vunpack.c.l.bf16 %v279
      %v281 = vunpack.c.h.bf16 %v279
      %v282 = vlaneseq
      %v283 = vshrl.u32 %v282, 7
      %v284 = vsub.s32 1, %v283
      %v285 = vrot.slane %v280, %v284
      %v286 = vlaneseq
      %v287 = vshrl.u32 %v286, 7
      %v288 = vsub.s32 1, %v287
      %v289 = vrot.slane %v281, %v288
      %v290 = vmul.f32 %v277, %v285
      %v291 = vmul.f32 %v275, %v289
      %v292 = vmul.f32 %v278, %v285
      %v293 = vmul.f32 %v276, %v289
      %v294 = vpack.c.bf16 %v292, %v290
      %v295 = vpack.c.bf16 %v293, %v291
      %296 = vst [vmem:[#allocation2 + $0x10] sm:$0xff] %v294
      %297 = vst [vmem:[#allocation2 + $0x18] sm:$0xff] %v295
      %298 = vrot.lane.b32.xlu0 %v228, 71
      %v299 = vpop.permute.xlu0 %298
      %300 = vrot.lane.b32.xlu0 %v230, 71
      %v301 = vpop.permute.xlu0 %300
      %302 = vrot.lane.b32.xlu0 %v229, 71
      %v303 = vpop.permute.xlu0 %302
      %304 = vrot.lane.b32.xlu0 %v231, 71
      %v305 = vpop.permute.xlu0 %304
      %vm306 = vcmp.lt.s32.totalorder %v241, 71
      %v307 = vsel %vm306, %v299, %v303
      %v308 = vsel %vm306, %v301, %v305
      %v309 = vsel %vm306, %v303, %v299
      %v310 = vsel %vm306, %v305, %v301
      %v311 = vld [vmem:[%s1] sm:$0x22]
      %v312 = vunpack.c.l.bf16 %v311
      %v313 = vunpack.c.h.bf16 %v311
      %v314 = vlaneseq
      %v315 = vshrl.u32 %v314, 7
      %v316 = vsub.s32 2, %v315
      %v317 = vrot.slane %v312, %v316
      %v318 = vlaneseq
      %v319 = vshrl.u32 %v318, 7
      %v320 = vsub.s32 2, %v319
      %v321 = vrot.slane %v313, %v320
      %v322 = vmul.f32 %v309, %v317
      %v323 = vmul.f32 %v307, %v321
      %v324 = vmul.f32 %v310, %v317
      %v325 = vmul.f32 %v308, %v321
      %v326 = vpack.c.bf16 %v324, %v322
      %v327 = vpack.c.bf16 %v325, %v323
      %328 = vst [vmem:[#allocation2 + $0x20] sm:$0xff] %v326
      %329 = vst [vmem:[#allocation2 + $0x28] sm:$0xff] %v327
      %330 = vrot.lane.b32.xlu0 %v228, 65
      %v331 = vpop.permute.xlu0 %330
      %332 = vrot.lane.b32.xlu0 %v230, 65
      %v333 = vpop.permute.xlu0 %332
      %334 = vrot.lane.b32.xlu0 %v229, 65
      %v335 = vpop.permute.xlu0 %334
      %336 = vrot.lane.b32.xlu0 %v231, 65
      %v337 = vpop.permute.xlu0 %336
      %vm338 = vcmp.lt.s32.totalorder %v241, 65
      %v339 = vsel %vm338, %v331, %v335
      %v340 = vsel %vm338, %v333, %v337
      %v341 = vsel %vm338, %v335, %v331
      %v342 = vsel %vm338, %v337, %v333
      %v343 = vld [vmem:[%s1] sm:$0x22]
      %v344 = vunpack.c.l.bf16 %v343
      %v345 = vunpack.c.h.bf16 %v343
      %v346 = vlaneseq
      %v347 = vshrl.u32 %v346, 7
      %v348 = vsub.s32 3, %v347
      %v349 = vrot.slane %v344, %v348
      %v350 = vlaneseq
      %v351 = vshrl.u32 %v350, 7
      %v352 = vsub.s32 3, %v351
      %v353 = vrot.slane %v345, %v352
      %v354 = vmul.f32 %v341, %v349
      %v355 = vmul.f32 %v339, %v353
      %v356 = vmul.f32 %v342, %v349
      %v357 = vmul.f32 %v340, %v353
      %v358 = vpack.c.bf16 %v356, %v354
      %v359 = vpack.c.bf16 %v357, %v355
      %360 = vst [vmem:[#allocation2 + $0x30] sm:$0xff] %v358
      %361 = vst [vmem:[#allocation2 + $0x38] sm:$0xff] %v359
      %362 = vrot.lane.b32.xlu0 %v228, 64
      %v363 = vpop.permute.xlu0 %362
      %364 = vrot.lane.b32.xlu0 %v230, 64
      %v365 = vpop.permute.xlu0 %364
      %366 = vrot.lane.b32.xlu0 %v229, 64
      %v367 = vpop.permute.xlu0 %366
      %368 = vrot.lane.b32.xlu0 %v231, 64
      %v369 = vpop.permute.xlu0 %368
      %vm370 = vcmp.lt.s32.totalorder %v241, 64
      %v371 = vsel %vm370, %v363, %v367
      %v372 = vsel %vm370, %v365, %v369
      %v373 = vsel %vm370, %v367, %v363
      %v374 = vsel %vm370, %v369, %v365
      %v375 = vld [vmem:[%s1] sm:$0x44]
      %v376 = vunpack.c.l.bf16 %v375
      %v377 = vunpack.c.h.bf16 %v375
      %v378 = vlaneseq
      %v379 = vshrl.u32 %v378, 7
      %v380 = vsub.s32 4, %v379
      %v381 = vrot.slane %v376, %v380
      %v382 = vlaneseq
      %v383 = vshrl.u32 %v382, 7
      %v384 = vsub.s32 4, %v383
      %v385 = vrot.slane %v377, %v384
      %v386 = vmul.f32 %v373, %v381
      %v387 = vmul.f32 %v371, %v385
      %v388 = vmul.f32 %v374, %v381
      %v389 = vmul.f32 %v372, %v385
      %v390 = vpack.c.bf16 %v388, %v386
      %v391 = vpack.c.bf16 %v389, %v387
      %392 = vst [vmem:[#allocation2 + $0x40] sm:$0xff] %v390
      %393 = vst [vmem:[#allocation2 + $0x48] sm:$0xff] %v391
      %394 = vrot.lane.b32.xlu0 %v228, 63
      %v395 = vpop.permute.xlu0 %394
      %396 = vrot.lane.b32.xlu0 %v230, 63
      %v397 = vpop.permute.xlu0 %396
      %398 = vrot.lane.b32.xlu0 %v229, 63
      %v399 = vpop.permute.xlu0 %398
      %400 = vrot.lane.b32.xlu0 %v231, 63
      %v401 = vpop.permute.xlu0 %400
      %vm402 = vcmp.lt.s32.totalorder %v241, 63
      %v403 = vsel %vm402, %v395, %v399
      %v404 = vsel %vm402, %v397, %v401
      %v405 = vsel %vm402, %v399, %v395
      %v406 = vsel %vm402, %v401, %v397
      %v407 = vld [vmem:[%s1] sm:$0x44]
      %v408 = vunpack.c.l.bf16 %v407
      %v409 = vunpack.c.h.bf16 %v407
      %v410 = vlaneseq
      %v411 = vshrl.u32 %v410, 7
      %v412 = vsub.s32 5, %v411
      %v413 = vrot.slane %v408, %v412
      %v414 = vlaneseq
      %v415 = vshrl.u32 %v414, 7
      %v416 = vsub.s32 5, %v415
      %v417 = vrot.slane %v409, %v416
      %v418 = vmul.f32 %v405, %v413
      %v419 = vmul.f32 %v403, %v417
      %v420 = vmul.f32 %v406, %v413
      %v421 = vmul.f32 %v404, %v417
      %v422 = vpack.c.bf16 %v420, %v418
      %v423 = vpack.c.bf16 %v421, %v419
      %424 = vst [vmem:[#allocation2 + $0x50] sm:$0xff] %v422
      %425 = vst [vmem:[#allocation2 + $0x58] sm:$0xff] %v423
      %426 = vrot.lane.b32.xlu0 %v228, 57
      %v427 = vpop.permute.xlu0 %426
      %428 = vrot.lane.b32.xlu0 %v230, 57
      %v429 = vpop.permute.xlu0 %428
      %430 = vrot.lane.b32.xlu0 %v229, 57
      %v431 = vpop.permute.xlu0 %430
      %432 = vrot.lane.b32.xlu0 %v231, 57
      %v433 = vpop.permute.xlu0 %432
      %vm434 = vcmp.lt.s32.totalorder %v241, 57
      %v435 = vsel %vm434, %v427, %v431
      %v436 = vsel %vm434, %v429, %v433
      %v437 = vsel %vm434, %v431, %v427
      %v438 = vsel %vm434, %v433, %v429
      %v439 = vld [vmem:[%s1] sm:$0x88]
      %v440 = vunpack.c.l.bf16 %v439
      %v441 = vunpack.c.h.bf16 %v439
      %v442 = vlaneseq
      %v443 = vshrl.u32 %v442, 7
      %v444 = vsub.s32 6, %v443
      %v445 = vrot.slane %v440, %v444
      %v446 = vlaneseq
      %v447 = vshrl.u32 %v446, 7
      %v448 = vsub.s32 6, %v447
      %v449 = vrot.slane %v441, %v448
      %v450 = vmul.f32 %v437, %v445
      %v451 = vmul.f32 %v435, %v449
      %v452 = vmul.f32 %v438, %v445
      %v453 = vmul.f32 %v436, %v449
      %v454 = vpack.c.bf16 %v452, %v450
      %v455 = vpack.c.bf16 %v453, %v451
      %456 = vst [vmem:[#allocation2 + $0x60] sm:$0xff] %v454
      %457 = vst [vmem:[#allocation2 + $0x68] sm:$0xff] %v455
      %458 = vrot.lane.b32.xlu0 %v228, 56
      %v459 = vpop.permute.xlu0 %458
      %460 = vrot.lane.b32.xlu0 %v230, 56
      %v461 = vpop.permute.xlu0 %460
      %462 = vrot.lane.b32.xlu0 %v229, 56
      %v463 = vpop.permute.xlu0 %462
      %464 = vrot.lane.b32.xlu0 %v231, 56
      %v465 = vpop.permute.xlu0 %464
      %vm466 = vcmp.lt.s32.totalorder %v241, 56
      %v467 = vsel %vm466, %v459, %v463
      %v468 = vsel %vm466, %v461, %v465
      %v469 = vsel %vm466, %v463, %v459
      %v470 = vsel %vm466, %v465, %v461
      %v471 = vld [vmem:[%s1] sm:$0x88]
      %v472 = vunpack.c.l.bf16 %v471
      %v473 = vunpack.c.h.bf16 %v471
      %v474 = vlaneseq
      %v475 = vshrl.u32 %v474, 7
      %v476 = vsub.s32 7, %v475
      %v477 = vrot.slane %v472, %v476
      %v478 = vlaneseq
      %v479 = vshrl.u32 %v478, 7
      %v480 = vsub.s32 7, %v479
      %v481 = vrot.slane %v473, %v480
      %v482 = vmul.f32 %v469, %v477
      %v483 = vmul.f32 %v467, %v481
      %v484 = vmul.f32 %v470, %v477
      %v485 = vmul.f32 %v468, %v481
      %v486 = vpack.c.bf16 %v484, %v482
      %v487 = vpack.c.bf16 %v485, %v483
      %488 = vst [vmem:[#allocation2 + $0x70] sm:$0xff] %v486
      %489 = vst [vmem:[#allocation2 + $0x78] sm:$0xff] %v487
      %490 = vrot.lane.b32.xlu0 %v228, 55
      %v491 = vpop.permute.xlu0 %490
      %492 = vrot.lane.b32.xlu0 %v230, 55
      %v493 = vpop.permute.xlu0 %492
      %494 = vrot.lane.b32.xlu0 %v229, 55
      %v495 = vpop.permute.xlu0 %494
      %496 = vrot.lane.b32.xlu0 %v231, 55
      %v497 = vpop.permute.xlu0 %496
      %vm498 = vcmp.lt.s32.totalorder %v241, 55
      %v499 = vsel %vm498, %v491, %v495
      %v500 = vsel %vm498, %v493, %v497
      %v501 = vsel %vm498, %v495, %v491
      %v502 = vsel %vm498, %v497, %v493
      %v503 = vld [vmem:[%s1 + $0x8] sm:$0x11]
      %v504 = vunpack.c.l.bf16 %v503
      %v505 = vunpack.c.h.bf16 %v503
      %v506 = vlaneseq
      %v507 = vshrl.u32 %v506, 7
      %v508 = vsub.s32 0, %v507
      %v509 = vrot.slane %v504, %v508
      %v510 = vlaneseq
      %v511 = vshrl.u32 %v510, 7
      %v512 = vsub.s32 0, %v511
      %v513 = vrot.slane %v505, %v512
      %v514 = vmul.f32 %v501, %v509
      %v515 = vmul.f32 %v499, %v513
      %v516 = vmul.f32 %v502, %v509
      %v517 = vmul.f32 %v500, %v513
      %v518 = vpack.c.bf16 %v516, %v514
      %v519 = vpack.c.bf16 %v517, %v515
      %520 = vst [vmem:[#allocation2 + $0x80] sm:$0xff] %v518
      %521 = vst [vmem:[#allocation2 + $0x88] sm:$0xff] %v519
      %522 = vrot.lane.b32.xlu0 %v228, 9
      %v523 = vpop.permute.xlu0 %522
      %524 = vrot.lane.b32.xlu0 %v230, 9
      %v525 = vpop.permute.xlu0 %524
      %526 = vrot.lane.b32.xlu0 %v229, 9
      %v527 = vpop.permute.xlu0 %526
      %528 = vrot.lane.b32.xlu0 %v231, 9
      %v529 = vpop.permute.xlu0 %528
      %vm530 = vcmp.lt.s32.totalorder %v241, 9
      %v531 = vsel %vm530, %v523, %v527
      %v532 = vsel %vm530, %v525, %v529
      %v533 = vsel %vm530, %v527, %v523
      %v534 = vsel %vm530, %v529, %v525
      %v535 = vld [vmem:[%s1 + $0x8] sm:$0x11]
      %v536 = vunpack.c.l.bf16 %v535
      %v537 = vunpack.c.h.bf16 %v535
      %v538 = vlaneseq
      %v539 = vshrl.u32 %v538, 7
      %v540 = vsub.s32 1, %v539
      %v541 = vrot.slane %v536, %v540
      %v542 = vlaneseq
      %v543 = vshrl.u32 %v542, 7
      %v544 = vsub.s32 1, %v543
      %v545 = vrot.slane %v537, %v544
      %v546 = vmul.f32 %v533, %v541
      %v547 = vmul.f32 %v531, %v545
      %v548 = vmul.f32 %v534, %v541
      %v549 = vmul.f32 %v532, %v545
      %v550 = vpack.c.bf16 %v548, %v546
      %v551 = vpack.c.bf16 %v549, %v547
      %552 = vst [vmem:[%s213] sm:$0xff] %v550
      %553 = vst [vmem:[%s213 + $0x8] sm:$0xff] %v551
      %554 = vrot.lane.b32.xlu0 %v228, 8
      %v555 = vpop.permute.xlu0 %554
      %556 = vrot.lane.b32.xlu0 %v230, 8
      %v557 = vpop.permute.xlu0 %556
      %558 = vrot.lane.b32.xlu0 %v229, 8
      %v559 = vpop.permute.xlu0 %558
      %560 = vrot.lane.b32.xlu0 %v231, 8
      %v561 = vpop.permute.xlu0 %560
      %vm562 = vcmp.lt.s32.totalorder %v241, 8
      %v563 = vsel %vm562, %v555, %v559
      %v564 = vsel %vm562, %v557, %v561
      %v565 = vsel %vm562, %v559, %v555
      %v566 = vsel %vm562, %v561, %v557
      %v567 = vld [vmem:[%s1 + $0x8] sm:$0x22]
      %v568 = vunpack.c.l.bf16 %v567
      %v569 = vunpack.c.h.bf16 %v567
      %v570 = vlaneseq
      %v571 = vshrl.u32 %v570, 7
      %v572 = vsub.s32 2, %v571
      %v573 = vrot.slane %v568, %v572
      %v574 = vlaneseq
      %v575 = vshrl.u32 %v574, 7
      %v576 = vsub.s32 2, %v575
      %v577 = vrot.slane %v569, %v576
      %v578 = vmul.f32 %v565, %v573
      %v579 = vmul.f32 %v563, %v577
      %v580 = vmul.f32 %v566, %v573
      %v581 = vmul.f32 %v564, %v577
      %v582 = vpack.c.bf16 %v580, %v578
      %v583 = vpack.c.bf16 %v581, %v579
      %584 = vst [vmem:[%s213 + $0x10] sm:$0xff] %v582
      %585 = vst [vmem:[%s213 + $0x18] sm:$0xff] %v583
      %586 = vrot.lane.b32.xlu0 %v228, 7
      %v587 = vpop.permute.xlu0 %586
      %588 = vrot.lane.b32.xlu0 %v230, 7
      %v589 = vpop.permute.xlu0 %588
      %590 = vrot.lane.b32.xlu0 %v229, 7
      %v591 = vpop.permute.xlu0 %590
      %592 = vrot.lane.b32.xlu0 %v231, 7
      %v593 = vpop.permute.xlu0 %592
      %vm594 = vcmp.lt.s32.totalorder %v241, 7
      %v595 = vsel %vm594, %v587, %v591
      %v596 = vsel %vm594, %v589, %v593
      %v597 = vsel %vm594, %v591, %v587
      %v598 = vsel %vm594, %v593, %v589
      %v599 = vld [vmem:[%s1 + $0x8] sm:$0x22]
      %v600 = vunpack.c.l.bf16 %v599
      %v601 = vunpack.c.h.bf16 %v599
      %v602 = vlaneseq
      %v603 = vshrl.u32 %v602, 7
      %v604 = vsub.s32 3, %v603
      %v605 = vrot.slane %v600, %v604
      %v606 = vlaneseq
      %v607 = vshrl.u32 %v606, 7
      %v608 = vsub.s32 3, %v607
      %v609 = vrot.slane %v601, %v608
      %v610 = vmul.f32 %v597, %v605
      %v611 = vmul.f32 %v595, %v609
      %v612 = vmul.f32 %v598, %v605
      %v613 = vmul.f32 %v596, %v609
      %v614 = vpack.c.bf16 %v612, %v610
      %v615 = vpack.c.bf16 %v613, %v611
      %616 = vst [vmem:[%s213 + $0x20] sm:$0xff] %v614
      %617 = vst [vmem:[%s213 + $0x28] sm:$0xff] %v615
      %618 = vrot.lane.b32.xlu0 %v228, 1
      %v619 = vpop.permute.xlu0 %618
      %620 = vrot.lane.b32.xlu0 %v230, 1
      %v621 = vpop.permute.xlu0 %620
      %622 = vrot.lane.b32.xlu0 %v229, 1
      %v623 = vpop.permute.xlu0 %622
      %624 = vrot.lane.b32.xlu0 %v231, 1
      %v625 = vpop.permute.xlu0 %624
      %vm626 = vcmp.lt.s32.totalorder %v241, 1
      %v627 = vsel %vm626, %v619, %v623
      %v628 = vsel %vm626, %v621, %v625
      %v629 = vsel %vm626, %v623, %v619
      %v630 = vsel %vm626, %v625, %v621
      %v631 = vld [vmem:[%s1 + $0x8] sm:$0x44]
      %v632 = vunpack.c.l.bf16 %v631
      %v633 = vunpack.c.h.bf16 %v631
      %v634 = vlaneseq
      %v635 = vshrl.u32 %v634, 7
      %v636 = vsub.s32 4, %v635
      %v637 = vrot.slane %v632, %v636
      %v638 = vlaneseq
      %v639 = vshrl.u32 %v638, 7
      %v640 = vsub.s32 4, %v639
      %v641 = vrot.slane %v633, %v640
      %v642 = vmul.f32 %v629, %v637
      %v643 = vmul.f32 %v627, %v641
      %v644 = vmul.f32 %v630, %v637
      %v645 = vmul.f32 %v628, %v641
      %v646 = vpack.c.bf16 %v644, %v642
      %v647 = vpack.c.bf16 %v645, %v643
      %648 = vst [vmem:[%s213 + $0x30] sm:$0xff] %v646
      %649 = vst [vmem:[%s213 + $0x38] sm:$0xff] %v647
      %v650 = vpack.c.bf16 %v230, %v228
      %v651 = vpack.c.bf16 %v231, %v229
      %652 = vst [vmem:[%s213 + $0x40] sm:$0xff] %v650
      %653 = vst [vmem:[%s213 + $0x48] sm:$0xff] %v651
      %654 = vrot.lane.b32.xlu0 %v228, 127
      %v655 = vpop.permute.xlu0 %654
      %656 = vrot.lane.b32.xlu0 %v230, 127
      %v657 = vpop.permute.xlu0 %656
      %658 = vrot.lane.b32.xlu0 %v229, 127
      %v659 = vpop.permute.xlu0 %658
      %660 = vrot.lane.b32.xlu0 %v231, 127
      %v661 = vpop.permute.xlu0 %660
      %vm662 = vcmp.lt.s32.totalorder %v241, 127
      %v663 = vsel %vm662, %v655, %v659
      %v664 = vsel %vm662, %v657, %v661
      %v665 = vsel %vm662, %v659, %v655
      %v666 = vsel %vm662, %v661, %v657
      %v667 = vld [vmem:[%s1 + $0x8] sm:$0x88]
      %v668 = vunpack.c.l.bf16 %v667
      %v669 = vunpack.c.h.bf16 %v667
      %v670 = vlaneseq
      %v671 = vshrl.u32 %v670, 7
      %v672 = vsub.s32 6, %v671
      %v673 = vrot.slane %v668, %v672
      %v674 = vlaneseq
      %v675 = vshrl.u32 %v674, 7
      %v676 = vsub.s32 6, %v675
      %v677 = vrot.slane %v669, %v676
      %v678 = vmul.f32 %v663, %v673
      %v679 = vmul.f32 %v665, %v677
      %v680 = vmul.f32 %v664, %v673
      %v681 = vmul.f32 %v666, %v677
      %v682 = vpack.c.bf16 %v680, %v678
      %v683 = vpack.c.bf16 %v681, %v679
      %684 = vst [vmem:[%s213 + $0x50] sm:$0xff] %v682
      %685 = vst [vmem:[%s213 + $0x58] sm:$0xff] %v683
      %686 = vrot.lane.b32.xlu0 %v228, 121
      %v687 = vpop.permute.xlu0 %686
      %688 = vrot.lane.b32.xlu0 %v230, 121
      %v689 = vpop.permute.xlu0 %688
      %690 = vrot.lane.b32.xlu0 %v229, 121
      %v691 = vpop.permute.xlu0 %690
      %692 = vrot.lane.b32.xlu0 %v231, 121
      %v693 = vpop.permute.xlu0 %692
      %vm694 = vcmp.lt.s32.totalorder %v241, 121
      %v695 = vsel %vm694, %v687, %v691
      %v696 = vsel %vm694, %v689, %v693
      %v697 = vsel %vm694, %v691, %v687
      %v698 = vsel %vm694, %v693, %v689
      %v699 = vld [vmem:[%s1 + $0x8] sm:$0x88]
      %v700 = vunpack.c.l.bf16 %v699
      %v701 = vunpack.c.h.bf16 %v699
      %v702 = vlaneseq
      %v703 = vshrl.u32 %v702, 7
      %v704 = vsub.s32 7, %v703
      %v705 = vrot.slane %v700, %v704
      %v706 = vlaneseq
      %v707 = vshrl.u32 %v706, 7
      %v708 = vsub.s32 7, %v707
      %v709 = vrot.slane %v701, %v708
      %v710 = vmul.f32 %v695, %v705
      %v711 = vmul.f32 %v697, %v709
      %v712 = vmul.f32 %v696, %v705
      %v713 = vmul.f32 %v698, %v709
      %v714 = vpack.c.bf16 %v712, %v710
      %v715 = vpack.c.bf16 %v713, %v711
      %716 = vst [vmem:[%s213 + $0x60] sm:$0xff] %v714
      %717 = vst [vmem:[%s213 + $0x68] sm:$0xff] %v715
      %718 = vrot.lane.b32.xlu0 %v228, 120
      %v719 = vpop.permute.xlu0 %718
      %720 = vrot.lane.b32.xlu0 %v230, 120
      %v721 = vpop.permute.xlu0 %720
      %722 = vrot.lane.b32.xlu0 %v229, 120
      %v723 = vpop.permute.xlu0 %722
      %724 = vrot.lane.b32.xlu0 %v231, 120
      %v725 = vpop.permute.xlu0 %724
      %vm726 = vcmp.lt.s32.totalorder %v241, 120
      %v727 = vsel %vm726, %v719, %v723
      %v728 = vsel %vm726, %v721, %v725
      %v729 = vsel %vm726, %v723, %v719
      %v730 = vsel %vm726, %v725, %v721
      %v731 = vld [vmem:[%s1 + $0x10] sm:$0x11]
      %v732 = vunpack.c.l.bf16 %v731
      %v733 = vunpack.c.h.bf16 %v731
      %v734 = vlaneseq
      %v735 = vshrl.u32 %v734, 7
      %v736 = vsub.s32 0, %v735
      %v737 = vrot.slane %v732, %v736
      %v738 = vlaneseq
      %v739 = vshrl.u32 %v738, 7
      %v740 = vsub.s32 0, %v739
      %v741 = vrot.slane %v733, %v740
      %v742 = vmul.f32 %v727, %v737
      %v743 = vmul.f32 %v729, %v741
      %v744 = vmul.f32 %v728, %v737
      %v745 = vmul.f32 %v730, %v741
      %v746 = vpack.c.bf16 %v744, %v742
      %v747 = vpack.c.bf16 %v745, %v743
      %748 = vst [vmem:[%s213 + $0x70] sm:$0xff] %v746
      %749 = vst [vmem:[%s213 + $0x78] sm:$0xff] %v747
      %750 = vrot.lane.b32.xlu0 %v228, 119
      %v751 = vpop.permute.xlu0 %750
      %752 = vrot.lane.b32.xlu0 %v230, 119
      %v753 = vpop.permute.xlu0 %752
      %754 = vrot.lane.b32.xlu0 %v229, 119
      %v755 = vpop.permute.xlu0 %754
      %756 = vrot.lane.b32.xlu0 %v231, 119
      %v757 = vpop.permute.xlu0 %756
      %vm758 = vcmp.lt.s32.totalorder %v241, 119
      %v759 = vsel %vm758, %v751, %v755
      %v760 = vsel %vm758, %v753, %v757
      %v761 = vsel %vm758, %v755, %v751
      %v762 = vsel %vm758, %v757, %v753
      %v763 = vld [vmem:[%s1 + $0x10] sm:$0x11]
      %v764 = vunpack.c.l.bf16 %v763
      %v765 = vunpack.c.h.bf16 %v763
      %v766 = vlaneseq
      %v767 = vshrl.u32 %v766, 7
      %v768 = vsub.s32 1, %v767
      %v769 = vrot.slane %v764, %v768
      %v770 = vlaneseq
      %v771 = vshrl.u32 %v770, 7
      %v772 = vsub.s32 1, %v771
      %v773 = vrot.slane %v765, %v772
      %v774 = vmul.f32 %v759, %v769
      %v775 = vmul.f32 %v761, %v773
      %v776 = vmul.f32 %v760, %v769
      %v777 = vmul.f32 %v762, %v773
      %v778 = vpack.c.bf16 %v776, %v774
      %v779 = vpack.c.bf16 %v777, %v775
      %780 = vst [vmem:[%s213 + $0x80] sm:$0xff] %v778
      %781 = vst [vmem:[%s213 + $0x88] sm:$0xff] %v779
      %v782 = vld [vmem:[%s2] sm:$0xff]
      %v783 = vld [vmem:[%s2 + $0x8] sm:$0xff]
      %v784 = vld [vmem:[#allocation2] sm:$0xff]
      %v785 = vld [vmem:[#allocation2 + $0x8] sm:$0xff]
      %v786 = vld [vmem:[#allocation2 + $0x10] sm:$0xff]
      %v787 = vld [vmem:[#allocation2 + $0x18] sm:$0xff]
      %v788 = vld [vmem:[#allocation2 + $0x20] sm:$0xff]
      %v789 = vld [vmem:[#allocation2 + $0x28] sm:$0xff]
      %v790 = vld [vmem:[#allocation2 + $0x30] sm:$0xff]
      %v791 = vld [vmem:[#allocation2 + $0x38] sm:$0xff]
      %v792 = vld [vmem:[#allocation2 + $0x40] sm:$0xff]
      %v793 = vld [vmem:[#allocation2 + $0x48] sm:$0xff]
      %v794 = vld [vmem:[#allocation2 + $0x50] sm:$0xff]
      %v795 = vld [vmem:[#allocation2 + $0x58] sm:$0xff]
      %v796 = vld [vmem:[#allocation2 + $0x60] sm:$0xff]
      %v797 = vld [vmem:[#allocation2 + $0x68] sm:$0xff]
      %v798 = vld [vmem:[#allocation2 + $0x70] sm:$0xff]
      %v799 = vld [vmem:[#allocation2 + $0x78] sm:$0xff]
      %v800 = vld [vmem:[#allocation2 + $0x80] sm:$0xff]
      %v801 = vld [vmem:[#allocation2 + $0x88] sm:$0xff]
      %v802 = vld [vmem:[#allocation2 + $0x90] sm:$0xff]
      %v803 = vld [vmem:[#allocation2 + $0x98] sm:$0xff]
      %v804 = vld [vmem:[#allocation2 + $0xa0] sm:$0xff]
      %v805 = vld [vmem:[#allocation2 + $0xa8] sm:$0xff]
      %v806 = vld [vmem:[#allocation2 + $0xb0] sm:$0xff]
      %v807 = vld [vmem:[#allocation2 + $0xb8] sm:$0xff]
      %v808 = vld [vmem:[#allocation2 + $0xc0] sm:$0xff]
      %v809 = vld [vmem:[#allocation2 + $0xc8] sm:$0xff]
      %v810 = vld [vmem:[#allocation2 + $0xd0] sm:$0xff]
      %v811 = vld [vmem:[#allocation2 + $0xd8] sm:$0xff]
      %v812 = vld [vmem:[#allocation2 + $0xe0] sm:$0xff]
      %v813 = vld [vmem:[#allocation2 + $0xe8] sm:$0xff]
      %v814 = vld [vmem:[#allocation2 + $0xf0] sm:$0xff]
      %v815 = vld [vmem:[#allocation2 + $0xf8] sm:$0xff]
      %v816 = vld [vmem:[%s1 + $0x10] sm:$0x22]
      %v817 = vunpack.c.l.bf16 %v816
      %v818 = vunpack.c.h.bf16 %v816
      %v819 = vlaneseq
      %v820 = vshrl.u32 %v819, 7
      %v821 = vsub.s32 2, %v820
      %v822 = vrot.slane %v817, %v821
      %v823 = vlaneseq
      %v824 = vshrl.u32 %v823, 7
      %v825 = vsub.s32 2, %v824
      %v826 = vrot.slane %v818, %v825
      %v827 = vmul.f32 %v243, %v822
      %v828 = vmul.f32 %v245, %v826
      %v829 = vmul.f32 %v244, %v822
      %v830 = vmul.f32 %v246, %v826
      %v831 = vpack.c.bf16 %v829, %v827
      %v832 = vpack.c.bf16 %v830, %v828
      %833 = vst [vmem:[#allocation2] sm:$0xff] %v831
      %834 = vst [vmem:[#allocation2 + $0x8] sm:$0xff] %v832
      %v835 = vld [vmem:[%s1 + $0x10] sm:$0x22]
      %v836 = vunpack.c.l.bf16 %v835
      %v837 = vunpack.c.h.bf16 %v835
      %v838 = vlaneseq
      %v839 = vshrl.u32 %v838, 7
      %v840 = vsub.s32 3, %v839
      %v841 = vrot.slane %v836, %v840
      %v842 = vlaneseq
      %v843 = vshrl.u32 %v842, 7
      %v844 = vsub.s32 3, %v843
      %v845 = vrot.slane %v837, %v844
      %v846 = vmul.f32 %v275, %v841
      %v847 = vmul.f32 %v277, %v845
      %v848 = vmul.f32 %v276, %v841
      %v849 = vmul.f32 %v278, %v845
      %v850 = vpack.c.bf16 %v848, %v846
      %v851 = vpack.c.bf16 %v849, %v847
      %852 = vst [vmem:[#allocation2 + $0x10] sm:$0xff] %v850
      %853 = vst [vmem:[#allocation2 + $0x18] sm:$0xff] %v851
      %v854 = vld [vmem:[%s1 + $0x10] sm:$0x44]
      %v855 = vunpack.c.l.bf16 %v854
      %v856 = vunpack.c.h.bf16 %v854
      %v857 = vlaneseq
      %v858 = vshrl.u32 %v857, 7
      %v859 = vsub.s32 4, %v858
      %v860 = vrot.slane %v855, %v859
      %v861 = vlaneseq
      %v862 = vshrl.u32 %v861, 7
      %v863 = vsub.s32 4, %v862
      %v864 = vrot.slane %v856, %v863
      %v865 = vmul.f32 %v307, %v860
      %v866 = vmul.f32 %v309, %v864
      %v867 = vmul.f32 %v308, %v860
      %v868 = vmul.f32 %v310, %v864
      %v869 = vpack.c.bf16 %v867, %v865
      %v870 = vpack.c.bf16 %v868, %v866
      %871 = vst [vmem:[#allocation2 + $0x20] sm:$0xff] %v869
      %872 = vst [vmem:[#allocation2 + $0x28] sm:$0xff] %v870
      %v873 = vld [vmem:[%s1 + $0x10] sm:$0x44]
      %v874 = vunpack.c.l.bf16 %v873
      %v875 = vunpack.c.h.bf16 %v873
      %v876 = vlaneseq
      %v877 = vshrl.u32 %v876, 7
      %v878 = vsub.s32 5, %v877
      %v879 = vrot.slane %v874, %v878
      %v880 = vlaneseq
      %v881 = vshrl.u32 %v880, 7
      %v882 = vsub.s32 5, %v881
      %v883 = vrot.slane %v875, %v882
      %v884 = vmul.f32 %v339, %v879
      %v885 = vmul.f32 %v341, %v883
      %v886 = vmul.f32 %v340, %v879
      %v887 = vmul.f32 %v342, %v883
      %v888 = vpack.c.bf16 %v886, %v884
      %v889 = vpack.c.bf16 %v887, %v885
      %890 = vst [vmem:[#allocation2 + $0x30] sm:$0xff] %v888
      %891 = vst [vmem:[#allocation2 + $0x38] sm:$0xff] %v889
      %v892 = vld [vmem:[%s1 + $0x10] sm:$0x88]
      %v893 = vunpack.c.l.bf16 %v892
      %v894 = vunpack.c.h.bf16 %v892
      %v895 = vlaneseq
      %v896 = vshrl.u32 %v895, 7
      %v897 = vsub.s32 6, %v896
      %v898 = vrot.slane %v893, %v897
      %v899 = vlaneseq
      %v900 = vshrl.u32 %v899, 7
      %v901 = vsub.s32 6, %v900
      %v902 = vrot.slane %v894, %v901
      %v903 = vmul.f32 %v371, %v898
      %v904 = vmul.f32 %v373, %v902
      %v905 = vmul.f32 %v372, %v898
      %v906 = vmul.f32 %v374, %v902
      %v907 = vpack.c.bf16 %v905, %v903
      %v908 = vpack.c.bf16 %v906, %v904
      %909 = vst [vmem:[#allocation2 + $0x40] sm:$0xff] %v907
      %910 = vst [vmem:[#allocation2 + $0x48] sm:$0xff] %v908
      %v911 = vld [vmem:[%s1 + $0x10] sm:$0x88]
      %v912 = vunpack.c.l.bf16 %v911
      %v913 = vunpack.c.h.bf16 %v911
      %v914 = vlaneseq
      %v915 = vshrl.u32 %v914, 7
      %v916 = vsub.s32 7, %v915
      %v917 = vrot.slane %v912, %v916
      %v918 = vlaneseq
      %v919 = vshrl.u32 %v918, 7
      %v920 = vsub.s32 7, %v919
      %v921 = vrot.slane %v913, %v920
      %v922 = vmul.f32 %v403, %v917
      %v923 = vmul.f32 %v405, %v921
      %v924 = vmul.f32 %v404, %v917
      %v925 = vmul.f32 %v406, %v921
      %v926 = vpack.c.bf16 %v924, %v922
      %v927 = vpack.c.bf16 %v925, %v923
      %928 = vst [vmem:[#allocation2 + $0x50] sm:$0xff] %v926
      %929 = vst [vmem:[#allocation2 + $0x58] sm:$0xff] %v927
      %v930 = vld [vmem:[%s1 + $0x18] sm:$0x11]
      %v931 = vunpack.c.l.bf16 %v930
      %v932 = vunpack.c.h.bf16 %v930
      %v933 = vlaneseq
      %v934 = vshrl.u32 %v933, 7
      %v935 = vsub.s32 0, %v934
      %v936 = vrot.slane %v931, %v935
      %v937 = vlaneseq
      %v938 = vshrl.u32 %v937, 7
      %v939 = vsub.s32 0, %v938
      %v940 = vrot.slane %v932, %v939
      %v941 = vmul.f32 %v435, %v936
      %v942 = vmul.f32 %v437, %v940
      %v943 = vmul.f32 %v436, %v936
      %v944 = vmul.f32 %v438, %v940
      %v945 = vpack.c.bf16 %v943, %v941
      %v946 = vpack.c.bf16 %v944, %v942
      %947 = vst [vmem:[#allocation2 + $0x60] sm:$0xff] %v945
      %948 = vst [vmem:[#allocation2 + $0x68] sm:$0xff] %v946
      %v949 = vld [vmem:[%s1 + $0x18] sm:$0x11]
      %v950 = vunpack.c.l.bf16 %v949
      %v951 = vunpack.c.h.bf16 %v949
      %v952 = vlaneseq
      %v953 = vshrl.u32 %v952, 7
      %v954 = vsub.s32 1, %v953
      %v955 = vrot.slane %v950, %v954
      %v956 = vlaneseq
      %v957 = vshrl.u32 %v956, 7
      %v958 = vsub.s32 1, %v957
      %v959 = vrot.slane %v951, %v958
      %v960 = vmul.f32 %v467, %v955
      %v961 = vmul.f32 %v469, %v959
      %v962 = vmul.f32 %v468, %v955
      %v963 = vmul.f32 %v470, %v959
      %v964 = vpack.c.bf16 %v962, %v960
      %v965 = vpack.c.bf16 %v963, %v961
      %966 = vst [vmem:[#allocation2 + $0x70] sm:$0xff] %v964
      %967 = vst [vmem:[#allocation2 + $0x78] sm:$0xff] %v965
      %v968 = vld [vmem:[%s1 + $0x18] sm:$0x22]
      %v969 = vunpack.c.l.bf16 %v968
      %v970 = vunpack.c.h.bf16 %v968
      %v971 = vlaneseq
      %v972 = vshrl.u32 %v971, 7
      %v973 = vsub.s32 2, %v972
      %v974 = vrot.slane %v969, %v973
      %v975 = vlaneseq
      %v976 = vshrl.u32 %v975, 7
      %v977 = vsub.s32 2, %v976
      %v978 = vrot.slane %v970, %v977
      %v979 = vmul.f32 %v499, %v974
      %v980 = vmul.f32 %v501, %v978
      %v981 = vmul.f32 %v500, %v974
      %v982 = vmul.f32 %v502, %v978
      %v983 = vpack.c.bf16 %v981, %v979
      %v984 = vpack.c.bf16 %v982, %v980
      %985 = vst [vmem:[#allocation2 + $0x80] sm:$0xff] %v983
      %986 = vst [vmem:[#allocation2 + $0x88] sm:$0xff] %v984
      %s987 = scalar_lea.vmem %s2, 16
      %v988 = vld [vmem:[%s987] sm:$0xff]
      %v989 = vld [vmem:[%s987 + $0x8] sm:$0xff]
      %v990 = vld [vmem:[%s213] sm:$0xff]
      %v991 = vld [vmem:[%s213 + $0x8] sm:$0xff]
      %v992 = vld [vmem:[%s213 + $0x10] sm:$0xff]
      %v993 = vld [vmem:[%s213 + $0x18] sm:$0xff]
      %v994 = vld [vmem:[%s213 + $0x20] sm:$0xff]
      %v995 = vld [vmem:[%s213 + $0x28] sm:$0xff]
      %v996 = vld [vmem:[%s213 + $0x30] sm:$0xff]
      %v997 = vld [vmem:[%s213 + $0x38] sm:$0xff]
      %v998 = vld [vmem:[%s213 + $0x40] sm:$0xff]
      %v999 = vld [vmem:[%s213 + $0x48] sm:$0xff]
      %v1000 = vld [vmem:[%s213 + $0x50] sm:$0xff]
      %v1001 = vld [vmem:[%s213 + $0x58] sm:$0xff]
      %v1002 = vld [vmem:[%s213 + $0x60] sm:$0xff]
      %v1003 = vld [vmem:[%s213 + $0x68] sm:$0xff]
      %v1004 = vld [vmem:[%s213 + $0x70] sm:$0xff]
      %v1005 = vld [vmem:[%s213 + $0x78] sm:$0xff]
      %v1006 = vld [vmem:[%s213 + $0x80] sm:$0xff]
      %v1007 = vld [vmem:[%s213 + $0x88] sm:$0xff]
      %v1008 = vld [vmem:[%s213 + $0x90] sm:$0xff]
      %v1009 = vld [vmem:[%s213 + $0x98] sm:$0xff]
      %v1010 = vld [vmem:[%s213 + $0xa0] sm:$0xff]
      %v1011 = vld [vmem:[%s213 + $0xa8] sm:$0xff]
      %v1012 = vld [vmem:[%s213 + $0xb0] sm:$0xff]
      %v1013 = vld [vmem:[%s213 + $0xb8] sm:$0xff]
      %v1014 = vld [vmem:[%s213 + $0xc0] sm:$0xff]
      %v1015 = vld [vmem:[%s213 + $0xc8] sm:$0xff]
      %v1016 = vld [vmem:[%s213 + $0xd0] sm:$0xff]
      %v1017 = vld [vmem:[%s213 + $0xd8] sm:$0xff]
      %v1018 = vld [vmem:[%s213 + $0xe0] sm:$0xff]
      %v1019 = vld [vmem:[%s213 + $0xe8] sm:$0xff]
      %v1020 = vld [vmem:[%s213 + $0xf0] sm:$0xff]
      %v1021 = vld [vmem:[%s213 + $0xf8] sm:$0xff]
      %v1024 = vunpack.c.l.b16 %v988
      %v1025 = vunpack.c.h.b16 %v988
      %v1026 = vunpack.c.l.b16 %v989
      %v1027 = vunpack.c.h.b16 %v989
      %v1028 = vpack.c.b16 %v1026, %v1024
      %v1029 = vpack.c.b16 %v1027, %v1025
      %1032 = vmatprep.subr.bf16.mxu0 %v991
      %1033 = vmatpush1.bf16.msra.mxu0 %v990
      %1034 = vmatprep.subr.bf16.mxu0 %v993
      %1035 = vmatpush1.bf16.msra.mxu0 %v992
      %1036 = vmatprep.subr.bf16.mxu0 %v995
      %1037 = vmatpush1.bf16.msra.mxu0 %v994
      %1038 = vmatprep.subr.bf16.mxu0 %v997
      %1039 = vmatpush1.bf16.msra.mxu0 %v996
      %1040 = vmatprep.subr.bf16.mxu0 %v999
      %1041 = vmatpush1.bf16.msra.mxu0 %v998
      %1042 = vmatprep.subr.bf16.mxu0 %v1001
      %1043 = vmatpush1.bf16.msra.mxu0 %v1000
      %1044 = vmatprep.subr.bf16.mxu0 %v1003
      %1045 = vmatpush1.bf16.msra.mxu0 %v1002
      %1046 = vmatprep.subr.bf16.mxu0 %v1005
      %1047 = vmatpush1.bf16.msra.mxu0 %v1004
      %1048 = vmatprep.subr.bf16.mxu0 %v1007
      %1049 = vmatpush1.bf16.msra.mxu0 %v1006
      %1050 = vmatprep.subr.bf16.mxu0 %v1009
      %1051 = vmatpush1.bf16.msra.mxu0 %v1008
      %1052 = vmatprep.subr.bf16.mxu0 %v1011
      %1053 = vmatpush1.bf16.msra.mxu0 %v1010
      %1054 = vmatprep.subr.bf16.mxu0 %v1013
      %1055 = vmatpush1.bf16.msra.mxu0 %v1012
      %1056 = vmatprep.subr.bf16.mxu0 %v1015
      %1057 = vmatpush1.bf16.msra.mxu0 %v1014
      %1058 = vmatprep.subr.bf16.mxu0 %v1017
      %1059 = vmatpush1.bf16.msra.mxu0 %v1016
      %1060 = vmatprep.subr.bf16.mxu0 %v1019
      %1061 = vmatpush1.bf16.msra.mxu0 %v1018
      %1062 = vmatprep.subr.bf16.mxu0 %v1021
      %1063 = vmatpush1.bf16.msra.mxu0 %v1020
      %1064 = vmatprep.mubr.bf16.mxu0 %v1029
      %1065 = vmatmul.mubr.bf16.gmra.mrb[0].mxu0 %v1028
      %v1066 = vpop.f32.mrb[0].mxu0
      %v1067 = vadd.f32 0.0, %v1066
      %v1068 = vpop.f32.mrb[0].mxu0
      %v1069 = vadd.f32 0.0, %v1068
      %v1070 = vpop.f32.mrb[0].mxu0
      %v1071 = vadd.f32 0.0, %v1070
      %v1072 = vpop.f32.mrb[0].mxu0
      %v1073 = vadd.f32 0.0, %v1072
      %1074 = vdwg.mxu0
      %v1077 = vunpack.c.l.b16 %v782
      %v1078 = vunpack.c.h.b16 %v782
      %v1079 = vunpack.c.l.b16 %v783
      %v1080 = vunpack.c.h.b16 %v783
      %v1081 = vpack.c.b16 %v1079, %v1077
      %v1082 = vpack.c.b16 %v1080, %v1078
      %1085 = vmatprep.subr.bf16.mxu0 %v785
      %1086 = vmatpush1.bf16.msra.mxu0 %v784
      %1087 = vmatprep.subr.bf16.mxu0 %v787
      %1088 = vmatpush1.bf16.msra.mxu0 %v786
      %1089 = vmatprep.subr.bf16.mxu0 %v789
      %1090 = vmatpush1.bf16.msra.mxu0 %v788
      %1091 = vmatprep.subr.bf16.mxu0 %v791
      %1092 = vmatpush1.bf16.msra.mxu0 %v790
      %1093 = vmatprep.subr.bf16.mxu0 %v793
      %1094 = vmatpush1.bf16.msra.mxu0 %v792
      %1095 = vmatprep.subr.bf16.mxu0 %v795
      %1096 = vmatpush1.bf16.msra.mxu0 %v794
      %1097 = vmatprep.subr.bf16.mxu0 %v797
      %1098 = vmatpush1.bf16.msra.mxu0 %v796
      %1099 = vmatprep.subr.bf16.mxu0 %v799
      %1100 = vmatpush1.bf16.msra.mxu0 %v798
      %1101 = vmatprep.subr.bf16.mxu0 %v801
      %1102 = vmatpush1.bf16.msra.mxu0 %v800
      %1103 = vmatprep.subr.bf16.mxu0 %v803
      %1104 = vmatpush1.bf16.msra.mxu0 %v802
      %1105 = vmatprep.subr.bf16.mxu0 %v805
      %1106 = vmatpush1.bf16.msra.mxu0 %v804
      %1107 = vmatprep.subr.bf16.mxu0 %v807
      %1108 = vmatpush1.bf16.msra.mxu0 %v806
      %1109 = vmatprep.subr.bf16.mxu0 %v809
      %1110 = vmatpush1.bf16.msra.mxu0 %v808
      %1111 = vmatprep.subr.bf16.mxu0 %v811
      %1112 = vmatpush1.bf16.msra.mxu0 %v810
      %1113 = vmatprep.subr.bf16.mxu0 %v813
      %1114 = vmatpush1.bf16.msra.mxu0 %v812
      %1115 = vmatprep.subr.bf16.mxu0 %v815
      %1116 = vmatpush1.bf16.msra.mxu0 %v814
      %1117 = vmatprep.mubr.bf16.mxu0 %v1082
      %1118 = vmatmul.mubr.bf16.gmra.mrb[0].mxu0 %v1081
      %v1119 = vpop.f32.mrb[0].mxu0
      %v1120 = vadd.f32 %v1067, %v1119
      %v1121 = vpop.f32.mrb[0].mxu0
      %v1122 = vadd.f32 %v1069, %v1121
      %v1123 = vpop.f32.mrb[0].mxu0
      %v1124 = vadd.f32 %v1071, %v1123
      %v1125 = vpop.f32.mrb[0].mxu0
      %v1126 = vadd.f32 %v1073, %v1125
      %1127 = vdwg.mxu0
      %s1128 = scalar_lea.vmem %s2, 32
      %v1129 = vld [vmem:[%s1128] sm:$0xff]
      %v1130 = vld [vmem:[%s1128 + $0x8] sm:$0xff]
      %v1131 = vld [vmem:[#allocation2] sm:$0xff]
      %v1132 = vld [vmem:[#allocation2 + $0x8] sm:$0xff]
      %v1133 = vld [vmem:[#allocation2 + $0x10] sm:$0xff]
      %v1134 = vld [vmem:[#allocation2 + $0x18] sm:$0xff]
      %v1135 = vld [vmem:[#allocation2 + $0x20] sm:$0xff]
      %v1136 = vld [vmem:[#allocation2 + $0x28] sm:$0xff]
      %v1137 = vld [vmem:[#allocation2 + $0x30] sm:$0xff]
      %v1138 = vld [vmem:[#allocation2 + $0x38] sm:$0xff]
      %v1139 = vld [vmem:[#allocation2 + $0x40] sm:$0xff]
      %v1140 = vld [vmem:[#allocation2 + $0x48] sm:$0xff]
      %v1141 = vld [vmem:[#allocation2 + $0x50] sm:$0xff]
      %v1142 = vld [vmem:[#allocation2 + $0x58] sm:$0xff]
      %v1143 = vld [vmem:[#allocation2 + $0x60] sm:$0xff]
      %v1144 = vld [vmem:[#allocation2 + $0x68] sm:$0xff]
      %v1145 = vld [vmem:[#allocation2 + $0x70] sm:$0xff]
      %v1146 = vld [vmem:[#allocation2 + $0x78] sm:$0xff]
      %v1147 = vld [vmem:[#allocation2 + $0x80] sm:$0xff]
      %v1148 = vld [vmem:[#allocation2 + $0x88] sm:$0xff]
      %v1149 = vld [vmem:[#allocation2 + $0x90] sm:$0xff]
      %v1150 = vld [vmem:[#allocation2 + $0x98] sm:$0xff]
      %v1151 = vld [vmem:[#allocation2 + $0xa0] sm:$0xff]
      %v1152 = vld [vmem:[#allocation2 + $0xa8] sm:$0xff]
      %v1153 = vld [vmem:[#allocation2 + $0xb0] sm:$0xff]
      %v1154 = vld [vmem:[#allocation2 + $0xb8] sm:$0xff]
      %v1155 = vld [vmem:[#allocation2 + $0xc0] sm:$0xff]
      %v1156 = vld [vmem:[#allocation2 + $0xc8] sm:$0xff]
      %v1157 = vld [vmem:[#allocation2 + $0xd0] sm:$0xff]
      %v1158 = vld [vmem:[#allocation2 + $0xd8] sm:$0xff]
      %v1159 = vld [vmem:[#allocation2 + $0xe0] sm:$0xff]
      %v1160 = vld [vmem:[#allocation2 + $0xe8] sm:$0xff]
      %v1161 = vld [vmem:[#allocation2 + $0xf0] sm:$0xff]
      %v1162 = vld [vmem:[#allocation2 + $0xf8] sm:$0xff]
      %v1165 = vunpack.c.l.b16 %v1129
      %v1166 = vunpack.c.h.b16 %v1129
      %v1167 = vunpack.c.l.b16 %v1130
      %v1168 = vunpack.c.h.b16 %v1130
      %v1169 = vpack.c.b16 %v1167, %v1165
      %v1170 = vpack.c.b16 %v1168, %v1166
      %1173 = vmatprep.subr.bf16.mxu0 %v1132
      %1174 = vmatpush1.bf16.msra.mxu0 %v1131
      %1175 = vmatprep.subr.bf16.mxu0 %v1134
      %1176 = vmatpush1.bf16.msra.mxu0 %v1133
      %1177 = vmatprep.subr.bf16.mxu0 %v1136
      %1178 = vmatpush1.bf16.msra.mxu0 %v1135
      %1179 = vmatprep.subr.bf16.mxu0 %v1138
      %1180 = vmatpush1.bf16.msra.mxu0 %v1137
      %1181 = vmatprep.subr.bf16.mxu0 %v1140
      %1182 = vmatpush1.bf16.msra.mxu0 %v1139
      %1183 = vmatprep.subr.bf16.mxu0 %v1142
      %1184 = vmatpush1.bf16.msra.mxu0 %v1141
      %1185 = vmatprep.subr.bf16.mxu0 %v1144
      %1186 = vmatpush1.bf16.msra.mxu0 %v1143
      %1187 = vmatprep.subr.bf16.mxu0 %v1146
      %1188 = vmatpush1.bf16.msra.mxu0 %v1145
      %1189 = vmatprep.subr.bf16.mxu0 %v1148
      %1190 = vmatpush1.bf16.msra.mxu0 %v1147
      %1191 = vmatprep.subr.bf16.mxu0 %v1150
      %1192 = vmatpush1.bf16.msra.mxu0 %v1149
      %1193 = vmatprep.subr.bf16.mxu0 %v1152
      %1194 = vmatpush1.bf16.msra.mxu0 %v1151
      %1195 = vmatprep.subr.bf16.mxu0 %v1154
      %1196 = vmatpush1.bf16.msra.mxu0 %v1153
      %1197 = vmatprep.subr.bf16.mxu0 %v1156
      %1198 = vmatpush1.bf16.msra.mxu0 %v1155
      %1199 = vmatprep.subr.bf16.mxu0 %v1158
      %1200 = vmatpush1.bf16.msra.mxu0 %v1157
      %1201 = vmatprep.subr.bf16.mxu0 %v1160
      %1202 = vmatpush1.bf16.msra.mxu0 %v1159
      %1203 = vmatprep.subr.bf16.mxu0 %v1162
      %1204 = vmatpush1.bf16.msra.mxu0 %v1161
      %1205 = vmatprep.mubr.bf16.mxu0 %v1170
      %1206 = vmatmul.mubr.bf16.gmra.mrb[0].mxu0 %v1169
      %v1207 = vpop.f32.mrb[0].mxu0
      %v1208 = vadd.f32 0.0, %v1207
      %v1209 = vpop.f32.mrb[0].mxu0
      %v1210 = vadd.f32 0.0, %v1209
      %v1211 = vpop.f32.mrb[0].mxu0
      %v1212 = vadd.f32 0.0, %v1211
      %v1213 = vpop.f32.mrb[0].mxu0
      %v1214 = vadd.f32 0.0, %v1213
      %1215 = vdwg.mxu0
      %v1216 = vadd.f32 %v1120, %v1208
      %v1217 = vadd.f32 %v1122, %v1210
      %v1218 = vadd.f32 %v1124, %v1212
      %v1219 = vadd.f32 %v1126, %v1214
      %v1220 = vadd.f32 %v1216, %v1217
      %1221 = vadd.xlane.f32.xlu0 %v1220
      %v1222 = vpop.xlane.xlu0 %1221
      %v1223 = vadd.f32 %v1218, %v1219
      %1224 = vadd.xlane.f32.xlu0 %v1223
      %v1225 = vpop.xlane.xlu0 %1224
      %v1226 = vrcp.pop 256.0
      %v1227 = vmul.f32 %v1222, %v1226
      %v1228 = vmul.f32 %v1225, %v1226
      %v1229 = vsub.f32 %v1216, %v1227
      %v1230 = vsub.f32 %v1217, %v1227
      %v1231 = vsub.f32 %v1218, %v1228
      %v1232 = vsub.f32 %v1219, %v1228
      %v1233 = vmul.f32 %v1229, %v1229
      %v1234 = vmul.f32 %v1230, %v1230
      %v1235 = vmul.f32 %v1231, %v1231
      %v1236 = vmul.f32 %v1232, %v1232
      %v1237 = vadd.f32 %v1233, %v1234
      %1238 = vadd.xlane.f32.xlu0 %v1237
      %v1239 = vpop.xlane.xlu0 %1238
      %v1240 = vadd.f32 %v1235, %v1236
      %1241 = vadd.xlane.f32.xlu0 %v1240
      %v1242 = vpop.xlane.xlu0 %1241
      %v1243 = vmul.f32 %v1239, %v1226
      %v1244 = vmul.f32 %v1242, %v1226
      %v1245 = vadd.f32 %v1243, 1e-05
      %v1246 = vadd.f32 %v1244, 1e-05
      %v1247 = vrsqrt.pop %v1245
      %v1248 = vrsqrt.pop %v1246
      %v1249 = vmul.f32 %v1229, %v1247
      %v1250 = vmul.f32 %v1230, %v1247
      %v1251 = vmul.f32 %v1231, %v1248
      %v1252 = vmul.f32 %v1232, %v1248
      %v1253 = vmax.f32 %v1249, 0.0
      %v1254 = vmax.f32 %v1250, 0.0
      %v1255 = vmax.f32 %v1251, 0.0
      %v1256 = vmax.f32 %v1252, 0.0
      %1257 = vrot.lane.b32.xlu0 %v1253, 73
      %v1258 = vpop.permute.xlu0 %1257
      %1259 = vrot.lane.b32.xlu0 %v1255, 73
      %v1260 = vpop.permute.xlu0 %1259
      %1261 = vrot.lane.b32.xlu0 %v1254, 73
      %v1262 = vpop.permute.xlu0 %1261
      %1263 = vrot.lane.b32.xlu0 %v1256, 73
      %v1264 = vpop.permute.xlu0 %1263
      %v1265 = vsel %vm242, %v1258, %v1262
      %v1266 = vsel %vm242, %v1260, %v1264
      %v1267 = vsel %vm242, %v1262, %v1258
      %v1268 = vsel %vm242, %v1264, %v1260
      %v1269 = vld [vmem:[%s1] sm:$0x11]
      %v1270 = vunpack.c.l.bf16 %v1269
      %v1271 = vunpack.c.h.bf16 %v1269
      %v1272 = vlaneseq
      %v1273 = vshrl.u32 %v1272, 7
      %v1274 = vsub.s32 0, %v1273
      %v1275 = vrot.slane %v1270, %v1274
      %v1276 = vlaneseq
      %v1277 = vshrl.u32 %v1276, 7
      %v1278 = vsub.s32 0, %v1277
      %v1279 = vrot.slane %v1271, %v1278
      %v1280 = vmul.f32 %v1267, %v1275
      %v1281 = vmul.f32 %v1265, %v1279
      %v1282 = vmul.f32 %v1268, %v1275
      %v1283 = vmul.f32 %v1266, %v1279
      %v1284 = vpack.c.bf16 %v1282, %v1280
      %v1285 = vpack.c.bf16 %v1283, %v1281
      %1286 = vst [vmem:[#allocation2] sm:$0xff] %v1284
      %1287 = vst [vmem:[#allocation2 + $0x8] sm:$0xff] %v1285
      %1288 = vrot.lane.b32.xlu0 %v1253, 72
      %v1289 = vpop.permute.xlu0 %1288
      %1290 = vrot.lane.b32.xlu0 %v1255, 72
      %v1291 = vpop.permute.xlu0 %1290
      %1292 = vrot.lane.b32.xlu0 %v1254, 72
      %v1293 = vpop.permute.xlu0 %1292
      %1294 = vrot.lane.b32.xlu0 %v1256, 72
      %v1295 = vpop.permute.xlu0 %1294
      %v1296 = vsel %vm274, %v1289, %v1293
      %v1297 = vsel %vm274, %v1291, %v1295
      %v1298 = vsel %vm274, %v1293, %v1289
      %v1299 = vsel %vm274, %v1295, %v1291
      %v1300 = vld [vmem:[%s1] sm:$0x11]
      %v1301 = vunpack.c.l.bf16 %v1300
      %v1302 = vunpack.c.h.bf16 %v1300
      %v1303 = vlaneseq
      %v1304 = vshrl.u32 %v1303, 7
      %v1305 = vsub.s32 1, %v1304
      %v1306 = vrot.slane %v1301, %v1305
      %v1307 = vlaneseq
      %v1308 = vshrl.u32 %v1307, 7
      %v1309 = vsub.s32 1, %v1308
      %v1310 = vrot.slane %v1302, %v1309
      %v1311 = vmul.f32 %v1298, %v1306
      %v1312 = vmul.f32 %v1296, %v1310
      %v1313 = vmul.f32 %v1299, %v1306
      %v1314 = vmul.f32 %v1297, %v1310
      %v1315 = vpack.c.bf16 %v1313, %v1311
      %v1316 = vpack.c.bf16 %v1314, %v1312
      %1317 = vst [vmem:[#allocation2 + $0x10] sm:$0xff] %v1315
      %1318 = vst [vmem:[#allocation2 + $0x18] sm:$0xff] %v1316
      %1319 = vrot.lane.b32.xlu0 %v1253, 71
      %v1320 = vpop.permute.xlu0 %1319
      %1321 = vrot.lane.b32.xlu0 %v1255, 71
      %v1322 = vpop.permute.xlu0 %1321
      %1323 = vrot.lane.b32.xlu0 %v1254, 71
      %v1324 = vpop.permute.xlu0 %1323
      %1325 = vrot.lane.b32.xlu0 %v1256, 71
      %v1326 = vpop.permute.xlu0 %1325
      %v1327 = vsel %vm306, %v1320, %v1324
      %v1328 = vsel %vm306, %v1322, %v1326
      %v1329 = vsel %vm306, %v1324, %v1320
      %v1330 = vsel %vm306, %v1326, %v1322
      %v1331 = vld [vmem:[%s1] sm:$0x22]
      %v1332 = vunpack.c.l.bf16 %v1331
      %v1333 = vunpack.c.h.bf16 %v1331
      %v1334 = vlaneseq
      %v1335 = vshrl.u32 %v1334, 7
      %v1336 = vsub.s32 2, %v1335
      %v1337 = vrot.slane %v1332, %v1336
      %v1338 = vlaneseq
      %v1339 = vshrl.u32 %v1338, 7
      %v1340 = vsub.s32 2, %v1339
      %v1341 = vrot.slane %v1333, %v1340
      %v1342 = vmul.f32 %v1329, %v1337
      %v1343 = vmul.f32 %v1327, %v1341
      %v1344 = vmul.f32 %v1330, %v1337
      %v1345 = vmul.f32 %v1328, %v1341
      %v1346 = vpack.c.bf16 %v1344, %v1342
      %v1347 = vpack.c.bf16 %v1345, %v1343
      %1348 = vst [vmem:[#allocation2 + $0x20] sm:$0xff] %v1346
      %1349 = vst [vmem:[#allocation2 + $0x28] sm:$0xff] %v1347
      %1350 = vrot.lane.b32.xlu0 %v1253, 65
      %v1351 = vpop.permute.xlu0 %1350
      %1352 = vrot.lane.b32.xlu0 %v1255, 65
      %v1353 = vpop.permute.xlu0 %1352
      %1354 = vrot.lane.b32.xlu0 %v1254, 65
      %v1355 = vpop.permute.xlu0 %1354
      %1356 = vrot.lane.b32.xlu0 %v1256, 65
      %v1357 = vpop.permute.xlu0 %1356
      %v1358 = vsel %vm338, %v1351, %v1355
      %v1359 = vsel %vm338, %v1353, %v1357
      %v1360 = vsel %vm338, %v1355, %v1351
      %v1361 = vsel %vm338, %v1357, %v1353
      %v1362 = vld [vmem:[%s1] sm:$0x22]
      %v1363 = vunpack.c.l.bf16 %v1362
      %v1364 = vunpack.c.h.bf16 %v1362
      %v1365 = vlaneseq
      %v1366 = vshrl.u32 %v1365, 7
      %v1367 = vsub.s32 3, %v1366
      %v1368 = vrot.slane %v1363, %v1367
      %v1369 = vlaneseq
      %v1370 = vshrl.u32 %v1369, 7
      %v1371 = vsub.s32 3, %v1370
      %v1372 = vrot.slane %v1364, %v1371
      %v1373 = vmul.f32 %v1360, %v1368
      %v1374 = vmul.f32 %v1358, %v1372
      %v1375 = vmul.f32 %v1361, %v1368
      %v1376 = vmul.f32 %v1359, %v1372
      %v1377 = vpack.c.bf16 %v1375, %v1373
      %v1378 = vpack.c.bf16 %v1376, %v1374
      %1379 = vst [vmem:[#allocation2 + $0x30] sm:$0xff] %v1377
      %1380 = vst [vmem:[#allocation2 + $0x38] sm:$0xff] %v1378
      %1381 = vrot.lane.b32.xlu0 %v1253, 64
      %v1382 = vpop.permute.xlu0 %1381
      %1383 = vrot.lane.b32.xlu0 %v1255, 64
      %v1384 = vpop.permute.xlu0 %1383
      %1385 = vrot.lane.b32.xlu0 %v1254, 64
      %v1386 = vpop.permute.xlu0 %1385
      %1387 = vrot.lane.b32.xlu0 %v1256, 64
      %v1388 = vpop.permute.xlu0 %1387
      %v1389 = vsel %vm370, %v1382, %v1386
      %v1390 = vsel %vm370, %v1384, %v1388
      %v1391 = vsel %vm370, %v1386, %v1382
      %v1392 = vsel %vm370, %v1388, %v1384
      %v1393 = vld [vmem:[%s1] sm:$0x44]
      %v1394 = vunpack.c.l.bf16 %v1393
      %v1395 = vunpack.c.h.bf16 %v1393
      %v1396 = vlaneseq
      %v1397 = vshrl.u32 %v1396, 7
      %v1398 = vsub.s32 4, %v1397
      %v1399 = vrot.slane %v1394, %v1398
      %v1400 = vlaneseq
      %v1401 = vshrl.u32 %v1400, 7
      %v1402 = vsub.s32 4, %v1401
      %v1403 = vrot.slane %v1395, %v1402
      %v1404 = vmul.f32 %v1391, %v1399
      %v1405 = vmul.f32 %v1389, %v1403
      %v1406 = vmul.f32 %v1392, %v1399
      %v1407 = vmul.f32 %v1390, %v1403
      %v1408 = vpack.c.bf16 %v1406, %v1404
      %v1409 = vpack.c.bf16 %v1407, %v1405
      %1410 = vst [vmem:[#allocation2 + $0x40] sm:$0xff] %v1408
      %1411 = vst [vmem:[#allocation2 + $0x48] sm:$0xff] %v1409
      %1412 = vrot.lane.b32.xlu0 %v1253, 63
      %v1413 = vpop.permute.xlu0 %1412
      %1414 = vrot.lane.b32.xlu0 %v1255, 63
      %v1415 = vpop.permute.xlu0 %1414
      %1416 = vrot.lane.b32.xlu0 %v1254, 63
      %v1417 = vpop.permute.xlu0 %1416
      %1418 = vrot.lane.b32.xlu0 %v1256, 63
      %v1419 = vpop.permute.xlu0 %1418
      %v1420 = vsel %vm402, %v1413, %v1417
      %v1421 = vsel %vm402, %v1415, %v1419
      %v1422 = vsel %vm402, %v1417, %v1413
      %v1423 = vsel %vm402, %v1419, %v1415
      %v1424 = vld [vmem:[%s1] sm:$0x44]
      %v1425 = vunpack.c.l.bf16 %v1424
      %v1426 = vunpack.c.h.bf16 %v1424
      %v1427 = vlaneseq
      %v1428 = vshrl.u32 %v1427, 7
      %v1429 = vsub.s32 5, %v1428
      %v1430 = vrot.slane %v1425, %v1429
      %v1431 = vlaneseq
      %v1432 = vshrl.u32 %v1431, 7
      %v1433 = vsub.s32 5, %v1432
      %v1434 = vrot.slane %v1426, %v1433
      %v1435 = vmul.f32 %v1422, %v1430
      %v1436 = vmul.f32 %v1420, %v1434
      %v1437 = vmul.f32 %v1423, %v1430
      %v1438 = vmul.f32 %v1421, %v1434
      %v1439 = vpack.c.bf16 %v1437, %v1435
      %v1440 = vpack.c.bf16 %v1438, %v1436
      %1441 = vst [vmem:[#allocation2 + $0x50] sm:$0xff] %v1439
      %1442 = vst [vmem:[#allocation2 + $0x58] sm:$0xff] %v1440
      %1443 = vrot.lane.b32.xlu0 %v1253, 57
      %v1444 = vpop.permute.xlu0 %1443
      %1445 = vrot.lane.b32.xlu0 %v1255, 57
      %v1446 = vpop.permute.xlu0 %1445
      %1447 = vrot.lane.b32.xlu0 %v1254, 57
      %v1448 = vpop.permute.xlu0 %1447
      %1449 = vrot.lane.b32.xlu0 %v1256, 57
      %v1450 = vpop.permute.xlu0 %1449
      %v1451 = vsel %vm434, %v1444, %v1448
      %v1452 = vsel %vm434, %v1446, %v1450
      %v1453 = vsel %vm434, %v1448, %v1444
      %v1454 = vsel %vm434, %v1450, %v1446
      %v1455 = vld [vmem:[%s1] sm:$0x88]
      %v1456 = vunpack.c.l.bf16 %v1455
      %v1457 = vunpack.c.h.bf16 %v1455
      %v1458 = vlaneseq
      %v1459 = vshrl.u32 %v1458, 7
      %v1460 = vsub.s32 6, %v1459
      %v1461 = vrot.slane %v1456, %v1460
      %v1462 = vlaneseq
      %v1463 = vshrl.u32 %v1462, 7
      %v1464 = vsub.s32 6, %v1463
      %v1465 = vrot.slane %v1457, %v1464
      %v1466 = vmul.f32 %v1453, %v1461
      %v1467 = vmul.f32 %v1451, %v1465
      %v1468 = vmul.f32 %v1454, %v1461
      %v1469 = vmul.f32 %v1452, %v1465
      %v1470 = vpack.c.bf16 %v1468, %v1466
      %v1471 = vpack.c.bf16 %v1469, %v1467
      %1472 = vst [vmem:[#allocation2 + $0x60] sm:$0xff] %v1470
      %1473 = vst [vmem:[#allocation2 + $0x68] sm:$0xff] %v1471
      %1474 = vrot.lane.b32.xlu0 %v1253, 56
      %v1475 = vpop.permute.xlu0 %1474
      %1476 = vrot.lane.b32.xlu0 %v1255, 56
      %v1477 = vpop.permute.xlu0 %1476
      %1478 = vrot.lane.b32.xlu0 %v1254, 56
      %v1479 = vpop.permute.xlu0 %1478
      %1480 = vrot.lane.b32.xlu0 %v1256, 56
      %v1481 = vpop.permute.xlu0 %1480
      %v1482 = vsel %vm466, %v1475, %v1479
      %v1483 = vsel %vm466, %v1477, %v1481
      %v1484 = vsel %vm466, %v1479, %v1475
      %v1485 = vsel %vm466, %v1481, %v1477
      %v1486 = vld [vmem:[%s1] sm:$0x88]
      %v1487 = vunpack.c.l.bf16 %v1486
      %v1488 = vunpack.c.h.bf16 %v1486
      %v1489 = vlaneseq
      %v1490 = vshrl.u32 %v1489, 7
      %v1491 = vsub.s32 7, %v1490
      %v1492 = vrot.slane %v1487, %v1491
      %v1493 = vlaneseq
      %v1494 = vshrl.u32 %v1493, 7
      %v1495 = vsub.s32 7, %v1494
      %v1496 = vrot.slane %v1488, %v1495
      %v1497 = vmul.f32 %v1484, %v1492
      %v1498 = vmul.f32 %v1482, %v1496
      %v1499 = vmul.f32 %v1485, %v1492
      %v1500 = vmul.f32 %v1483, %v1496
      %v1501 = vpack.c.bf16 %v1499, %v1497
      %v1502 = vpack.c.bf16 %v1500, %v1498
      %1503 = vst [vmem:[#allocation2 + $0x70] sm:$0xff] %v1501
      %1504 = vst [vmem:[#allocation2 + $0x78] sm:$0xff] %v1502
      %1505 = vrot.lane.b32.xlu0 %v1253, 55
      %v1506 = vpop.permute.xlu0 %1505
      %1507 = vrot.lane.b32.xlu0 %v1255, 55
      %v1508 = vpop.permute.xlu0 %1507
      %1509 = vrot.lane.b32.xlu0 %v1254, 55
      %v1510 = vpop.permute.xlu0 %1509
      %1511 = vrot.lane.b32.xlu0 %v1256, 55
      %v1512 = vpop.permute.xlu0 %1511
      %v1513 = vsel %vm498, %v1506, %v1510
      %v1514 = vsel %vm498, %v1508, %v1512
      %v1515 = vsel %vm498, %v1510, %v1506
      %v1516 = vsel %vm498, %v1512, %v1508
      %v1517 = vld [vmem:[%s1 + $0x8] sm:$0x11]
      %v1518 = vunpack.c.l.bf16 %v1517
      %v1519 = vunpack.c.h.bf16 %v1517
      %v1520 = vlaneseq
      %v1521 = vshrl.u32 %v1520, 7
      %v1522 = vsub.s32 0, %v1521
      %v1523 = vrot.slane %v1518, %v1522
      %v1524 = vlaneseq
      %v1525 = vshrl.u32 %v1524, 7
      %v1526 = vsub.s32 0, %v1525
      %v1527 = vrot.slane %v1519, %v1526
      %v1528 = vmul.f32 %v1515, %v1523
      %v1529 = vmul.f32 %v1513, %v1527
      %v1530 = vmul.f32 %v1516, %v1523
      %v1531 = vmul.f32 %v1514, %v1527
      %v1532 = vpack.c.bf16 %v1530, %v1528
      %v1533 = vpack.c.bf16 %v1531, %v1529
      %1534 = vst [vmem:[#allocation2 + $0x80] sm:$0xff] %v1532
      %1535 = vst [vmem:[#allocation2 + $0x88] sm:$0xff] %v1533
      %1536 = vrot.lane.b32.xlu0 %v1253, 9
      %v1537 = vpop.permute.xlu0 %1536
      %1538 = vrot.lane.b32.xlu0 %v1255, 9
      %v1539 = vpop.permute.xlu0 %1538
      %1540 = vrot.lane.b32.xlu0 %v1254, 9
      %v1541 = vpop.permute.xlu0 %1540
      %1542 = vrot.lane.b32.xlu0 %v1256, 9
      %v1543 = vpop.permute.xlu0 %1542
      %v1544 = vsel %vm530, %v1537, %v1541
      %v1545 = vsel %vm530, %v1539, %v1543
      %v1546 = vsel %vm530, %v1541, %v1537
      %v1547 = vsel %vm530, %v1543, %v1539
      %v1548 = vld [vmem:[%s1 + $0x8] sm:$0x11]
      %v1549 = vunpack.c.l.bf16 %v1548
      %v1550 = vunpack.c.h.bf16 %v1548
      %v1551 = vlaneseq
      %v1552 = vshrl.u32 %v1551, 7
      %v1553 = vsub.s32 1, %v1552
      %v1554 = vrot.slane %v1549, %v1553
      %v1555 = vlaneseq
      %v1556 = vshrl.u32 %v1555, 7
      %v1557 = vsub.s32 1, %v1556
      %v1558 = vrot.slane %v1550, %v1557
      %v1559 = vmul.f32 %v1546, %v1554
      %v1560 = vmul.f32 %v1544, %v1558
      %v1561 = vmul.f32 %v1547, %v1554
      %v1562 = vmul.f32 %v1545, %v1558
      %v1563 = vpack.c.bf16 %v1561, %v1559
      %v1564 = vpack.c.bf16 %v1562, %v1560
      %1565 = vst [vmem:[%s213] sm:$0xff] %v1563
      %1566 = vst [vmem:[%s213 + $0x8] sm:$0xff] %v1564
      %1567 = vrot.lane.b32.xlu0 %v1253, 8
      %v1568 = vpop.permute.xlu0 %1567
      %1569 = vrot.lane.b32.xlu0 %v1255, 8
      %v1570 = vpop.permute.xlu0 %1569
      %1571 = vrot.lane.b32.xlu0 %v1254, 8
      %v1572 = vpop.permute.xlu0 %1571
      %1573 = vrot.lane.b32.xlu0 %v1256, 8
      %v1574 = vpop.permute.xlu0 %1573
      %v1575 = vsel %vm562, %v1568, %v1572
      %v1576 = vsel %vm562, %v1570, %v1574
      %v1577 = vsel %vm562, %v1572, %v1568
      %v1578 = vsel %vm562, %v1574, %v1570
      %v1579 = vld [vmem:[%s1 + $0x8] sm:$0x22]
      %v1580 = vunpack.c.l.bf16 %v1579
      %v1581 = vunpack.c.h.bf16 %v1579
      %v1582 = vlaneseq
      %v1583 = vshrl.u32 %v1582, 7
      %v1584 = vsub.s32 2, %v1583
      %v1585 = vrot.slane %v1580, %v1584
      %v1586 = vlaneseq
      %v1587 = vshrl.u32 %v1586, 7
      %v1588 = vsub.s32 2, %v1587
      %v1589 = vrot.slane %v1581, %v1588
      %v1590 = vmul.f32 %v1577, %v1585
      %v1591 = vmul.f32 %v1575, %v1589
      %v1592 = vmul.f32 %v1578, %v1585
      %v1593 = vmul.f32 %v1576, %v1589
      %v1594 = vpack.c.bf16 %v1592, %v1590
      %v1595 = vpack.c.bf16 %v1593, %v1591
      %1596 = vst [vmem:[%s213 + $0x10] sm:$0xff] %v1594
      %1597 = vst [vmem:[%s213 + $0x18] sm:$0xff] %v1595
      %1598 = vrot.lane.b32.xlu0 %v1253, 7
      %v1599 = vpop.permute.xlu0 %1598
      %1600 = vrot.lane.b32.xlu0 %v1255, 7
      %v1601 = vpop.permute.xlu0 %1600
      %1602 = vrot.lane.b32.xlu0 %v1254, 7
      %v1603 = vpop.permute.xlu0 %1602
      %1604 = vrot.lane.b32.xlu0 %v1256, 7
      %v1605 = vpop.permute.xlu0 %1604
      %v1606 = vsel %vm594, %v1599, %v1603
      %v1607 = vsel %vm594, %v1601, %v1605
      %v1608 = vsel %vm594, %v1603, %v1599
      %v1609 = vsel %vm594, %v1605, %v1601
      %v1610 = vld [vmem:[%s1 + $0x8] sm:$0x22]
      %v1611 = vunpack.c.l.bf16 %v1610
      %v1612 = vunpack.c.h.bf16 %v1610
      %v1613 = vlaneseq
      %v1614 = vshrl.u32 %v1613, 7
      %v1615 = vsub.s32 3, %v1614
      %v1616 = vrot.slane %v1611, %v1615
      %v1617 = vlaneseq
      %v1618 = vshrl.u32 %v1617, 7
      %v1619 = vsub.s32 3, %v1618
      %v1620 = vrot.slane %v1612, %v1619
      %v1621 = vmul.f32 %v1608, %v1616
      %v1622 = vmul.f32 %v1606, %v1620
      %v1623 = vmul.f32 %v1609, %v1616
      %v1624 = vmul.f32 %v1607, %v1620
      %v1625 = vpack.c.bf16 %v1623, %v1621
      %v1626 = vpack.c.bf16 %v1624, %v1622
      %1627 = vst [vmem:[%s213 + $0x20] sm:$0xff] %v1625
      %1628 = vst [vmem:[%s213 + $0x28] sm:$0xff] %v1626
      %1629 = vrot.lane.b32.xlu0 %v1253, 1
      %v1630 = vpop.permute.xlu0 %1629
      %1631 = vrot.lane.b32.xlu0 %v1255, 1
      %v1632 = vpop.permute.xlu0 %1631
      %1633 = vrot.lane.b32.xlu0 %v1254, 1
      %v1634 = vpop.permute.xlu0 %1633
      %1635 = vrot.lane.b32.xlu0 %v1256, 1
      %v1636 = vpop.permute.xlu0 %1635
      %v1637 = vsel %vm626, %v1630, %v1634
      %v1638 = vsel %vm626, %v1632, %v1636
      %v1639 = vsel %vm626, %v1634, %v1630
      %v1640 = vsel %vm626, %v1636, %v1632
      %v1641 = vld [vmem:[%s1 + $0x8] sm:$0x44]
      %v1642 = vunpack.c.l.bf16 %v1641
      %v1643 = vunpack.c.h.bf16 %v1641
      %v1644 = vlaneseq
      %v1645 = vshrl.u32 %v1644, 7
      %v1646 = vsub.s32 4, %v1645
      %v1647 = vrot.slane %v1642, %v1646
      %v1648 = vlaneseq
      %v1649 = vshrl.u32 %v1648, 7
      %v1650 = vsub.s32 4, %v1649
      %v1651 = vrot.slane %v1643, %v1650
      %v1652 = vmul.f32 %v1639, %v1647
      %v1653 = vmul.f32 %v1637, %v1651
      %v1654 = vmul.f32 %v1640, %v1647
      %v1655 = vmul.f32 %v1638, %v1651
      %v1656 = vpack.c.bf16 %v1654, %v1652
      %v1657 = vpack.c.bf16 %v1655, %v1653
      %1658 = vst [vmem:[%s213 + $0x30] sm:$0xff] %v1656
      %1659 = vst [vmem:[%s213 + $0x38] sm:$0xff] %v1657
      %v1660 = vpack.c.bf16 %v1255, %v1253
      %v1661 = vpack.c.bf16 %v1256, %v1254
      %1662 = vst [vmem:[%s213 + $0x40] sm:$0xff] %v1660
      %1663 = vst [vmem:[%s213 + $0x48] sm:$0xff] %v1661
      %1664 = vrot.lane.b32.xlu0 %v1253, 127
      %v1665 = vpop.permute.xlu0 %1664
      %1666 = vrot.lane.b32.xlu0 %v1255, 127
      %v1667 = vpop.permute.xlu0 %1666
      %1668 = vrot.lane.b32.xlu0 %v1254, 127
      %v1669 = vpop.permute.xlu0 %1668
      %1670 = vrot.lane.b32.xlu0 %v1256, 127
      %v1671 = vpop.permute.xlu0 %1670
      %v1672 = vsel %vm662, %v1665, %v1669
      %v1673 = vsel %vm662, %v1667, %v1671
      %v1674 = vsel %vm662, %v1669, %v1665
      %v1675 = vsel %vm662, %v1671, %v1667
      %v1676 = vld [vmem:[%s1 + $0x8] sm:$0x88]
      %v1677 = vunpack.c.l.bf16 %v1676
      %v1678 = vunpack.c.h.bf16 %v1676
      %v1679 = vlaneseq
      %v1680 = vshrl.u32 %v1679, 7
      %v1681 = vsub.s32 6, %v1680
      %v1682 = vrot.slane %v1677, %v1681
      %v1683 = vlaneseq
      %v1684 = vshrl.u32 %v1683, 7
      %v1685 = vsub.s32 6, %v1684
      %v1686 = vrot.slane %v1678, %v1685
      %v1687 = vmul.f32 %v1672, %v1682
      %v1688 = vmul.f32 %v1674, %v1686
      %v1689 = vmul.f32 %v1673, %v1682
      %v1690 = vmul.f32 %v1675, %v1686
      %v1691 = vpack.c.bf16 %v1689, %v1687
      %v1692 = vpack.c.bf16 %v1690, %v1688
      %1693 = vst [vmem:[%s213 + $0x50] sm:$0xff] %v1691
      %1694 = vst [vmem:[%s213 + $0x58] sm:$0xff] %v1692
      %1695 = vrot.lane.b32.xlu0 %v1253, 121
      %v1696 = vpop.permute.xlu0 %1695
      %1697 = vrot.lane.b32.xlu0 %v1255, 121
      %v1698 = vpop.permute.xlu0 %1697
      %1699 = vrot.lane.b32.xlu0 %v1254, 121
      %v1700 = vpop.permute.xlu0 %1699
      %1701 = vrot.lane.b32.xlu0 %v1256, 121
      %v1702 = vpop.permute.xlu0 %1701
      %v1703 = vsel %vm694, %v1696, %v1700
      %v1704 = vsel %vm694, %v1698, %v1702
      %v1705 = vsel %vm694, %v1700, %v1696
      %v1706 = vsel %vm694, %v1702, %v1698
      %v1707 = vld [vmem:[%s1 + $0x8] sm:$0x88]
      %v1708 = vunpack.c.l.bf16 %v1707
      %v1709 = vunpack.c.h.bf16 %v1707
      %v1710 = vlaneseq
      %v1711 = vshrl.u32 %v1710, 7
      %v1712 = vsub.s32 7, %v1711
      %v1713 = vrot.slane %v1708, %v1712
      %v1714 = vlaneseq
      %v1715 = vshrl.u32 %v1714, 7
      %v1716 = vsub.s32 7, %v1715
      %v1717 = vrot.slane %v1709, %v1716
      %v1718 = vmul.f32 %v1703, %v1713
      %v1719 = vmul.f32 %v1705, %v1717
      %v1720 = vmul.f32 %v1704, %v1713
      %v1721 = vmul.f32 %v1706, %v1717
      %v1722 = vpack.c.bf16 %v1720, %v1718
      %v1723 = vpack.c.bf16 %v1721, %v1719
      %1724 = vst [vmem:[%s213 + $0x60] sm:$0xff] %v1722
      %1725 = vst [vmem:[%s213 + $0x68] sm:$0xff] %v1723
      %1726 = vrot.lane.b32.xlu0 %v1253, 120
      %v1727 = vpop.permute.xlu0 %1726
      %1728 = vrot.lane.b32.xlu0 %v1255, 120
      %v1729 = vpop.permute.xlu0 %1728
      %1730 = vrot.lane.b32.xlu0 %v1254, 120
      %v1731 = vpop.permute.xlu0 %1730
      %1732 = vrot.lane.b32.xlu0 %v1256, 120
      %v1733 = vpop.permute.xlu0 %1732
      %v1734 = vsel %vm726, %v1727, %v1731
      %v1735 = vsel %vm726, %v1729, %v1733
      %v1736 = vsel %vm726, %v1731, %v1727
      %v1737 = vsel %vm726, %v1733, %v1729
      %v1738 = vld [vmem:[%s1 + $0x10] sm:$0x11]
      %v1739 = vunpack.c.l.bf16 %v1738
      %v1740 = vunpack.c.h.bf16 %v1738
      %v1741 = vlaneseq
      %v1742 = vshrl.u32 %v1741, 7
      %v1743 = vsub.s32 0, %v1742
      %v1744 = vrot.slane %v1739, %v1743
      %v1745 = vlaneseq
      %v1746 = vshrl.u32 %v1745, 7
      %v1747 = vsub.s32 0, %v1746
      %v1748 = vrot.slane %v1740, %v1747
      %v1749 = vmul.f32 %v1734, %v1744
      %v1750 = vmul.f32 %v1736, %v1748
      %v1751 = vmul.f32 %v1735, %v1744
      %v1752 = vmul.f32 %v1737, %v1748
      %v1753 = vpack.c.bf16 %v1751, %v1749
      %v1754 = vpack.c.bf16 %v1752, %v1750
      %1755 = vst [vmem:[%s213 + $0x70] sm:$0xff] %v1753
      %1756 = vst [vmem:[%s213 + $0x78] sm:$0xff] %v1754
      %1757 = vrot.lane.b32.xlu0 %v1253, 119
      %v1758 = vpop.permute.xlu0 %1757
      %1759 = vrot.lane.b32.xlu0 %v1255, 119
      %v1760 = vpop.permute.xlu0 %1759
      %1761 = vrot.lane.b32.xlu0 %v1254, 119
      %v1762 = vpop.permute.xlu0 %1761
      %1763 = vrot.lane.b32.xlu0 %v1256, 119
      %v1764 = vpop.permute.xlu0 %1763
      %v1765 = vsel %vm758, %v1758, %v1762
      %v1766 = vsel %vm758, %v1760, %v1764
      %v1767 = vsel %vm758, %v1762, %v1758
      %v1768 = vsel %vm758, %v1764, %v1760
      %v1769 = vld [vmem:[%s1 + $0x10] sm:$0x11]
      %v1770 = vunpack.c.l.bf16 %v1769
      %v1771 = vunpack.c.h.bf16 %v1769
      %v1772 = vlaneseq
      %v1773 = vshrl.u32 %v1772, 7
      %v1774 = vsub.s32 1, %v1773
      %v1775 = vrot.slane %v1770, %v1774
      %v1776 = vlaneseq
      %v1777 = vshrl.u32 %v1776, 7
      %v1778 = vsub.s32 1, %v1777
      %v1779 = vrot.slane %v1771, %v1778
      %v1780 = vmul.f32 %v1765, %v1775
      %v1781 = vmul.f32 %v1767, %v1779
      %v1782 = vmul.f32 %v1766, %v1775
      %v1783 = vmul.f32 %v1768, %v1779
      %v1784 = vpack.c.bf16 %v1782, %v1780
      %v1785 = vpack.c.bf16 %v1783, %v1781
      %1786 = vst [vmem:[%s213 + $0x80] sm:$0xff] %v1784
      %1787 = vst [vmem:[%s213 + $0x88] sm:$0xff] %v1785
      %v1788 = vld [vmem:[%s3] sm:$0xff]
      %v1789 = vld [vmem:[%s3 + $0x8] sm:$0xff]
      %v1790 = vld [vmem:[#allocation2] sm:$0xff]
      %v1791 = vld [vmem:[#allocation2 + $0x8] sm:$0xff]
      %v1792 = vld [vmem:[#allocation2 + $0x10] sm:$0xff]
      %v1793 = vld [vmem:[#allocation2 + $0x18] sm:$0xff]
      %v1794 = vld [vmem:[#allocation2 + $0x20] sm:$0xff]
      %v1795 = vld [vmem:[#allocation2 + $0x28] sm:$0xff]
      %v1796 = vld [vmem:[#allocation2 + $0x30] sm:$0xff]
      %v1797 = vld [vmem:[#allocation2 + $0x38] sm:$0xff]
      %v1798 = vld [vmem:[#allocation2 + $0x40] sm:$0xff]
      %v1799 = vld [vmem:[#allocation2 + $0x48] sm:$0xff]
      %v1800 = vld [vmem:[#allocation2 + $0x50] sm:$0xff]
      %v1801 = vld [vmem:[#allocation2 + $0x58] sm:$0xff]
      %v1802 = vld [vmem:[#allocation2 + $0x60] sm:$0xff]
      %v1803 = vld [vmem:[#allocation2 + $0x68] sm:$0xff]
      %v1804 = vld [vmem:[#allocation2 + $0x70] sm:$0xff]
      %v1805 = vld [vmem:[#allocation2 + $0x78] sm:$0xff]
      %v1806 = vld [vmem:[#allocation2 + $0x80] sm:$0xff]
      %v1807 = vld [vmem:[#allocation2 + $0x88] sm:$0xff]
      %v1808 = vld [vmem:[#allocation2 + $0x90] sm:$0xff]
      %v1809 = vld [vmem:[#allocation2 + $0x98] sm:$0xff]
      %v1810 = vld [vmem:[#allocation2 + $0xa0] sm:$0xff]
      %v1811 = vld [vmem:[#allocation2 + $0xa8] sm:$0xff]
      %v1812 = vld [vmem:[#allocation2 + $0xb0] sm:$0xff]
      %v1813 = vld [vmem:[#allocation2 + $0xb8] sm:$0xff]
      %v1814 = vld [vmem:[#allocation2 + $0xc0] sm:$0xff]
      %v1815 = vld [vmem:[#allocation2 + $0xc8] sm:$0xff]
      %v1816 = vld [vmem:[#allocation2 + $0xd0] sm:$0xff]
      %v1817 = vld [vmem:[#allocation2 + $0xd8] sm:$0xff]
      %v1818 = vld [vmem:[#allocation2 + $0xe0] sm:$0xff]
      %v1819 = vld [vmem:[#allocation2 + $0xe8] sm:$0xff]
      %v1820 = vld [vmem:[#allocation2 + $0xf0] sm:$0xff]
      %v1821 = vld [vmem:[#allocation2 + $0xf8] sm:$0xff]
      %v1822 = vld [vmem:[%s1 + $0x10] sm:$0x22]
      %v1823 = vunpack.c.l.bf16 %v1822
      %v1824 = vunpack.c.h.bf16 %v1822
      %v1825 = vlaneseq
      %v1826 = vshrl.u32 %v1825, 7
      %v1827 = vsub.s32 2, %v1826
      %v1828 = vrot.slane %v1823, %v1827
      %v1829 = vlaneseq
      %v1830 = vshrl.u32 %v1829, 7
      %v1831 = vsub.s32 2, %v1830
      %v1832 = vrot.slane %v1824, %v1831
      %v1833 = vmul.f32 %v1265, %v1828
      %v1834 = vmul.f32 %v1267, %v1832
      %v1835 = vmul.f32 %v1266, %v1828
      %v1836 = vmul.f32 %v1268, %v1832
      %v1837 = vpack.c.bf16 %v1835, %v1833
      %v1838 = vpack.c.bf16 %v1836, %v1834
      %1839 = vst [vmem:[#allocation2] sm:$0xff] %v1837
      %1840 = vst [vmem:[#allocation2 + $0x8] sm:$0xff] %v1838
      %v1841 = vld [vmem:[%s1 + $0x10] sm:$0x22]
      %v1842 = vunpack.c.l.bf16 %v1841
      %v1843 = vunpack.c.h.bf16 %v1841
      %v1844 = vlaneseq
      %v1845 = vshrl.u32 %v1844, 7
      %v1846 = vsub.s32 3, %v1845
      %v1847 = vrot.slane %v1842, %v1846
      %v1848 = vlaneseq
      %v1849 = vshrl.u32 %v1848, 7
      %v1850 = vsub.s32 3, %v1849
      %v1851 = vrot.slane %v1843, %v1850
      %v1852 = vmul.f32 %v1296, %v1847
      %v1853 = vmul.f32 %v1298, %v1851
      %v1854 = vmul.f32 %v1297, %v1847
      %v1855 = vmul.f32 %v1299, %v1851
      %v1856 = vpack.c.bf16 %v1854, %v1852
      %v1857 = vpack.c.bf16 %v1855, %v1853
      %1858 = vst [vmem:[#allocation2 + $0x10] sm:$0xff] %v1856
      %1859 = vst [vmem:[#allocation2 + $0x18] sm:$0xff] %v1857
      %v1860 = vld [vmem:[%s1 + $0x10] sm:$0x44]
      %v1861 = vunpack.c.l.bf16 %v1860
      %v1862 = vunpack.c.h.bf16 %v1860
      %v1863 = vlaneseq
      %v1864 = vshrl.u32 %v1863, 7
      %v1865 = vsub.s32 4, %v1864
      %v1866 = vrot.slane %v1861, %v1865
      %v1867 = vlaneseq
      %v1868 = vshrl.u32 %v1867, 7
      %v1869 = vsub.s32 4, %v1868
      %v1870 = vrot.slane %v1862, %v1869
      %v1871 = vmul.f32 %v1327, %v1866
      %v1872 = vmul.f32 %v1329, %v1870
      %v1873 = vmul.f32 %v1328, %v1866
      %v1874 = vmul.f32 %v1330, %v1870
      %v1875 = vpack.c.bf16 %v1873, %v1871
      %v1876 = vpack.c.bf16 %v1874, %v1872
      %1877 = vst [vmem:[#allocation2 + $0x20] sm:$0xff] %v1875
      %1878 = vst [vmem:[#allocation2 + $0x28] sm:$0xff] %v1876
      %v1879 = vld [vmem:[%s1 + $0x10] sm:$0x44]
      %v1880 = vunpack.c.l.bf16 %v1879
      %v1881 = vunpack.c.h.bf16 %v1879
      %v1882 = vlaneseq
      %v1883 = vshrl.u32 %v1882, 7
      %v1884 = vsub.s32 5, %v1883
      %v1885 = vrot.slane %v1880, %v1884
      %v1886 = vlaneseq
      %v1887 = vshrl.u32 %v1886, 7
      %v1888 = vsub.s32 5, %v1887
      %v1889 = vrot.slane %v1881, %v1888
      %v1890 = vmul.f32 %v1358, %v1885
      %v1891 = vmul.f32 %v1360, %v1889
      %v1892 = vmul.f32 %v1359, %v1885
      %v1893 = vmul.f32 %v1361, %v1889
      %v1894 = vpack.c.bf16 %v1892, %v1890
      %v1895 = vpack.c.bf16 %v1893, %v1891
      %1896 = vst [vmem:[#allocation2 + $0x30] sm:$0xff] %v1894
      %1897 = vst [vmem:[#allocation2 + $0x38] sm:$0xff] %v1895
      %v1898 = vld [vmem:[%s1 + $0x10] sm:$0x88]
      %v1899 = vunpack.c.l.bf16 %v1898
      %v1900 = vunpack.c.h.bf16 %v1898
      %v1901 = vlaneseq
      %v1902 = vshrl.u32 %v1901, 7
      %v1903 = vsub.s32 6, %v1902
      %v1904 = vrot.slane %v1899, %v1903
      %v1905 = vlaneseq
      %v1906 = vshrl.u32 %v1905, 7
      %v1907 = vsub.s32 6, %v1906
      %v1908 = vrot.slane %v1900, %v1907
      %v1909 = vmul.f32 %v1389, %v1904
      %v1910 = vmul.f32 %v1391, %v1908
      %v1911 = vmul.f32 %v1390, %v1904
      %v1912 = vmul.f32 %v1392, %v1908
      %v1913 = vpack.c.bf16 %v1911, %v1909
      %v1914 = vpack.c.bf16 %v1912, %v1910
      %1915 = vst [vmem:[#allocation2 + $0x40] sm:$0xff] %v1913
      %1916 = vst [vmem:[#allocation2 + $0x48] sm:$0xff] %v1914
      %v1917 = vld [vmem:[%s1 + $0x10] sm:$0x88]
      %v1918 = vunpack.c.l.bf16 %v1917
      %v1919 = vunpack.c.h.bf16 %v1917
      %v1920 = vlaneseq
      %v1921 = vshrl.u32 %v1920, 7
      %v1922 = vsub.s32 7, %v1921
      %v1923 = vrot.slane %v1918, %v1922
      %v1924 = vlaneseq
      %v1925 = vshrl.u32 %v1924, 7
      %v1926 = vsub.s32 7, %v1925
      %v1927 = vrot.slane %v1919, %v1926
      %v1928 = vmul.f32 %v1420, %v1923
      %v1929 = vmul.f32 %v1422, %v1927
      %v1930 = vmul.f32 %v1421, %v1923
      %v1931 = vmul.f32 %v1423, %v1927
      %v1932 = vpack.c.bf16 %v1930, %v1928
      %v1933 = vpack.c.bf16 %v1931, %v1929
      %1934 = vst [vmem:[#allocation2 + $0x50] sm:$0xff] %v1932
      %1935 = vst [vmem:[#allocation2 + $0x58] sm:$0xff] %v1933
      %v1936 = vld [vmem:[%s1 + $0x18] sm:$0x11]
      %v1937 = vunpack.c.l.bf16 %v1936
      %v1938 = vunpack.c.h.bf16 %v1936
      %v1939 = vlaneseq
      %v1940 = vshrl.u32 %v1939, 7
      %v1941 = vsub.s32 0, %v1940
      %v1942 = vrot.slane %v1937, %v1941
      %v1943 = vlaneseq
      %v1944 = vshrl.u32 %v1943, 7
      %v1945 = vsub.s32 0, %v1944
      %v1946 = vrot.slane %v1938, %v1945
      %v1947 = vmul.f32 %v1451, %v1942
      %v1948 = vmul.f32 %v1453, %v1946
      %v1949 = vmul.f32 %v1452, %v1942
      %v1950 = vmul.f32 %v1454, %v1946
      %v1951 = vpack.c.bf16 %v1949, %v1947
      %v1952 = vpack.c.bf16 %v1950, %v1948
      %1953 = vst [vmem:[#allocation2 + $0x60] sm:$0xff] %v1951
      %1954 = vst [vmem:[#allocation2 + $0x68] sm:$0xff] %v1952
      %v1955 = vld [vmem:[%s1 + $0x18] sm:$0x11]
      %v1956 = vunpack.c.l.bf16 %v1955
      %v1957 = vunpack.c.h.bf16 %v1955
      %v1958 = vlaneseq
      %v1959 = vshrl.u32 %v1958, 7
      %v1960 = vsub.s32 1, %v1959
      %v1961 = vrot.slane %v1956, %v1960
      %v1962 = vlaneseq
      %v1963 = vshrl.u32 %v1962, 7
      %v1964 = vsub.s32 1, %v1963
      %v1965 = vrot.slane %v1957, %v1964
      %v1966 = vmul.f32 %v1482, %v1961
      %v1967 = vmul.f32 %v1484, %v1965
      %v1968 = vmul.f32 %v1483, %v1961
      %v1969 = vmul.f32 %v1485, %v1965
      %v1970 = vpack.c.bf16 %v1968, %v1966
      %v1971 = vpack.c.bf16 %v1969, %v1967
      %1972 = vst [vmem:[#allocation2 + $0x70] sm:$0xff] %v1970
      %1973 = vst [vmem:[#allocation2 + $0x78] sm:$0xff] %v1971
      %v1974 = vld [vmem:[%s1 + $0x18] sm:$0x22]
      %v1975 = vunpack.c.l.bf16 %v1974
      %v1976 = vunpack.c.h.bf16 %v1974
      %v1977 = vlaneseq
      %v1978 = vshrl.u32 %v1977, 7
      %v1979 = vsub.s32 2, %v1978
      %v1980 = vrot.slane %v1975, %v1979
      %v1981 = vlaneseq
      %v1982 = vshrl.u32 %v1981, 7
      %v1983 = vsub.s32 2, %v1982
      %v1984 = vrot.slane %v1976, %v1983
      %v1985 = vmul.f32 %v1513, %v1980
      %v1986 = vmul.f32 %v1515, %v1984
      %v1987 = vmul.f32 %v1514, %v1980
      %v1988 = vmul.f32 %v1516, %v1984
      %v1989 = vpack.c.bf16 %v1987, %v1985
      %v1990 = vpack.c.bf16 %v1988, %v1986
      %1991 = vst [vmem:[#allocation2 + $0x80] sm:$0xff] %v1989
      %1992 = vst [vmem:[#allocation2 + $0x88] sm:$0xff] %v1990
      %s1993 = scalar_lea.vmem %s3, 16
      %v1994 = vld [vmem:[%s1993] sm:$0xff]
      %v1995 = vld [vmem:[%s1993 + $0x8] sm:$0xff]
      %v1996 = vld [vmem:[%s213] sm:$0xff]
      %v1997 = vld [vmem:[%s213 + $0x8] sm:$0xff]
      %v1998 = vld [vmem:[%s213 + $0x10] sm:$0xff]
      %v1999 = vld [vmem:[%s213 + $0x18] sm:$0xff]
      %v2000 = vld [vmem:[%s213 + $0x20] sm:$0xff]
      %v2001 = vld [vmem:[%s213 + $0x28] sm:$0xff]
      %v2002 = vld [vmem:[%s213 + $0x30] sm:$0xff]
      %v2003 = vld [vmem:[%s213 + $0x38] sm:$0xff]
      %v2004 = vld [vmem:[%s213 + $0x40] sm:$0xff]
      %v2005 = vld [vmem:[%s213 + $0x48] sm:$0xff]
      %v2006 = vld [vmem:[%s213 + $0x50] sm:$0xff]
      %v2007 = vld [vmem:[%s213 + $0x58] sm:$0xff]
      %v2008 = vld [vmem:[%s213 + $0x60] sm:$0xff]
      %v2009 = vld [vmem:[%s213 + $0x68] sm:$0xff]
      %v2010 = vld [vmem:[%s213 + $0x70] sm:$0xff]
      %v2011 = vld [vmem:[%s213 + $0x78] sm:$0xff]
      %v2012 = vld [vmem:[%s213 + $0x80] sm:$0xff]
      %v2013 = vld [vmem:[%s213 + $0x88] sm:$0xff]
      %v2014 = vld [vmem:[%s213 + $0x90] sm:$0xff]
      %v2015 = vld [vmem:[%s213 + $0x98] sm:$0xff]
      %v2016 = vld [vmem:[%s213 + $0xa0] sm:$0xff]
      %v2017 = vld [vmem:[%s213 + $0xa8] sm:$0xff]
      %v2018 = vld [vmem:[%s213 + $0xb0] sm:$0xff]
      %v2019 = vld [vmem:[%s213 + $0xb8] sm:$0xff]
      %v2020 = vld [vmem:[%s213 + $0xc0] sm:$0xff]
      %v2021 = vld [vmem:[%s213 + $0xc8] sm:$0xff]
      %v2022 = vld [vmem:[%s213 + $0xd0] sm:$0xff]
      %v2023 = vld [vmem:[%s213 + $0xd8] sm:$0xff]
      %v2024 = vld [vmem:[%s213 + $0xe0] sm:$0xff]
      %v2025 = vld [vmem:[%s213 + $0xe8] sm:$0xff]
      %v2026 = vld [vmem:[%s213 + $0xf0] sm:$0xff]
      %v2027 = vld [vmem:[%s213 + $0xf8] sm:$0xff]
      %v2030 = vunpack.c.l.b16 %v1994
      %v2031 = vunpack.c.h.b16 %v1994
      %v2032 = vunpack.c.l.b16 %v1995
      %v2033 = vunpack.c.h.b16 %v1995
      %v2034 = vpack.c.b16 %v2032, %v2030
      %v2035 = vpack.c.b16 %v2033, %v2031
      %2038 = vmatprep.subr.bf16.mxu0 %v1997
      %2039 = vmatpush1.bf16.msra.mxu0 %v1996
      %2040 = vmatprep.subr.bf16.mxu0 %v1999
      %2041 = vmatpush1.bf16.msra.mxu0 %v1998
      %2042 = vmatprep.subr.bf16.mxu0 %v2001
      %2043 = vmatpush1.bf16.msra.mxu0 %v2000
      %2044 = vmatprep.subr.bf16.mxu0 %v2003
      %2045 = vmatpush1.bf16.msra.mxu0 %v2002
      %2046 = vmatprep.subr.bf16.mxu0 %v2005
      %2047 = vmatpush1.bf16.msra.mxu0 %v2004
      %2048 = vmatprep.subr.bf16.mxu0 %v2007
      %2049 = vmatpush1.bf16.msra.mxu0 %v2006
      %2050 = vmatprep.subr.bf16.mxu0 %v2009
      %2051 = vmatpush1.bf16.msra.mxu0 %v2008
      %2052 = vmatprep.subr.bf16.mxu0 %v2011
      %2053 = vmatpush1.bf16.msra.mxu0 %v2010
      %2054 = vmatprep.subr.bf16.mxu0 %v2013
      %2055 = vmatpush1.bf16.msra.mxu0 %v2012
      %2056 = vmatprep.subr.bf16.mxu0 %v2015
      %2057 = vmatpush1.bf16.msra.mxu0 %v2014
      %2058 = vmatprep.subr.bf16.mxu0 %v2017
      %2059 = vmatpush1.bf16.msra.mxu0 %v2016
      %2060 = vmatprep.subr.bf16.mxu0 %v2019
      %2061 = vmatpush1.bf16.msra.mxu0 %v2018
      %2062 = vmatprep.subr.bf16.mxu0 %v2021
      %2063 = vmatpush1.bf16.msra.mxu0 %v2020
      %2064 = vmatprep.subr.bf16.mxu0 %v2023
      %2065 = vmatpush1.bf16.msra.mxu0 %v2022
      %2066 = vmatprep.subr.bf16.mxu0 %v2025
      %2067 = vmatpush1.bf16.msra.mxu0 %v2024
      %2068 = vmatprep.subr.bf16.mxu0 %v2027
      %2069 = vmatpush1.bf16.msra.mxu0 %v2026
      %2070 = vmatprep.mubr.bf16.mxu0 %v2035
      %2071 = vmatmul.mubr.bf16.gmra.mrb[0].mxu0 %v2034
      %v2072 = vpop.f32.mrb[0].mxu0
      %v2073 = vadd.f32 0.0, %v2072
      %v2074 = vpop.f32.mrb[0].mxu0
      %v2075 = vadd.f32 0.0, %v2074
      %v2076 = vpop.f32.mrb[0].mxu0
      %v2077 = vadd.f32 0.0, %v2076
      %v2078 = vpop.f32.mrb[0].mxu0
      %v2079 = vadd.f32 0.0, %v2078
      %2080 = vdwg.mxu0
      %v2083 = vunpack.c.l.b16 %v1788
      %v2084 = vunpack.c.h.b16 %v1788
      %v2085 = vunpack.c.l.b16 %v1789
      %v2086 = vunpack.c.h.b16 %v1789
      %v2087 = vpack.c.b16 %v2085, %v2083
      %v2088 = vpack.c.b16 %v2086, %v2084
      %2091 = vmatprep.subr.bf16.mxu0 %v1791
      %2092 = vmatpush1.bf16.msra.mxu0 %v1790
      %2093 = vmatprep.subr.bf16.mxu0 %v1793
      %2094 = vmatpush1.bf16.msra.mxu0 %v1792
      %2095 = vmatprep.subr.bf16.mxu0 %v1795
      %2096 = vmatpush1.bf16.msra.mxu0 %v1794
      %2097 = vmatprep.subr.bf16.mxu0 %v1797
      %2098 = vmatpush1.bf16.msra.mxu0 %v1796
      %2099 = vmatprep.subr.bf16.mxu0 %v1799
      %2100 = vmatpush1.bf16.msra.mxu0 %v1798
      %2101 = vmatprep.subr.bf16.mxu0 %v1801
      %2102 = vmatpush1.bf16.msra.mxu0 %v1800
      %2103 = vmatprep.subr.bf16.mxu0 %v1803
      %2104 = vmatpush1.bf16.msra.mxu0 %v1802
      %2105 = vmatprep.subr.bf16.mxu0 %v1805
      %2106 = vmatpush1.bf16.msra.mxu0 %v1804
      %2107 = vmatprep.subr.bf16.mxu0 %v1807
      %2108 = vmatpush1.bf16.msra.mxu0 %v1806
      %2109 = vmatprep.subr.bf16.mxu0 %v1809
      %2110 = vmatpush1.bf16.msra.mxu0 %v1808
      %2111 = vmatprep.subr.bf16.mxu0 %v1811
      %2112 = vmatpush1.bf16.msra.mxu0 %v1810
      %2113 = vmatprep.subr.bf16.mxu0 %v1813
      %2114 = vmatpush1.bf16.msra.mxu0 %v1812
      %2115 = vmatprep.subr.bf16.mxu0 %v1815
      %2116 = vmatpush1.bf16.msra.mxu0 %v1814
      %2117 = vmatprep.subr.bf16.mxu0 %v1817
      %2118 = vmatpush1.bf16.msra.mxu0 %v1816
      %2119 = vmatprep.subr.bf16.mxu0 %v1819
      %2120 = vmatpush1.bf16.msra.mxu0 %v1818
      %2121 = vmatprep.subr.bf16.mxu0 %v1821
      %2122 = vmatpush1.bf16.msra.mxu0 %v1820
      %2123 = vmatprep.mubr.bf16.mxu0 %v2088
      %2124 = vmatmul.mubr.bf16.gmra.mrb[0].mxu0 %v2087
      %v2125 = vpop.f32.mrb[0].mxu0
      %v2126 = vadd.f32 %v2073, %v2125
      %v2127 = vpop.f32.mrb[0].mxu0
      %v2128 = vadd.f32 %v2075, %v2127
      %v2129 = vpop.f32.mrb[0].mxu0
      %v2130 = vadd.f32 %v2077, %v2129
      %v2131 = vpop.f32.mrb[0].mxu0
      %v2132 = vadd.f32 %v2079, %v2131
      %2133 = vdwg.mxu0
      %s2134 = scalar_lea.vmem %s3, 32
      %v2135 = vld [vmem:[%s2134] sm:$0xff]
      %v2136 = vld [vmem:[%s2134 + $0x8] sm:$0xff]
      %v2137 = vld [vmem:[#allocation2] sm:$0xff]
      %v2138 = vld [vmem:[#allocation2 + $0x8] sm:$0xff]
      %v2139 = vld [vmem:[#allocation2 + $0x10] sm:$0xff]
      %v2140 = vld [vmem:[#allocation2 + $0x18] sm:$0xff]
      %v2141 = vld [vmem:[#allocation2 + $0x20] sm:$0xff]
      %v2142 = vld [vmem:[#allocation2 + $0x28] sm:$0xff]
      %v2143 = vld [vmem:[#allocation2 + $0x30] sm:$0xff]
      %v2144 = vld [vmem:[#allocation2 + $0x38] sm:$0xff]
      %v2145 = vld [vmem:[#allocation2 + $0x40] sm:$0xff]
      %v2146 = vld [vmem:[#allocation2 + $0x48] sm:$0xff]
      %v2147 = vld [vmem:[#allocation2 + $0x50] sm:$0xff]
      %v2148 = vld [vmem:[#allocation2 + $0x58] sm:$0xff]
      %v2149 = vld [vmem:[#allocation2 + $0x60] sm:$0xff]
      %v2150 = vld [vmem:[#allocation2 + $0x68] sm:$0xff]
      %v2151 = vld [vmem:[#allocation2 + $0x70] sm:$0xff]
      %v2152 = vld [vmem:[#allocation2 + $0x78] sm:$0xff]
      %v2153 = vld [vmem:[#allocation2 + $0x80] sm:$0xff]
      %v2154 = vld [vmem:[#allocation2 + $0x88] sm:$0xff]
      %v2155 = vld [vmem:[#allocation2 + $0x90] sm:$0xff]
      %v2156 = vld [vmem:[#allocation2 + $0x98] sm:$0xff]
      %v2157 = vld [vmem:[#allocation2 + $0xa0] sm:$0xff]
      %v2158 = vld [vmem:[#allocation2 + $0xa8] sm:$0xff]
      %v2159 = vld [vmem:[#allocation2 + $0xb0] sm:$0xff]
      %v2160 = vld [vmem:[#allocation2 + $0xb8] sm:$0xff]
      %v2161 = vld [vmem:[#allocation2 + $0xc0] sm:$0xff]
      %v2162 = vld [vmem:[#allocation2 + $0xc8] sm:$0xff]
      %v2163 = vld [vmem:[#allocation2 + $0xd0] sm:$0xff]
      %v2164 = vld [vmem:[#allocation2 + $0xd8] sm:$0xff]
      %v2165 = vld [vmem:[#allocation2 + $0xe0] sm:$0xff]
      %v2166 = vld [vmem:[#allocation2 + $0xe8] sm:$0xff]
      %v2167 = vld [vmem:[#allocation2 + $0xf0] sm:$0xff]
      %v2168 = vld [vmem:[#allocation2 + $0xf8] sm:$0xff]
      %v2171 = vunpack.c.l.b16 %v2135
      %v2172 = vunpack.c.h.b16 %v2135
      %v2173 = vunpack.c.l.b16 %v2136
      %v2174 = vunpack.c.h.b16 %v2136
      %v2175 = vpack.c.b16 %v2173, %v2171
      %v2176 = vpack.c.b16 %v2174, %v2172
      %2179 = vmatprep.subr.bf16.mxu0 %v2138
      %2180 = vmatpush1.bf16.msra.mxu0 %v2137
      %2181 = vmatprep.subr.bf16.mxu0 %v2140
      %2182 = vmatpush1.bf16.msra.mxu0 %v2139
      %2183 = vmatprep.subr.bf16.mxu0 %v2142
      %2184 = vmatpush1.bf16.msra.mxu0 %v2141
      %2185 = vmatprep.subr.bf16.mxu0 %v2144
      %2186 = vmatpush1.bf16.msra.mxu0 %v2143
      %2187 = vmatprep.subr.bf16.mxu0 %v2146
      %2188 = vmatpush1.bf16.msra.mxu0 %v2145
      %2189 = vmatprep.subr.bf16.mxu0 %v2148
      %2190 = vmatpush1.bf16.msra.mxu0 %v2147
      %2191 = vmatprep.subr.bf16.mxu0 %v2150
      %2192 = vmatpush1.bf16.msra.mxu0 %v2149
      %2193 = vmatprep.subr.bf16.mxu0 %v2152
      %2194 = vmatpush1.bf16.msra.mxu0 %v2151
      %2195 = vmatprep.subr.bf16.mxu0 %v2154
      %2196 = vmatpush1.bf16.msra.mxu0 %v2153
      %2197 = vmatprep.subr.bf16.mxu0 %v2156
      %2198 = vmatpush1.bf16.msra.mxu0 %v2155
      %2199 = vmatprep.subr.bf16.mxu0 %v2158
      %2200 = vmatpush1.bf16.msra.mxu0 %v2157
      %2201 = vmatprep.subr.bf16.mxu0 %v2160
      %2202 = vmatpush1.bf16.msra.mxu0 %v2159
      %2203 = vmatprep.subr.bf16.mxu0 %v2162
      %2204 = vmatpush1.bf16.msra.mxu0 %v2161
      %2205 = vmatprep.subr.bf16.mxu0 %v2164
      %2206 = vmatpush1.bf16.msra.mxu0 %v2163
      %2207 = vmatprep.subr.bf16.mxu0 %v2166
      %2208 = vmatpush1.bf16.msra.mxu0 %v2165
      %2209 = vmatprep.subr.bf16.mxu0 %v2168
      %2210 = vmatpush1.bf16.msra.mxu0 %v2167
      %2211 = vmatprep.mubr.bf16.mxu0 %v2176
      %2212 = vmatmul.mubr.bf16.gmra.mrb[0].mxu0 %v2175
      %v2213 = vpop.f32.mrb[0].mxu0
      %v2214 = vadd.f32 0.0, %v2213
      %v2215 = vpop.f32.mrb[0].mxu0
      %v2216 = vadd.f32 0.0, %v2215
      %v2217 = vpop.f32.mrb[0].mxu0
      %v2218 = vadd.f32 0.0, %v2217
      %v2219 = vpop.f32.mrb[0].mxu0
      %v2220 = vadd.f32 0.0, %v2219
      %2221 = vdwg.mxu0
      %v2222 = vadd.f32 %v2126, %v2214
      %v2223 = vadd.f32 %v2128, %v2216
      %v2224 = vadd.f32 %v2130, %v2218
      %v2225 = vadd.f32 %v2132, %v2220
      %v2226 = vadd.f32 %v2222, %v2223
      %2227 = vadd.xlane.f32.xlu0 %v2226
      %v2228 = vpop.xlane.xlu0 %2227
      %v2229 = vadd.f32 %v2224, %v2225
      %2230 = vadd.xlane.f32.xlu0 %v2229
      %v2231 = vpop.xlane.xlu0 %2230
      %v2232 = vmul.f32 %v2228, %v1226
      %v2233 = vmul.f32 %v2231, %v1226
      %v2234 = vsub.f32 %v2222, %v2232
      %v2235 = vsub.f32 %v2223, %v2232
      %v2236 = vsub.f32 %v2224, %v2233
      %v2237 = vsub.f32 %v2225, %v2233
      %v2238 = vmul.f32 %v2234, %v2234
      %v2239 = vmul.f32 %v2235, %v2235
      %v2240 = vmul.f32 %v2236, %v2236
      %v2241 = vmul.f32 %v2237, %v2237
      %v2242 = vadd.f32 %v2238, %v2239
      %2243 = vadd.xlane.f32.xlu0 %v2242
      %v2244 = vpop.xlane.xlu0 %2243
      %v2245 = vadd.f32 %v2240, %v2241
      %2246 = vadd.xlane.f32.xlu0 %v2245
      %v2247 = vpop.xlane.xlu0 %2246
      %v2248 = vmul.f32 %v2244, %v1226
      %v2249 = vmul.f32 %v2247, %v1226
      %v2250 = vadd.f32 %v2248, 1e-05
      %v2251 = vadd.f32 %v2249, 1e-05
      %v2252 = vrsqrt.pop %v2250
      %v2253 = vrsqrt.pop %v2251
      %v2254 = vmul.f32 %v2234, %v2252
      %v2255 = vmul.f32 %v2235, %v2252
      %v2256 = vmul.f32 %v2236, %v2253
      %v2257 = vmul.f32 %v2237, %v2253
      %v2258 = vadd.f32 %v228, %v2254
      %v2259 = vadd.f32 %v229, %v2255
      %v2260 = vadd.f32 %v230, %v2256
      %v2261 = vadd.f32 %v231, %v2257
      %2262 = vst [vmem:[%s197] sm:$0xff] %v2258
      %2263 = vst [vmem:[%s197 + $0x8] sm:$0xff] %v2259
      %2264 = vst [vmem:[%s197 + $0x10] sm:$0xff] %v2260
      %2265 = vst [vmem:[%s197 + $0x18] sm:$0xff] %v2261
      %p2266 = scmp.lt.s32.totalorder %s15, 1
      %s2267 = scalar_select %p2266, %s15, 1
      %s2268 = smul.addr %s2267, 4
      %s2269 = smul.addr %s2268, 8
      %s2270 = scalar_lea.vmem %s4, %s2269
      // Predicated region
      $region37: #{anim_resnet_block_forward.1} parent=35 // pred_check
        %p2271 = pneg %p122
      $region38: #{anim_resnet_block_forward.1} parent=35 // pred_check_branch
        %2273 = sbr.rel (%p2271) target = $region40
      $region39: #{anim_resnet_block_forward.1} parent=35 // pred_region
        _
      $region40: #{anim_resnet_block_forward.1} parent=35 // pred_fallthru
        _
    $region36: #{anim_resnet_block_forward.1} parent=5 // pred_fallthru
      _
    %p2274 = scmp.le.s32.totalorder 2, %s10
    // Predicated region
    $region41: #{anim_resnet_block_forward.1} parent=5 // pred_check
      %p2275 = pneg %p2274
    $region42: #{anim_resnet_block_forward.1} parent=5 // pred_check_branch
      %2277 = sbr.rel (%p2275) target = $region44
    $region43: #{anim_resnet_block_forward.1} parent=5 // pred_region
      %s2278 = ssub.s32 %s10, 2
      // Predicated region
      $region45: #{anim_resnet_block_forward.1} parent=43 // pred_check
        %p2279 = pneg %p128
      $region46: #{anim_resnet_block_forward.1} parent=43 // pred_check_branch
        %2281 = sbr.rel (%p2279) target = $region48
      $region47: #{anim_resnet_block_forward.1} parent=43 // pred_region
        %p2282 = scmp.lt.s32.totalorder %s16, 1
        %s2283 = scalar_select %p2282, %s16, 1
        %s2284 = smul.addr %s2283, 4
        %s2285 = smul.addr %s2284, 8
        %s2286 = scalar_lea.vmem %s4, %s2285
      $region48: #{anim_resnet_block_forward.1} parent=43 // pred_fallthru
        _
    $region44: #{anim_resnet_block_forward.1} parent=5 // pred_fallthru
      _
  $region6: #{anim_resnet_block_forward.1} parent=0 // loop_footer
    %s14 = sadd.s32 1, %s10
  $region7: #{anim_resnet_block_forward.1} parent=0 // loop_footer_branch
    %9 = sbr.rel target = $region3
  $region8: #{anim_resnet_block_forward.1} parent=0 // loop_exit
    _

</llo_original>
